<compile_context>
chip_gen: v7x
topology: tpu7x:2x2x1
jax: 0.10.0
libtpu: 0.0.40
codegen_flags: <defaults>
</compile_context>

<pallas_src>
import jax
import jax.numpy as jnp
from jax import lax
from jax.experimental import pallas as pl
from jax.experimental.pallas import tpu as pltpu


# ----------------------------------------------------------------------------
# Static layer plan
# ----------------------------------------------------------------------------
def _plan_layers(layers_cfg, in_channels, input_hw):
    plan = []
    c, hw = in_channels, input_hw
    for v in layers_cfg:
        if v == 'M':
            plan.append(('pool', hw, hw, c))
            hw //= 2
        else:
            plan.append(('conv', hw, hw, c, int(v)))
            c = int(v)
    return plan, c, hw


# ----------------------------------------------------------------------------
# Torch-layout parameter init (kaiming_normal fan_in/relu, zero bias)
# ----------------------------------------------------------------------------
def make_vgg_params(key, in_channels, layers_cfg, num_classes, input_hw):
    convs = []
    c, hw = in_channels, input_hw
    n_conv = sum(1 for v in layers_cfg if v != 'M')
    keys = jax.random.split(key, n_conv + 1)
    ki = 0
    for v in layers_cfg:
        if v == 'M':
            hw //= 2
        else:
            std = (2.0 / (c * 9)) ** 0.5
            w = jax.random.normal(keys[ki], (v, c, 3, 3), jnp.float32) * std   # OIHW
            convs.append((w, jnp.zeros((v,), jnp.float32)))
            ki += 1
            c = v
    feat = c * hw * hw
    fw = jax.random.normal(keys[ki], (num_classes, feat), jnp.float32) * (2.0 / feat) ** 0.5
    fb = jnp.zeros((num_classes,), jnp.float32)
    return convs, (fw, fb)


# ----------------------------------------------------------------------------
# One-time rewrite of torch params into kernel-friendly operands
# ----------------------------------------------------------------------------
def _prepare_operands(plan, convs, fc, num_classes, cf, hwf):
    operands = []
    ci = 0
    for layer in plan:
        if layer[0] == 'conv':
            _, H, W, Cin, Cout = layer
            wt, b = convs[ci]
            ci += 1
            # per-tap block-diagonal weight: one (W*Cin, W*Cout) matmul per 3x3 tap
            taps = jnp.transpose(wt, (2, 3, 1, 0)).reshape(9, Cin, Cout)       # (tap, ci, co)
            eye = jnp.eye(W, dtype=jnp.float32)
            wbig = jnp.einsum('wv,tio->twivo', eye, taps).reshape(9 * W * Cin, W * Cout)
            btile = jnp.tile(b, (W,)).reshape(1, W * Cout)
            operands += [wbig, btile]
        else:
            _, H, W, C = layer
            Ho, Wo = H // 2, W // 2
            # exact one-hot selection matrices for 2x2 maxpool in the (H, W*C) layout
            q = jnp.arange(Wo * C)
            p = jnp.arange(W * C)[:, None]
            even_src = (2 * (q // C) * C + (q % C))[None, :]
            s_even = (p == even_src).astype(jnp.float32)                       # (W*C, Wo*C)
            s_odd = (p == even_src + C).astype(jnp.float32)
            r = jnp.arange(Ho)[:, None]
            t_even = (jnp.arange(H)[None, :] == 2 * r).astype(jnp.float32)     # (Ho, H)
            t_odd = (jnp.arange(H)[None, :] == 2 * r + 1).astype(jnp.float32)
            operands += [s_even, s_odd, t_even, t_odd]
    fw_t, fb = fc
    # permute FC rows once: torch (c,h,w) flatten order -> kernel NHWC (h,w,c) order
    fwk = jnp.transpose(fw_t.reshape(num_classes, cf, hwf, hwf), (2, 3, 1, 0))
    fwk = fwk.reshape(hwf * hwf * cf, num_classes)
    operands += [fwk, fb.reshape(1, num_classes)]
    return operands


# ----------------------------------------------------------------------------
# Fused kernel (one image per grid step)
# ----------------------------------------------------------------------------
def _make_kernel(plan, hwf, cf, num_classes):
    feat_cols = hwf * cf

    def kernel(*refs):
        # refs = (x, per-layer operands..., fw, fb, out, per-conv pad scratch...)
        idx = 1
        per_layer = []
        for layer in plan:
            n = 2 if layer[0] == 'conv' else 4
            per_layer.append(refs[idx:idx + n])
            idx += n
        fw_ref, fb_ref, o_ref = refs[idx], refs[idx + 1], refs[idx + 2]
        pads = refs[idx + 3:]

        act = refs[0][0]                                   # (H, W*C), channels minor on lanes
        si = 0
        for layer, lrefs in zip(plan, per_layer):
            if layer[0] == 'conv':
                _, H, W, Cin, Cout = layer
                w_ref, b_ref = lrefs
                pad_ref = pads[si]
                si += 1
                wci = W * Cin
                # zero halo + write interior of padded image (VMEM only, no jnp.pad)
                pad_ref[...] = jnp.zeros_like(pad_ref)
                pad_ref[pl.ds(1, H), pl.ds(Cin, wci)] = act
                # 9 lane-dense MXU matmuls (one per 3x3 tap), f32 accumulation
                acc = None
                for t in range(9):
                    dh, dw = t // 3, t % 3
                    lhs = pad_ref[pl.ds(dh, H), pl.ds(dw * Cin, wci)]          # (H, W*Cin)
                    d = jnp.dot(lhs, w_ref[pl.ds(t * wci, wci), :],
                                preferred_element_type=jnp.float32)            # (H, W*Cout)
                    acc = d if acc is None else acc + d
                act = jnp.maximum(acc + b_ref[...], 0.0)
            else:
                se_ref, so_ref, te_ref, to_ref = lrefs
                # 2x2 maxpool: exact one-hot selection matmuls + vector max (all 2-D)
                mw = jnp.maximum(
                    jnp.dot(act, se_ref[...], preferred_element_type=jnp.float32),
                    jnp.dot(act, so_ref[...], preferred_element_type=jnp.float32))
                act = jnp.maximum(
                    jnp.dot(te_ref[...], mw, preferred_element_type=jnp.float32),
                    jnp.dot(to_ref[...], mw, preferred_element_type=jnp.float32))

        # classifier (weights already in NHWC feature order)
        logits = fb_ref[...]
        for h in range(hwf):
            logits = logits + jnp.dot(act[h:h + 1, :],
                                      fw_ref[pl.ds(h * feat_cols, feat_cols), :],
                                      preferred_element_type=jnp.float32)
        o_ref[0] = logits.astype(o_ref.dtype)

    return kernel


# ----------------------------------------------------------------------------
# Forward builder
# ----------------------------------------------------------------------------
def build_vgg_forward(layers_cfg, in_channels, input_hw, num_classes, convs, fc):
    plan, cf, hwf = _plan_layers(layers_cfg, in_channels, input_hw)
    operands = _prepare_operands(plan, convs, fc, num_classes, cf, hwf)
    kernel = _make_kernel(plan, hwf, cf, num_classes)

    weight_specs = [pl.BlockSpec(op.shape, lambda n, nd=op.ndim: (0,) * nd)
                    for op in operands]
    scratch_shapes = [pltpu.VMEM((H + 2, (W + 2) * Cin), jnp.float32)
                      for (kind, H, W, Cin, *_) in plan if kind == 'conv']

    h0, c0 = input_hw, in_channels

    def forward(x_nchw):
        N = x_nchw.shape[0]
        # NCHW -> NHWC once; fold (W, C) onto the lane axis (free metadata reshape)
        x = jnp.transpose(x_nchw, (0, 2, 3, 1)).reshape(N, h0, h0 * c0)
        out = pl.pallas_call(
            kernel,
            out_shape=jax.ShapeDtypeStruct((N, 1, num_classes), x_nchw.dtype),
            grid=(N,),
            in_specs=[pl.BlockSpec((1, h0, h0 * c0), lambda n: (n, 0, 0))] + weight_specs,
            out_specs=pl.BlockSpec((1, 1, num_classes), lambda n: (n, 0, 0)),
            scratch_shapes=scratch_shapes,
            compiler_params=pltpu.CompilerParams(
                dimension_semantics=("parallel",)),        # batch across cores on v7x
        )(x, *operands)
        return out.reshape(N, num_classes)

    return forward


# ----------------------------------------------------------------------------
# Pure-JAX reference (torch semantics)
# ----------------------------------------------------------------------------
def vgg_reference(x, layers_cfg, convs, fc):
    ci = 0
    for v in layers_cfg:
        if v == 'M':
            x = lax.reduce_window(x, -jnp.inf, lax.max,
                                  (1, 1, 2, 2), (1, 1, 2, 2), 'VALID')
        else:
            w, b = convs[ci]
            ci += 1
            x = lax.conv_general_dilated(x, w, (1, 1), ((1, 1), (1, 1)),
                                         dimension_numbers=('NCHW', 'OIHW', 'NCHW'),
                                         precision=lax.Precision.HIGHEST)
            x = jnp.maximum(x + b[None, :, None, None], 0.0)
    x = x.reshape(x.shape[0], -1)
    fw, fb = fc
    return jnp.dot(x, fw.T, precision=lax.Precision.HIGHEST) + fb


if __name__ == "__main__":
    layers_cfg = [8, 'M', 16, 'M']          # small VGG-style feature config
    N, Cin, HW, num_classes = 2, 4, 16, 10

    key = jax.random.PRNGKey(0)
    kx, kp = jax.random.split(key)
    x = jax.random.normal(kx, (N, Cin, HW, HW), jnp.float32)      # NCHW input
    convs, fc = make_vgg_params(kp, Cin, layers_cfg, num_classes, HW)

    forward = jax.jit(build_vgg_forward(layers_cfg, Cin, HW, num_classes, convs, fc))
    out = jax.block_until_ready(forward(x))
    assert out.shape == (N, num_classes), out.shape

    ref = vgg_reference(x, layers_cfg, convs, fc)
    err = float(jnp.max(jnp.abs(out - ref)))
    assert err < 5e-2, f"max abs error vs reference: {err}"
    print("KERNEL_OK")
</pallas_src>

<mosaic_0001>
module attributes {stable_mosaic.version = 11 : i64} {
  func.func @kernel(%arg0: i32, %arg1: memref<1x16x64xf32, #tpu.memory_space<vmem>>, %arg2: memref<576x128xf32, #tpu.memory_space<vmem>>, %arg3: memref<1x128xf32, #tpu.memory_space<vmem>>, %arg4: memref<128x64xf32, #tpu.memory_space<vmem>>, %arg5: memref<128x64xf32, #tpu.memory_space<vmem>>, %arg6: memref<8x16xf32, #tpu.memory_space<vmem>>, %arg7: memref<8x16xf32, #tpu.memory_space<vmem>>, %arg8: memref<576x128xf32, #tpu.memory_space<vmem>>, %arg9: memref<1x128xf32, #tpu.memory_space<vmem>>, %arg10: memref<128x64xf32, #tpu.memory_space<vmem>>, %arg11: memref<128x64xf32, #tpu.memory_space<vmem>>, %arg12: memref<4x8xf32, #tpu.memory_space<vmem>>, %arg13: memref<4x8xf32, #tpu.memory_space<vmem>>, %arg14: memref<256x10xf32, #tpu.memory_space<vmem>>, %arg15: memref<1x10xf32, #tpu.memory_space<vmem>>, %arg16: memref<1x1x10xf32, #tpu.memory_space<vmem>>, %arg17: memref<18x72xf32, #tpu.memory_space<vmem>>, %arg18: memref<10x80xf32, #tpu.memory_space<vmem>>) attributes {dimension_semantics = [#tpu.dimension_semantics<parallel>], iteration_bounds = array<i64: 2>, scalar_prefetch = 0 : i64, scratch_operands = 2 : i64, tpu.core_type = #tpu.core_type<tc>, window_params = [{transform_indices = @transform_0, window_bounds = array<i64: 1, 16, 64>}, {pipeline_mode = #tpu.pipeline_mode<synchronous>, transform_indices = @transform_1, window_bounds = array<i64: 576, 128>}, {pipeline_mode = #tpu.pipeline_mode<synchronous>, transform_indices = @transform_2, window_bounds = array<i64: 1, 128>}, {pipeline_mode = #tpu.pipeline_mode<synchronous>, transform_indices = @transform_3, window_bounds = array<i64: 128, 64>}, {pipeline_mode = #tpu.pipeline_mode<synchronous>, transform_indices = @transform_4, window_bounds = array<i64: 128, 64>}, {pipeline_mode = #tpu.pipeline_mode<synchronous>, transform_indices = @transform_5, window_bounds = array<i64: 8, 16>}, {pipeline_mode = #tpu.pipeline_mode<synchronous>, transform_indices = @transform_6, window_bounds = array<i64: 8, 16>}, {pipeline_mode = #tpu.pipeline_mode<synchronous>, transform_indices = @transform_7, window_bounds = array<i64: 576, 128>}, {pipeline_mode = #tpu.pipeline_mode<synchronous>, transform_indices = @transform_8, window_bounds = array<i64: 1, 128>}, {pipeline_mode = #tpu.pipeline_mode<synchronous>, transform_indices = @transform_9, window_bounds = array<i64: 128, 64>}, {pipeline_mode = #tpu.pipeline_mode<synchronous>, transform_indices = @transform_10, window_bounds = array<i64: 128, 64>}, {pipeline_mode = #tpu.pipeline_mode<synchronous>, transform_indices = @transform_11, window_bounds = array<i64: 4, 8>}, {pipeline_mode = #tpu.pipeline_mode<synchronous>, transform_indices = @transform_12, window_bounds = array<i64: 4, 8>}, {pipeline_mode = #tpu.pipeline_mode<synchronous>, transform_indices = @transform_13, window_bounds = array<i64: 256, 10>}, {pipeline_mode = #tpu.pipeline_mode<synchronous>, transform_indices = @transform_14, window_bounds = array<i64: 1, 10>}, {transform_indices = @transform_15, window_bounds = array<i64: 1, 1, 10>}]} {
    %c0 = arith.constant 0 : index
    %c0_0 = arith.constant 0 : index
    %c0_1 = arith.constant 0 : index
    %0 = vector.load %arg1[%c0, %c0_0, %c0_1] : memref<1x16x64xf32, #tpu.memory_space<vmem>>, vector<1x16x64xf32>
    %1 = vector.shape_cast %0 : vector<1x16x64xf32> to vector<16x64xf32>
    %cst = arith.constant 0.000000e+00 : f32
    %2 = vector.broadcast %cst : f32 to vector<18x72xf32>
    %c0_2 = arith.constant 0 : index
    %c0_3 = arith.constant 0 : index
    %3 = vector.load %arg17[%c0_2, %c0_3] : memref<18x72xf32, #tpu.memory_space<vmem>>, vector<18x72xf32>
    tpu.vector_store %arg17[%c0_2, %c0_3], %2 {strides = array<i32>} : memref<18x72xf32, #tpu.memory_space<vmem>>, vector<18x72xf32>,
    %c1 = arith.constant 1 : index
    %c4 = arith.constant 4 : index
    %4 = vector.load %arg17[%c1, %c4] : memref<18x72xf32, #tpu.memory_space<vmem>>, vector<16x64xf32>
    tpu.vector_store %arg17[%c1, %c4], %1 {strides = array<i32>} : memref<18x72xf32, #tpu.memory_space<vmem>>, vector<16x64xf32>,
    %c0_4 = arith.constant 0 : index
    %c0_5 = arith.constant 0 : index
    %5 = vector.load %arg17[%c0_4, %c0_5] : memref<18x72xf32, #tpu.memory_space<vmem>>, vector<16x64xf32>
    %c0_6 = arith.constant 0 : index
    %c0_7 = arith.constant 0 : index
    %6 = vector.load %arg2[%c0_6, %c0_7] : memref<576x128xf32, #tpu.memory_space<vmem>>, vector<64x128xf32>
    %cst_8 = arith.constant dense<0.000000e+00> : vector<16x128xf32>
    %7 = tpu.matmul %5, %6, %cst_8 {dimension_numbers = #tpu.dot_dimension_numbers<[1], [0], [0], [1], [0, 0, 1, 1], [], []>} : vector<16x64xf32>, vector<64x128xf32>, vector<16x128xf32> -> vector<16x128xf32>
    %c0_9 = arith.constant 0 : index
    %c4_10 = arith.constant 4 : index
    %8 = vector.load %arg17[%c0_9, %c4_10] : memref<18x72xf32, #tpu.memory_space<vmem>>, vector<16x64xf32>
    %c64 = arith.constant 64 : index
    %c0_11 = arith.constant 0 : index
    %9 = vector.load %arg2[%c64, %c0_11] : memref<576x128xf32, #tpu.memory_space<vmem>>, vector<64x128xf32>
    %cst_12 = arith.constant dense<0.000000e+00> : vector<16x128xf32>
    %10 = tpu.matmul %8, %9, %cst_12 {dimension_numbers = #tpu.dot_dimension_numbers<[1], [0], [0], [1], [0, 0, 1, 1], [], []>} : vector<16x64xf32>, vector<64x128xf32>, vector<16x128xf32> -> vector<16x128xf32>
    %11 = arith.addf %7, %10 : vector<16x128xf32>
    %c0_13 = arith.constant 0 : index
    %c8 = arith.constant 8 : index
    %12 = vector.load %arg17[%c0_13, %c8] : memref<18x72xf32, #tpu.memory_space<vmem>>, vector<16x64xf32>
    %c128 = arith.constant 128 : index
    %c0_14 = arith.constant 0 : index
    %13 = vector.load %arg2[%c128, %c0_14] : memref<576x128xf32, #tpu.memory_space<vmem>>, vector<64x128xf32>
    %cst_15 = arith.constant dense<0.000000e+00> : vector<16x128xf32>
    %14 = tpu.matmul %12, %13, %cst_15 {dimension_numbers = #tpu.dot_dimension_numbers<[1], [0], [0], [1], [0, 0, 1, 1], [], []>} : vector<16x64xf32>, vector<64x128xf32>, vector<16x128xf32> -> vector<16x128xf32>
    %15 = arith.addf %11, %14 : vector<16x128xf32>
    %c1_16 = arith.constant 1 : index
    %c0_17 = arith.constant 0 : index
    %16 = vector.load %arg17[%c1_16, %c0_17] : memref<18x72xf32, #tpu.memory_space<vmem>>, vector<16x64xf32>
    %c192 = arith.constant 192 : index
    %c0_18 = arith.constant 0 : index
    %17 = vector.load %arg2[%c192, %c0_18] : memref<576x128xf32, #tpu.memory_space<vmem>>, vector<64x128xf32>
    %cst_19 = arith.constant dense<0.000000e+00> : vector<16x128xf32>
    %18 = tpu.matmul %16, %17, %cst_19 {dimension_numbers = #tpu.dot_dimension_numbers<[1], [0], [0], [1], [0, 0, 1, 1], [], []>} : vector<16x64xf32>, vector<64x128xf32>, vector<16x128xf32> -> vector<16x128xf32>
    %19 = arith.addf %15, %18 : vector<16x128xf32>
    %c1_20 = arith.constant 1 : index
    %c4_21 = arith.constant 4 : index
    %20 = vector.load %arg17[%c1_20, %c4_21] : memref<18x72xf32, #tpu.memory_space<vmem>>, vector<16x64xf32>
    %c256 = arith.constant 256 : index
    %c0_22 = arith.constant 0 : index
    %21 = vector.load %arg2[%c256, %c0_22] : memref<576x128xf32, #tpu.memory_space<vmem>>, vector<64x128xf32>
    %cst_23 = arith.constant dense<0.000000e+00> : vector<16x128xf32>
    %22 = tpu.matmul %20, %21, %cst_23 {dimension_numbers = #tpu.dot_dimension_numbers<[1], [0], [0], [1], [0, 0, 1, 1], [], []>} : vector<16x64xf32>, vector<64x128xf32>, vector<16x128xf32> -> vector<16x128xf32>
    %23 = arith.addf %19, %22 : vector<16x128xf32>
    %c1_24 = arith.constant 1 : index
    %c8_25 = arith.constant 8 : index
    %24 = vector.load %arg17[%c1_24, %c8_25] : memref<18x72xf32, #tpu.memory_space<vmem>>, vector<16x64xf32>
    %c320 = arith.constant 320 : index
    %c0_26 = arith.constant 0 : index
    %25 = vector.load %arg2[%c320, %c0_26] : memref<576x128xf32, #tpu.memory_space<vmem>>, vector<64x128xf32>
    %cst_27 = arith.constant dense<0.000000e+00> : vector<16x128xf32>
    %26 = tpu.matmul %24, %25, %cst_27 {dimension_numbers = #tpu.dot_dimension_numbers<[1], [0], [0], [1], [0, 0, 1, 1], [], []>} : vector<16x64xf32>, vector<64x128xf32>, vector<16x128xf32> -> vector<16x128xf32>
    %27 = arith.addf %23, %26 : vector<16x128xf32>
    %c2 = arith.constant 2 : index
    %c0_28 = arith.constant 0 : index
    %28 = vector.load %arg17[%c2, %c0_28] : memref<18x72xf32, #tpu.memory_space<vmem>>, vector<16x64xf32>
    %c384 = arith.constant 384 : index
    %c0_29 = arith.constant 0 : index
    %29 = vector.load %arg2[%c384, %c0_29] : memref<576x128xf32, #tpu.memory_space<vmem>>, vector<64x128xf32>
    %cst_30 = arith.constant dense<0.000000e+00> : vector<16x128xf32>
    %30 = tpu.matmul %28, %29, %cst_30 {dimension_numbers = #tpu.dot_dimension_numbers<[1], [0], [0], [1], [0, 0, 1, 1], [], []>} : vector<16x64xf32>, vector<64x128xf32>, vector<16x128xf32> -> vector<16x128xf32>
    %31 = arith.addf %27, %30 : vector<16x128xf32>
    %c2_31 = arith.constant 2 : index
    %c4_32 = arith.constant 4 : index
    %32 = vector.load %arg17[%c2_31, %c4_32] : memref<18x72xf32, #tpu.memory_space<vmem>>, vector<16x64xf32>
    %c448 = arith.constant 448 : index
    %c0_33 = arith.constant 0 : index
    %33 = vector.load %arg2[%c448, %c0_33] : memref<576x128xf32, #tpu.memory_space<vmem>>, vector<64x128xf32>
    %cst_34 = arith.constant dense<0.000000e+00> : vector<16x128xf32>
    %34 = tpu.matmul %32, %33, %cst_34 {dimension_numbers = #tpu.dot_dimension_numbers<[1], [0], [0], [1], [0, 0, 1, 1], [], []>} : vector<16x64xf32>, vector<64x128xf32>, vector<16x128xf32> -> vector<16x128xf32>
    %35 = arith.addf %31, %34 : vector<16x128xf32>
    %c2_35 = arith.constant 2 : index
    %c8_36 = arith.constant 8 : index
    %36 = vector.load %arg17[%c2_35, %c8_36] : memref<18x72xf32, #tpu.memory_space<vmem>>, vector<16x64xf32>
    %c512 = arith.constant 512 : index
    %c0_37 = arith.constant 0 : index
    %37 = vector.load %arg2[%c512, %c0_37] : memref<576x128xf32, #tpu.memory_space<vmem>>, vector<64x128xf32>
    %cst_38 = arith.constant dense<0.000000e+00> : vector<16x128xf32>
    %38 = tpu.matmul %36, %37, %cst_38 {dimension_numbers = #tpu.dot_dimension_numbers<[1], [0], [0], [1], [0, 0, 1, 1], [], []>} : vector<16x64xf32>, vector<64x128xf32>, vector<16x128xf32> -> vector<16x128xf32>
    %39 = arith.addf %35, %38 : vector<16x128xf32>
    %c0_39 = arith.constant 0 : index
    %c0_40 = arith.constant 0 : index
    %40 = vector.load %arg3[%c0_39, %c0_40] : memref<1x128xf32, #tpu.memory_space<vmem>>, vector<1x128xf32>
    %41 = vector.broadcast %40 : vector<1x128xf32> to vector<16x128xf32>
    %42 = arith.addf %39, %41 : vector<16x128xf32>
    %cst_41 = arith.constant 0.000000e+00 : f32
    %43 = vector.broadcast %cst_41 : f32 to vector<16x128xf32>
    %44 = arith.maximumf %42, %43 : vector<16x128xf32>
    %c0_42 = arith.constant 0 : index
    %c0_43 = arith.constant 0 : index
    %45 = vector.load %arg4[%c0_42, %c0_43] : memref<128x64xf32, #tpu.memory_space<vmem>>, vector<128x64xf32>
    %cst_44 = arith.constant dense<0.000000e+00> : vector<16x64xf32>
    %46 = tpu.matmul %44, %45, %cst_44 {dimension_numbers = #tpu.dot_dimension_numbers<[1], [0], [0], [1], [0, 0, 1, 1], [], []>} : vector<16x128xf32>, vector<128x64xf32>, vector<16x64xf32> -> vector<16x64xf32>
    %c0_45 = arith.constant 0 : index
    %c0_46 = arith.constant 0 : index
    %47 = vector.load %arg5[%c0_45, %c0_46] : memref<128x64xf32, #tpu.memory_space<vmem>>, vector<128x64xf32>
    %cst_47 = arith.constant dense<0.000000e+00> : vector<16x64xf32>
    %48 = tpu.matmul %44, %47, %cst_47 {dimension_numbers = #tpu.dot_dimension_numbers<[1], [0], [0], [1], [0, 0, 1, 1], [], []>} : vector<16x128xf32>, vector<128x64xf32>, vector<16x64xf32> -> vector<16x64xf32>
    %49 = arith.maximumf %46, %48 : vector<16x64xf32>
    %c0_48 = arith.constant 0 : index
    %c0_49 = arith.constant 0 : index
    %50 = vector.load %arg6[%c0_48, %c0_49] : memref<8x16xf32, #tpu.memory_space<vmem>>, vector<8x16xf32>
    %cst_50 = arith.constant dense<0.000000e+00> : vector<8x64xf32>
    %51 = tpu.matmul %50, %49, %cst_50 {dimension_numbers = #tpu.dot_dimension_numbers<[1], [0], [0], [1], [0, 0, 1, 1], [], []>} : vector<8x16xf32>, vector<16x64xf32>, vector<8x64xf32> -> vector<8x64xf32>
    %c0_51 = arith.constant 0 : index
    %c0_52 = arith.constant 0 : index
    %52 = vector.load %arg7[%c0_51, %c0_52] : memref<8x16xf32, #tpu.memory_space<vmem>>, vector<8x16xf32>
    %cst_53 = arith.constant dense<0.000000e+00> : vector<8x64xf32>
    %53 = tpu.matmul %52, %49, %cst_53 {dimension_numbers = #tpu.dot_dimension_numbers<[1], [0], [0], [1], [0, 0, 1, 1], [], []>} : vector<8x16xf32>, vector<16x64xf32>, vector<8x64xf32> -> vector<8x64xf32>
    %54 = arith.maximumf %51, %53 : vector<8x64xf32>
    %cst_54 = arith.constant 0.000000e+00 : f32
    %55 = vector.broadcast %cst_54 : f32 to vector<10x80xf32>
    %c0_55 = arith.constant 0 : index
    %c0_56 = arith.constant 0 : index
    %56 = vector.load %arg18[%c0_55, %c0_56] : memref<10x80xf32, #tpu.memory_space<vmem>>, vector<10x80xf32>
    tpu.vector_store %arg18[%c0_55, %c0_56], %55 {strides = array<i32>} : memref<10x80xf32, #tpu.memory_space<vmem>>, vector<10x80xf32>,
    %c1_57 = arith.constant 1 : index
    %c8_58 = arith.constant 8 : index
    %57 = vector.load %arg18[%c1_57, %c8_58] : memref<10x80xf32, #tpu.memory_space<vmem>>, vector<8x64xf32>
    tpu.vector_store %arg18[%c1_57, %c8_58], %54 {strides = array<i32>} : memref<10x80xf32, #tpu.memory_space<vmem>>, vector<8x64xf32>,
    %c0_59 = arith.constant 0 : index
    %c0_60 = arith.constant 0 : index
    %58 = vector.load %arg18[%c0_59, %c0_60] : memref<10x80xf32, #tpu.memory_space<vmem>>, vector<8x64xf32>
    %c0_61 = arith.constant 0 : index
    %c0_62 = arith.constant 0 : index
    %59 = vector.load %arg8[%c0_61, %c0_62] : memref<576x128xf32, #tpu.memory_space<vmem>>, vector<64x128xf32>
    %cst_63 = arith.constant dense<0.000000e+00> : vector<8x128xf32>
    %60 = tpu.matmul %58, %59, %cst_63 {dimension_numbers = #tpu.dot_dimension_numbers<[1], [0], [0], [1], [0, 0, 1, 1], [], []>} : vector<8x64xf32>, vector<64x128xf32>, vector<8x128xf32> -> vector<8x128xf32>
    %c0_64 = arith.constant 0 : index
    %c8_65 = arith.constant 8 : index
    %61 = vector.load %arg18[%c0_64, %c8_65] : memref<10x80xf32, #tpu.memory_space<vmem>>, vector<8x64xf32>
    %c64_66 = arith.constant 64 : index
    %c0_67 = arith.constant 0 : index
    %62 = vector.load %arg8[%c64_66, %c0_67] : memref<576x128xf32, #tpu.memory_space<vmem>>, vector<64x128xf32>
    %cst_68 = arith.constant dense<0.000000e+00> : vector<8x128xf32>
    %63 = tpu.matmul %61, %62, %cst_68 {dimension_numbers = #tpu.dot_dimension_numbers<[1], [0], [0], [1], [0, 0, 1, 1], [], []>} : vector<8x64xf32>, vector<64x128xf32>, vector<8x128xf32> -> vector<8x128xf32>
    %64 = arith.addf %60, %63 : vector<8x128xf32>
    %c0_69 = arith.constant 0 : index
    %c16 = arith.constant 16 : index
    %65 = vector.load %arg18[%c0_69, %c16] : memref<10x80xf32, #tpu.memory_space<vmem>>, vector<8x64xf32>
    %c128_70 = arith.constant 128 : index
    %c0_71 = arith.constant 0 : index
    %66 = vector.load %arg8[%c128_70, %c0_71] : memref<576x128xf32, #tpu.memory_space<vmem>>, vector<64x128xf32>
    %cst_72 = arith.constant dense<0.000000e+00> : vector<8x128xf32>
    %67 = tpu.matmul %65, %66, %cst_72 {dimension_numbers = #tpu.dot_dimension_numbers<[1], [0], [0], [1], [0, 0, 1, 1], [], []>} : vector<8x64xf32>, vector<64x128xf32>, vector<8x128xf32> -> vector<8x128xf32>
    %68 = arith.addf %64, %67 : vector<8x128xf32>
    %c1_73 = arith.constant 1 : index
    %c0_74 = arith.constant 0 : index
    %69 = vector.load %arg18[%c1_73, %c0_74] : memref<10x80xf32, #tpu.memory_space<vmem>>, vector<8x64xf32>
    %c192_75 = arith.constant 192 : index
    %c0_76 = arith.constant 0 : index
    %70 = vector.load %arg8[%c192_75, %c0_76] : memref<576x128xf32, #tpu.memory_space<vmem>>, vector<64x128xf32>
    %cst_77 = arith.constant dense<0.000000e+00> : vector<8x128xf32>
    %71 = tpu.matmul %69, %70, %cst_77 {dimension_numbers = #tpu.dot_dimension_numbers<[1], [0], [0], [1], [0, 0, 1, 1], [], []>} : vector<8x64xf32>, vector<64x128xf32>, vector<8x128xf32> -> vector<8x128xf32>
    %72 = arith.addf %68, %71 : vector<8x128xf32>
    %c1_78 = arith.constant 1 : index
    %c8_79 = arith.constant 8 : index
    %73 = vector.load %arg18[%c1_78, %c8_79] : memref<10x80xf32, #tpu.memory_space<vmem>>, vector<8x64xf32>
    %c256_80 = arith.constant 256 : index
    %c0_81 = arith.constant 0 : index
    %74 = vector.load %arg8[%c256_80, %c0_81] : memref<576x128xf32, #tpu.memory_space<vmem>>, vector<64x128xf32>
    %cst_82 = arith.constant dense<0.000000e+00> : vector<8x128xf32>
    %75 = tpu.matmul %73, %74, %cst_82 {dimension_numbers = #tpu.dot_dimension_numbers<[1], [0], [0], [1], [0, 0, 1, 1], [], []>} : vector<8x64xf32>, vector<64x128xf32>, vector<8x128xf32> -> vector<8x128xf32>
    %76 = arith.addf %72, %75 : vector<8x128xf32>
    %c1_83 = arith.constant 1 : index
    %c16_84 = arith.constant 16 : index
    %77 = vector.load %arg18[%c1_83, %c16_84] : memref<10x80xf32, #tpu.memory_space<vmem>>, vector<8x64xf32>
    %c320_85 = arith.constant 320 : index
    %c0_86 = arith.constant 0 : index
    %78 = vector.load %arg8[%c320_85, %c0_86] : memref<576x128xf32, #tpu.memory_space<vmem>>, vector<64x128xf32>
    %cst_87 = arith.constant dense<0.000000e+00> : vector<8x128xf32>
    %79 = tpu.matmul %77, %78, %cst_87 {dimension_numbers = #tpu.dot_dimension_numbers<[1], [0], [0], [1], [0, 0, 1, 1], [], []>} : vector<8x64xf32>, vector<64x128xf32>, vector<8x128xf32> -> vector<8x128xf32>
    %80 = arith.addf %76, %79 : vector<8x128xf32>
    %c2_88 = arith.constant 2 : index
    %c0_89 = arith.constant 0 : index
    %81 = vector.load %arg18[%c2_88, %c0_89] : memref<10x80xf32, #tpu.memory_space<vmem>>, vector<8x64xf32>
    %c384_90 = arith.constant 384 : index
    %c0_91 = arith.constant 0 : index
    %82 = vector.load %arg8[%c384_90, %c0_91] : memref<576x128xf32, #tpu.memory_space<vmem>>, vector<64x128xf32>
    %cst_92 = arith.constant dense<0.000000e+00> : vector<8x128xf32>
    %83 = tpu.matmul %81, %82, %cst_92 {dimension_numbers = #tpu.dot_dimension_numbers<[1], [0], [0], [1], [0, 0, 1, 1], [], []>} : vector<8x64xf32>, vector<64x128xf32>, vector<8x128xf32> -> vector<8x128xf32>
    %84 = arith.addf %80, %83 : vector<8x128xf32>
    %c2_93 = arith.constant 2 : index
    %c8_94 = arith.constant 8 : index
    %85 = vector.load %arg18[%c2_93, %c8_94] : memref<10x80xf32, #tpu.memory_space<vmem>>, vector<8x64xf32>
    %c448_95 = arith.constant 448 : index
    %c0_96 = arith.constant 0 : index
    %86 = vector.load %arg8[%c448_95, %c0_96] : memref<576x128xf32, #tpu.memory_space<vmem>>, vector<64x128xf32>
    %cst_97 = arith.constant dense<0.000000e+00> : vector<8x128xf32>
    %87 = tpu.matmul %85, %86, %cst_97 {dimension_numbers = #tpu.dot_dimension_numbers<[1], [0], [0], [1], [0, 0, 1, 1], [], []>} : vector<8x64xf32>, vector<64x128xf32>, vector<8x128xf32> -> vector<8x128xf32>
    %88 = arith.addf %84, %87 : vector<8x128xf32>
    %c2_98 = arith.constant 2 : index
    %c16_99 = arith.constant 16 : index
    %89 = vector.load %arg18[%c2_98, %c16_99] : memref<10x80xf32, #tpu.memory_space<vmem>>, vector<8x64xf32>
    %c512_100 = arith.constant 512 : index
    %c0_101 = arith.constant 0 : index
    %90 = vector.load %arg8[%c512_100, %c0_101] : memref<576x128xf32, #tpu.memory_space<vmem>>, vector<64x128xf32>
    %cst_102 = arith.constant dense<0.000000e+00> : vector<8x128xf32>
    %91 = tpu.matmul %89, %90, %cst_102 {dimension_numbers = #tpu.dot_dimension_numbers<[1], [0], [0], [1], [0, 0, 1, 1], [], []>} : vector<8x64xf32>, vector<64x128xf32>, vector<8x128xf32> -> vector<8x128xf32>
    %92 = arith.addf %88, %91 : vector<8x128xf32>
    %c0_103 = arith.constant 0 : index
    %c0_104 = arith.constant 0 : index
    %93 = vector.load %arg9[%c0_103, %c0_104] : memref<1x128xf32, #tpu.memory_space<vmem>>, vector<1x128xf32>
    %94 = vector.broadcast %93 : vector<1x128xf32> to vector<8x128xf32>
    %95 = arith.addf %92, %94 : vector<8x128xf32>
    %cst_105 = arith.constant 0.000000e+00 : f32
    %96 = vector.broadcast %cst_105 : f32 to vector<8x128xf32>
    %97 = arith.maximumf %95, %96 : vector<8x128xf32>
    %c0_106 = arith.constant 0 : index
    %c0_107 = arith.constant 0 : index
    %98 = vector.load %arg10[%c0_106, %c0_107] : memref<128x64xf32, #tpu.memory_space<vmem>>, vector<128x64xf32>
    %cst_108 = arith.constant dense<0.000000e+00> : vector<8x64xf32>
    %99 = tpu.matmul %97, %98, %cst_108 {dimension_numbers = #tpu.dot_dimension_numbers<[1], [0], [0], [1], [0, 0, 1, 1], [], []>} : vector<8x128xf32>, vector<128x64xf32>, vector<8x64xf32> -> vector<8x64xf32>
    %c0_109 = arith.constant 0 : index
    %c0_110 = arith.constant 0 : index
    %100 = vector.load %arg11[%c0_109, %c0_110] : memref<128x64xf32, #tpu.memory_space<vmem>>, vector<128x64xf32>
    %cst_111 = arith.constant dense<0.000000e+00> : vector<8x64xf32>
    %101 = tpu.matmul %97, %100, %cst_111 {dimension_numbers = #tpu.dot_dimension_numbers<[1], [0], [0], [1], [0, 0, 1, 1], [], []>} : vector<8x128xf32>, vector<128x64xf32>, vector<8x64xf32> -> vector<8x64xf32>
    %102 = arith.maximumf %99, %101 : vector<8x64xf32>
    %c0_112 = arith.constant 0 : index
    %c0_113 = arith.constant 0 : index
    %103 = vector.load %arg12[%c0_112, %c0_113] : memref<4x8xf32, #tpu.memory_space<vmem>>, vector<4x8xf32>
    %cst_114 = arith.constant dense<0.000000e+00> : vector<4x64xf32>
    %104 = tpu.matmul %103, %102, %cst_114 {dimension_numbers = #tpu.dot_dimension_numbers<[1], [0], [0], [1], [0, 0, 1, 1], [], []>} : vector<4x8xf32>, vector<8x64xf32>, vector<4x64xf32> -> vector<4x64xf32>
    %c0_115 = arith.constant 0 : index
    %c0_116 = arith.constant 0 : index
    %105 = vector.load %arg13[%c0_115, %c0_116] : memref<4x8xf32, #tpu.memory_space<vmem>>, vector<4x8xf32>
    %cst_117 = arith.constant dense<0.000000e+00> : vector<4x64xf32>
    %106 = tpu.matmul %105, %102, %cst_117 {dimension_numbers = #tpu.dot_dimension_numbers<[1], [0], [0], [1], [0, 0, 1, 1], [], []>} : vector<4x8xf32>, vector<8x64xf32>, vector<4x64xf32> -> vector<4x64xf32>
    %107 = arith.maximumf %104, %106 : vector<4x64xf32>
    %c0_118 = arith.constant 0 : index
    %c0_119 = arith.constant 0 : index
    %108 = vector.load %arg15[%c0_118, %c0_119] : memref<1x10xf32, #tpu.memory_space<vmem>>, vector<1x10xf32>
    %109 = vector.extract_strided_slice %107 {offsets = [0, 0], sizes = [1, 64], strides = [1, 1]} : vector<4x64xf32> to vector<1x64xf32>
    %c0_120 = arith.constant 0 : index
    %c0_121 = arith.constant 0 : index
    %110 = vector.load %arg14[%c0_120, %c0_121] : memref<256x10xf32, #tpu.memory_space<vmem>>, vector<64x10xf32>
    %cst_122 = arith.constant dense<0.000000e+00> : vector<1x10xf32>
    %111 = tpu.matmul %109, %110, %cst_122 {dimension_numbers = #tpu.dot_dimension_numbers<[1], [0], [0], [1], [0, 0, 1, 1], [], []>} : vector<1x64xf32>, vector<64x10xf32>, vector<1x10xf32> -> vector<1x10xf32>
    %112 = arith.addf %108, %111 : vector<1x10xf32>
    %113 = vector.extract_strided_slice %107 {offsets = [1, 0], sizes = [1, 64], strides = [1, 1]} : vector<4x64xf32> to vector<1x64xf32>
    %c64_123 = arith.constant 64 : index
    %c0_124 = arith.constant 0 : index
    %114 = vector.load %arg14[%c64_123, %c0_124] : memref<256x10xf32, #tpu.memory_space<vmem>>, vector<64x10xf32>
    %cst_125 = arith.constant dense<0.000000e+00> : vector<1x10xf32>
    %115 = tpu.matmul %113, %114, %cst_125 {dimension_numbers = #tpu.dot_dimension_numbers<[1], [0], [0], [1], [0, 0, 1, 1], [], []>} : vector<1x64xf32>, vector<64x10xf32>, vector<1x10xf32> -> vector<1x10xf32>
    %116 = arith.addf %112, %115 : vector<1x10xf32>
    %117 = vector.extract_strided_slice %107 {offsets = [2, 0], sizes = [1, 64], strides = [1, 1]} : vector<4x64xf32> to vector<1x64xf32>
    %c128_126 = arith.constant 128 : index
    %c0_127 = arith.constant 0 : index
    %118 = vector.load %arg14[%c128_126, %c0_127] : memref<256x10xf32, #tpu.memory_space<vmem>>, vector<64x10xf32>
    %cst_128 = arith.constant dense<0.000000e+00> : vector<1x10xf32>
    %119 = tpu.matmul %117, %118, %cst_128 {dimension_numbers = #tpu.dot_dimension_numbers<[1], [0], [0], [1], [0, 0, 1, 1], [], []>} : vector<1x64xf32>, vector<64x10xf32>, vector<1x10xf32> -> vector<1x10xf32>
    %120 = arith.addf %116, %119 : vector<1x10xf32>
    %121 = vector.extract_strided_slice %107 {offsets = [3, 0], sizes = [1, 64], strides = [1, 1]} : vector<4x64xf32> to vector<1x64xf32>
    %c192_129 = arith.constant 192 : index
    %c0_130 = arith.constant 0 : index
    %122 = vector.load %arg14[%c192_129, %c0_130] : memref<256x10xf32, #tpu.memory_space<vmem>>, vector<64x10xf32>
    %cst_131 = arith.constant dense<0.000000e+00> : vector<1x10xf32>
    %123 = tpu.matmul %121, %122, %cst_131 {dimension_numbers = #tpu.dot_dimension_numbers<[1], [0], [0], [1], [0, 0, 1, 1], [], []>} : vector<1x64xf32>, vector<64x10xf32>, vector<1x10xf32> -> vector<1x10xf32>
    %124 = arith.addf %120, %123 : vector<1x10xf32>
    %c0_132 = arith.constant 0 : index
    %c0_133 = arith.constant 0 : index
    %c0_134 = arith.constant 0 : index
    %125 = vector.load %arg16[%c0_132, %c0_133, %c0_134] : memref<1x1x10xf32, #tpu.memory_space<vmem>>, vector<1x1x10xf32>
    %126 = vector.shape_cast %125 : vector<1x1x10xf32> to vector<1x10xf32>
    %127 = vector.shape_cast %124 : vector<1x10xf32> to vector<1x1x10xf32>
    tpu.vector_store %arg16[%c0_132, %c0_133, %c0_134], %127 {strides = array<i32>} : memref<1x1x10xf32, #tpu.memory_space<vmem>>, vector<1x1x10xf32>,
    return
  }
  func.func @transform_0(%arg0: i32) -> (i32, i32, i32) {
    %c0_i32 = arith.constant 0 : i32
    %c0_i32_0 = arith.constant 0 : i32
    %c0_i32_1 = arith.constant 0 : i32
    return %arg0, %c0_i32, %c0_i32_0 : i32, i32, i32
  }
  func.func @transform_1(%arg0: i32) -> (i32, i32) {
    %c0_i32 = arith.constant 0 : i32
    %c0_i32_0 = arith.constant 0 : i32
    %c0_i32_1 = arith.constant 0 : i32
    return %c0_i32, %c0_i32_0 : i32, i32
  }
  func.func @transform_2(%arg0: i32) -> (i32, i32) {
    %c0_i32 = arith.constant 0 : i32
    %c0_i32_0 = arith.constant 0 : i32
    %c0_i32_1 = arith.constant 0 : i32
    return %c0_i32, %c0_i32_0 : i32, i32
  }
  func.func @transform_3(%arg0: i32) -> (i32, i32) {
    %c0_i32 = arith.constant 0 : i32
    %c0_i32_0 = arith.constant 0 : i32
    %c0_i32_1 = arith.constant 0 : i32
    return %c0_i32, %c0_i32_0 : i32, i32
  }
  func.func @transform_4(%arg0: i32) -> (i32, i32) {
    %c0_i32 = arith.constant 0 : i32
    %c0_i32_0 = arith.constant 0 : i32
    %c0_i32_1 = arith.constant 0 : i32
    return %c0_i32, %c0_i32_0 : i32, i32
  }
  func.func @transform_5(%arg0: i32) -> (i32, i32) {
    %c0_i32 = arith.constant 0 : i32
    %c0_i32_0 = arith.constant 0 : i32
    %c0_i32_1 = arith.constant 0 : i32
    return %c0_i32, %c0_i32_0 : i32, i32
  }
  func.func @transform_6(%arg0: i32) -> (i32, i32) {
    %c0_i32 = arith.constant 0 : i32
    %c0_i32_0 = arith.constant 0 : i32
    %c0_i32_1 = arith.constant 0 : i32
    return %c0_i32, %c0_i32_0 : i32, i32
  }
  func.func @transform_7(%arg0: i32) -> (i32, i32) {
    %c0_i32 = arith.constant 0 : i32
    %c0_i32_0 = arith.constant 0 : i32
    %c0_i32_1 = arith.constant 0 : i32
    return %c0_i32, %c0_i32_0 : i32, i32
  }
  func.func @transform_8(%arg0: i32) -> (i32, i32) {
    %c0_i32 = arith.constant 0 : i32
    %c0_i32_0 = arith.constant 0 : i32
    %c0_i32_1 = arith.constant 0 : i32
    return %c0_i32, %c0_i32_0 : i32, i32
  }
  func.func @transform_9(%arg0: i32) -> (i32, i32) {
    %c0_i32 = arith.constant 0 : i32
    %c0_i32_0 = arith.constant 0 : i32
    %c0_i32_1 = arith.constant 0 : i32
    return %c0_i32, %c0_i32_0 : i32, i32
  }
  func.func @transform_10(%arg0: i32) -> (i32, i32) {
    %c0_i32 = arith.constant 0 : i32
    %c0_i32_0 = arith.constant 0 : i32
    %c0_i32_1 = arith.constant 0 : i32
    return %c0_i32, %c0_i32_0 : i32, i32
  }
  func.func @transform_11(%arg0: i32) -> (i32, i32) {
    %c0_i32 = arith.constant 0 : i32
    %c0_i32_0 = arith.constant 0 : i32
    %c0_i32_1 = arith.constant 0 : i32
    return %c0_i32, %c0_i32_0 : i32, i32
  }
  func.func @transform_12(%arg0: i32) -> (i32, i32) {
    %c0_i32 = arith.constant 0 : i32
    %c0_i32_0 = arith.constant 0 : i32
    %c0_i32_1 = arith.constant 0 : i32
    return %c0_i32, %c0_i32_0 : i32, i32
  }
  func.func @transform_13(%arg0: i32) -> (i32, i32) {
    %c0_i32 = arith.constant 0 : i32
    %c0_i32_0 = arith.constant 0 : i32
    %c0_i32_1 = arith.constant 0 : i32
    return %c0_i32, %c0_i32_0 : i32, i32
  }
  func.func @transform_14(%arg0: i32) -> (i32, i32) {
    %c0_i32 = arith.constant 0 : i32
    %c0_i32_0 = arith.constant 0 : i32
    %c0_i32_1 = arith.constant 0 : i32
    return %c0_i32, %c0_i32_0 : i32, i32
  }
  func.func @transform_15(%arg0: i32) -> (i32, i32, i32) {
    %c0_i32 = arith.constant 0 : i32
    %c0_i32_0 = arith.constant 0 : i32
    %c0_i32_1 = arith.constant 0 : i32
    return %arg0, %c0_i32, %c0_i32_0 : i32, i32, i32
  }
}

</mosaic_0001>

<llo_original>
// kernel: forward.1
$region0: #{forward.1}
  #allocation0 [shape = 'u32[]', space=smem, size = 0x4, offset = 0x4, fixed_abs, tag = 'smem constant byte address 0x4 - core index']
  #allocation1 [shape = 'u32[144,128]{1,0:T(1,128)}', space=vmem, size = 0x12000, scoped, tag = 'internal scratch']
  #allocation2 [shape = 'f32[18,72]{1,0:T(8,128)}', space=vmem, size = 0x3000, scoped, tag = 'scratch operand']
  #allocation3 [shape = 'f32[10,80]{1,0:T(8,128)}', space=vmem, size = 0x2000, scoped, tag = 'scratch operand']
  %s0 = inlined_call_operand.vmem [shape: f32[2,16,64], index: 0, kind: input, shape index: {}]
  %s1 = inlined_call_operand.hbm [shape: f32[576,128], index: 1, kind: input, shape index: {}]
  %s2 = inlined_call_operand.vmem [shape: f32[1,128], index: 2, kind: input, shape index: {}, may-alias: {2,8}]
  %s3 = inlined_call_operand.vmem [shape: f32[128,64], index: 3, kind: input, shape index: {}]
  %s4 = inlined_call_operand.hbm [shape: f32[128,64], index: 4, kind: input, shape index: {}]
  %s5 = inlined_call_operand.vmem [shape: f32[8,16], index: 5, kind: input, shape index: {}]
  %s6 = inlined_call_operand.vmem [shape: f32[8,16], index: 6, kind: input, shape index: {}]
  %s7 = inlined_call_operand.hbm [shape: f32[576,128], index: 7, kind: input, shape index: {}]
  %s8 = inlined_call_operand.vmem [shape: f32[1,128], index: 8, kind: input, shape index: {}, may-alias: {2,8}]
  %s9 = inlined_call_operand.hbm [shape: f32[128,64], index: 9, kind: input, shape index: {}]
  %s10 = inlined_call_operand.hbm [shape: f32[128,64], index: 10, kind: input, shape index: {}]
  %s11 = inlined_call_operand.vmem [shape: f32[4,8], index: 11, kind: input, shape index: {}]
  %s12 = inlined_call_operand.vmem [shape: f32[4,8], index: 12, kind: input, shape index: {}]
  %s13 = inlined_call_operand.vmem [shape: f32[256,10], index: 13, kind: input, shape index: {}]
  %s14 = inlined_call_operand.vmem [shape: f32[1,10], index: 14, kind: input, shape index: {}]
  %s15 = inlined_call_operand.hbm [shape: f32[2,1,10], index: 15, kind: output, shape index: {}]
  %s16 = sld [smem:[#allocation0]]
  $region113: #{forward.1} parent=0
    _
  %s18 = ssub.s32 1, %s16
  %s19 = scalar_select 0, %s18, %s16
  $region1: #{forward.1} parent=0
    #allocation4 [shape = 'u8[294912]{0}', space=vmem, size = 0x48000, scoped, tag = 'input window, operand 1, single buffered']
    #allocation5 [shape = 's32[2]{0}', space=sflag, size = 0x8, scoped, tag = 'scoped memory for forward.1']
    #allocation6 [shape = 's32[2]{0}', space=sflag, size = 0x8, scoped, tag = 'scoped memory for forward.1']
    #allocation7 [shape = 'u8[65536]{0}', space=vmem, size = 0x10000, scoped, tag = 'input window, operand 4, single buffered']
    #allocation8 [shape = 's32[1]{0}', space=sflag, size = 0x4, scoped, tag = 'scoped memory for forward.1']
    #allocation9 [shape = 'u8[294912]{0}', space=vmem, size = 0x48000, scoped, tag = 'input window, operand 7, single buffered']
    #allocation10 [shape = 'u8[65536]{0}', space=vmem, size = 0x10000, scoped, tag = 'input window, operand 9, single buffered']
    #allocation11 [shape = 's32[1]{0}', space=sflag, size = 0x4, scoped, tag = 'scoped memory for forward.1']
    #allocation12 [shape = 'u8[65536]{0}', space=vmem, size = 0x10000, scoped, tag = 'input window, operand 10, single buffered']
    #allocation13 [shape = 'u8[1024]{0}', space=vmem, size = 0x400, scoped, tag = 'output window, operand 0']
    %20 = vsyncpa [#allocation5], 0
    %21 = vsyncpa [#allocation8], 0
    %22 = vsyncpa [#allocation11], 0
    %23 = vsyncpa [#allocation6], 0
    %s24 = scalar_lea.sflag [#allocation6], 1
    %25 = vsyncpa %s24, 0
    loop: start=0, step=1, limit=4
    $region2: #{forward.1} parent=1 // loop_pre_header
      _
    $region3: #{forward.1} parent=1 // loop_header
      %s27 = sphi 0, %s31
      %p28 = scmp.ge.s32.totalorder %s27, 4
      %s37 = sphi 0, %s39
      %s40 = sphi 0, %s37
      %s41 = sphi 0, %s40
      %s57 = sphi 0, %s41
      %s61 = sphi 0, %s61
      %s63 = sphi 0, %s61
      %s64 = sphi 0, %s63
      %s78 = sphi 0, %s64
      %s82 = sphi 0, %s82
      %s84 = sphi 0, %s82
      %s85 = sphi 0, %s84
      %s99 = sphi 0, %s85
      %s103 = sphi 0, %s103
      %s105 = sphi 0, %s103
      %s106 = sphi 0, %s105
      %s120 = sphi 0, %s106
      %s124 = sphi 0, %s124
      %s126 = sphi 0, %s124
      %s127 = sphi 0, %s126
      %s141 = sphi 0, %s127
      %s145 = sphi 0, %s145
      %s147 = sphi 0, %s145
      %s148 = sphi 0, %s147
      %s162 = sphi 0, %s148
      %s166 = sphi 0, %s166
      %s168 = sphi 0, %s166
      %s169 = sphi 0, %s168
      %s183 = sphi 0, %s169
      %s187 = sphi 0, %s187
      %s189 = sphi 0, %s187
      %s190 = sphi 0, %s189
      %s204 = sphi 0, %s190
      %s208 = sphi 0, %s208
      %s210 = sphi 0, %s208
      %s211 = sphi 0, %s210
      %s225 = sphi 0, %s211
      %s229 = sphi 0, %s229
      %s231 = sphi 0, %s229
      %s232 = sphi 0, %s231
      %s246 = sphi 0, %s232
      %s250 = sphi 0, %s250
      %s252 = sphi 0, %s250
      %s253 = sphi 0, %s252
      %s267 = sphi 0, %s253
      %s271 = sphi 0, %s271
      %s273 = sphi 0, %s271
      %s274 = sphi 0, %s273
      %s288 = sphi 0, %s274
      %s292 = sphi 0, %s292
      %s294 = sphi 0, %s292
      %s295 = sphi 0, %s294
      %s309 = sphi 0, %s295
      %s313 = sphi 0, %s313
      %s315 = sphi 0, %s313
      %s316 = sphi 0, %s315
      %s330 = sphi 0, %s316
      %s334 = sphi 0, %s334
      %s336 = sphi 0, %s334
      %s337 = sphi 0, %s336
      %s351 = sphi 0, %s337
      %s357 = sphi 0, %s359
      %s360 = sphi 0, %s357
      %s361 = sphi 0, %s360
      %s377 = sphi 0, %s361
    $region4: #{forward.1} parent=1 // loop_header_branch
      %30 = sbr.rel (%p28) target = $region8
    $region5: #{forward.1} parent=1 // loop_body
      %s32 = ssub.s32 %s27, 1
      %s33 = ssub.s32 %s27, 2
      %s34 = sadd.s32 %s27, 1
      %s35 = ssub.s32 %s27, %s34
      %p36 = scmp.eq.s32.totalorder %s35, 0
      %s38 = sadd.s32 %s37, 1
      %s39 = scalar_select %p36, %s37, %s38
      %p42 = pneg %p36
      %p43 = scmp.eq.s32.totalorder %s27, 1
      %p44 = por %p42, %p43
      %p45 = scmp.ne.s32.totalorder %s37, %s40
      %p46 = scmp.eq.s32.totalorder %s27, 0
      %p47 = por %p45, %p46
      %p48 = scmp.ne.s32.totalorder %s37, %s40
      %p49 = scmp.eq.s32.totalorder %s32, 1
      %p50 = por %p48, %p49
      %p51 = scmp.ne.s32.totalorder %s40, %s41
      %p52 = scmp.eq.s32.totalorder %s32, 0
      %p53 = por %p51, %p52
      %p54 = scmp.ne.s32.totalorder %s40, %s41
      %p55 = scmp.eq.s32.totalorder %s33, 1
      %p56 = por %p54, %p55
      %p58 = scmp.ne.s32.totalorder %s41, %s57
      %p59 = scmp.eq.s32.totalorder %s33, 0
      %p60 = por %p58, %p59
      %s62 = sadd.s32 %s61, 1
      %p65 = scmp.eq.s32.totalorder %s27, 1
      %p66 = scmp.ne.s32.totalorder %s61, %s63
      %p67 = scmp.eq.s32.totalorder %s27, 0
      %p68 = por %p66, %p67
      %p69 = scmp.ne.s32.totalorder %s61, %s63
      %p70 = scmp.eq.s32.totalorder %s32, 1
      %p71 = por %p69, %p70
      %p72 = scmp.ne.s32.totalorder %s63, %s64
      %p73 = scmp.eq.s32.totalorder %s32, 0
      %p74 = por %p72, %p73
      %p75 = scmp.ne.s32.totalorder %s63, %s64
      %p76 = scmp.eq.s32.totalorder %s33, 1
      %p77 = por %p75, %p76
      %p79 = scmp.ne.s32.totalorder %s64, %s78
      %p80 = scmp.eq.s32.totalorder %s33, 0
      %p81 = por %p79, %p80
      %s83 = sadd.s32 %s82, 1
      %p86 = scmp.eq.s32.totalorder %s27, 1
      %p87 = scmp.ne.s32.totalorder %s82, %s84
      %p88 = scmp.eq.s32.totalorder %s27, 0
      %p89 = por %p87, %p88
      %p90 = scmp.ne.s32.totalorder %s82, %s84
      %p91 = scmp.eq.s32.totalorder %s32, 1
      %p92 = por %p90, %p91
      %p93 = scmp.ne.s32.totalorder %s84, %s85
      %p94 = scmp.eq.s32.totalorder %s32, 0
      %p95 = por %p93, %p94
      %p96 = scmp.ne.s32.totalorder %s84, %s85
      %p97 = scmp.eq.s32.totalorder %s33, 1
      %p98 = por %p96, %p97
      %p100 = scmp.ne.s32.totalorder %s85, %s99
      %p101 = scmp.eq.s32.totalorder %s33, 0
      %p102 = por %p100, %p101
      %s104 = sadd.s32 %s103, 1
      %p107 = scmp.eq.s32.totalorder %s27, 1
      %p108 = scmp.ne.s32.totalorder %s103, %s105
      %p109 = scmp.eq.s32.totalorder %s27, 0
      %p110 = por %p108, %p109
      %p111 = scmp.ne.s32.totalorder %s103, %s105
      %p112 = scmp.eq.s32.totalorder %s32, 1
      %p113 = por %p111, %p112
      %p114 = scmp.ne.s32.totalorder %s105, %s106
      %p115 = scmp.eq.s32.totalorder %s32, 0
      %p116 = por %p114, %p115
      %p117 = scmp.ne.s32.totalorder %s105, %s106
      %p118 = scmp.eq.s32.totalorder %s33, 1
      %p119 = por %p117, %p118
      %p121 = scmp.ne.s32.totalorder %s106, %s120
      %p122 = scmp.eq.s32.totalorder %s33, 0
      %p123 = por %p121, %p122
      %s125 = sadd.s32 %s124, 1
      %p128 = scmp.eq.s32.totalorder %s27, 1
      %p129 = scmp.ne.s32.totalorder %s124, %s126
      %p130 = scmp.eq.s32.totalorder %s27, 0
      %p131 = por %p129, %p130
      %p132 = scmp.ne.s32.totalorder %s124, %s126
      %p133 = scmp.eq.s32.totalorder %s32, 1
      %p134 = por %p132, %p133
      %p135 = scmp.ne.s32.totalorder %s126, %s127
      %p136 = scmp.eq.s32.totalorder %s32, 0
      %p137 = por %p135, %p136
      %p138 = scmp.ne.s32.totalorder %s126, %s127
      %p139 = scmp.eq.s32.totalorder %s33, 1
      %p140 = por %p138, %p139
      %p142 = scmp.ne.s32.totalorder %s127, %s141
      %p143 = scmp.eq.s32.totalorder %s33, 0
      %p144 = por %p142, %p143
      %s146 = sadd.s32 %s145, 1
      %p149 = scmp.eq.s32.totalorder %s27, 1
      %p150 = scmp.ne.s32.totalorder %s145, %s147
      %p151 = scmp.eq.s32.totalorder %s27, 0
      %p152 = por %p150, %p151
      %p153 = scmp.ne.s32.totalorder %s145, %s147
      %p154 = scmp.eq.s32.totalorder %s32, 1
      %p155 = por %p153, %p154
      %p156 = scmp.ne.s32.totalorder %s147, %s148
      %p157 = scmp.eq.s32.totalorder %s32, 0
      %p158 = por %p156, %p157
      %p159 = scmp.ne.s32.totalorder %s147, %s148
      %p160 = scmp.eq.s32.totalorder %s33, 1
      %p161 = por %p159, %p160
      %p163 = scmp.ne.s32.totalorder %s148, %s162
      %p164 = scmp.eq.s32.totalorder %s33, 0
      %p165 = por %p163, %p164
      %s167 = sadd.s32 %s166, 1
      %p170 = scmp.eq.s32.totalorder %s27, 1
      %p171 = scmp.ne.s32.totalorder %s166, %s168
      %p172 = scmp.eq.s32.totalorder %s27, 0
      %p173 = por %p171, %p172
      %p174 = scmp.ne.s32.totalorder %s166, %s168
      %p175 = scmp.eq.s32.totalorder %s32, 1
      %p176 = por %p174, %p175
      %p177 = scmp.ne.s32.totalorder %s168, %s169
      %p178 = scmp.eq.s32.totalorder %s32, 0
      %p179 = por %p177, %p178
      %p180 = scmp.ne.s32.totalorder %s168, %s169
      %p181 = scmp.eq.s32.totalorder %s33, 1
      %p182 = por %p180, %p181
      %p184 = scmp.ne.s32.totalorder %s169, %s183
      %p185 = scmp.eq.s32.totalorder %s33, 0
      %p186 = por %p184, %p185
      %s188 = sadd.s32 %s187, 1
      %p191 = scmp.eq.s32.totalorder %s27, 1
      %p192 = scmp.ne.s32.totalorder %s187, %s189
      %p193 = scmp.eq.s32.totalorder %s27, 0
      %p194 = por %p192, %p193
      %p195 = scmp.ne.s32.totalorder %s187, %s189
      %p196 = scmp.eq.s32.totalorder %s32, 1
      %p197 = por %p195, %p196
      %p198 = scmp.ne.s32.totalorder %s189, %s190
      %p199 = scmp.eq.s32.totalorder %s32, 0
      %p200 = por %p198, %p199
      %p201 = scmp.ne.s32.totalorder %s189, %s190
      %p202 = scmp.eq.s32.totalorder %s33, 1
      %p203 = por %p201, %p202
      %p205 = scmp.ne.s32.totalorder %s190, %s204
      %p206 = scmp.eq.s32.totalorder %s33, 0
      %p207 = por %p205, %p206
      %s209 = sadd.s32 %s208, 1
      %p212 = scmp.eq.s32.totalorder %s27, 1
      %p213 = scmp.ne.s32.totalorder %s208, %s210
      %p214 = scmp.eq.s32.totalorder %s27, 0
      %p215 = por %p213, %p214
      %p216 = scmp.ne.s32.totalorder %s208, %s210
      %p217 = scmp.eq.s32.totalorder %s32, 1
      %p218 = por %p216, %p217
      %p219 = scmp.ne.s32.totalorder %s210, %s211
      %p220 = scmp.eq.s32.totalorder %s32, 0
      %p221 = por %p219, %p220
      %p222 = scmp.ne.s32.totalorder %s210, %s211
      %p223 = scmp.eq.s32.totalorder %s33, 1
      %p224 = por %p222, %p223
      %p226 = scmp.ne.s32.totalorder %s211, %s225
      %p227 = scmp.eq.s32.totalorder %s33, 0
      %p228 = por %p226, %p227
      %s230 = sadd.s32 %s229, 1
      %p233 = scmp.eq.s32.totalorder %s27, 1
      %p234 = scmp.ne.s32.totalorder %s229, %s231
      %p235 = scmp.eq.s32.totalorder %s27, 0
      %p236 = por %p234, %p235
      %p237 = scmp.ne.s32.totalorder %s229, %s231
      %p238 = scmp.eq.s32.totalorder %s32, 1
      %p239 = por %p237, %p238
      %p240 = scmp.ne.s32.totalorder %s231, %s232
      %p241 = scmp.eq.s32.totalorder %s32, 0
      %p242 = por %p240, %p241
      %p243 = scmp.ne.s32.totalorder %s231, %s232
      %p244 = scmp.eq.s32.totalorder %s33, 1
      %p245 = por %p243, %p244
      %p247 = scmp.ne.s32.totalorder %s232, %s246
      %p248 = scmp.eq.s32.totalorder %s33, 0
      %p249 = por %p247, %p248
      %s251 = sadd.s32 %s250, 1
      %p254 = scmp.eq.s32.totalorder %s27, 1
      %p255 = scmp.ne.s32.totalorder %s250, %s252
      %p256 = scmp.eq.s32.totalorder %s27, 0
      %p257 = por %p255, %p256
      %p258 = scmp.ne.s32.totalorder %s250, %s252
      %p259 = scmp.eq.s32.totalorder %s32, 1
      %p260 = por %p258, %p259
      %p261 = scmp.ne.s32.totalorder %s252, %s253
      %p262 = scmp.eq.s32.totalorder %s32, 0
      %p263 = por %p261, %p262
      %p264 = scmp.ne.s32.totalorder %s252, %s253
      %p265 = scmp.eq.s32.totalorder %s33, 1
      %p266 = por %p264, %p265
      %p268 = scmp.ne.s32.totalorder %s253, %s267
      %p269 = scmp.eq.s32.totalorder %s33, 0
      %p270 = por %p268, %p269
      %s272 = sadd.s32 %s271, 1
      %p275 = scmp.eq.s32.totalorder %s27, 1
      %p276 = scmp.ne.s32.totalorder %s271, %s273
      %p277 = scmp.eq.s32.totalorder %s27, 0
      %p278 = por %p276, %p277
      %p279 = scmp.ne.s32.totalorder %s271, %s273
      %p280 = scmp.eq.s32.totalorder %s32, 1
      %p281 = por %p279, %p280
      %p282 = scmp.ne.s32.totalorder %s273, %s274
      %p283 = scmp.eq.s32.totalorder %s32, 0
      %p284 = por %p282, %p283
      %p285 = scmp.ne.s32.totalorder %s273, %s274
      %p286 = scmp.eq.s32.totalorder %s33, 1
      %p287 = por %p285, %p286
      %p289 = scmp.ne.s32.totalorder %s274, %s288
      %p290 = scmp.eq.s32.totalorder %s33, 0
      %p291 = por %p289, %p290
      %s293 = sadd.s32 %s292, 1
      %p296 = scmp.eq.s32.totalorder %s27, 1
      %p297 = scmp.ne.s32.totalorder %s292, %s294
      %p298 = scmp.eq.s32.totalorder %s27, 0
      %p299 = por %p297, %p298
      %p300 = scmp.ne.s32.totalorder %s292, %s294
      %p301 = scmp.eq.s32.totalorder %s32, 1
      %p302 = por %p300, %p301
      %p303 = scmp.ne.s32.totalorder %s294, %s295
      %p304 = scmp.eq.s32.totalorder %s32, 0
      %p305 = por %p303, %p304
      %p306 = scmp.ne.s32.totalorder %s294, %s295
      %p307 = scmp.eq.s32.totalorder %s33, 1
      %p308 = por %p306, %p307
      %p310 = scmp.ne.s32.totalorder %s295, %s309
      %p311 = scmp.eq.s32.totalorder %s33, 0
      %p312 = por %p310, %p311
      %s314 = sadd.s32 %s313, 1
      %p317 = scmp.eq.s32.totalorder %s27, 1
      %p318 = scmp.ne.s32.totalorder %s313, %s315
      %p319 = scmp.eq.s32.totalorder %s27, 0
      %p320 = por %p318, %p319
      %p321 = scmp.ne.s32.totalorder %s313, %s315
      %p322 = scmp.eq.s32.totalorder %s32, 1
      %p323 = por %p321, %p322
      %p324 = scmp.ne.s32.totalorder %s315, %s316
      %p325 = scmp.eq.s32.totalorder %s32, 0
      %p326 = por %p324, %p325
      %p327 = scmp.ne.s32.totalorder %s315, %s316
      %p328 = scmp.eq.s32.totalorder %s33, 1
      %p329 = por %p327, %p328
      %p331 = scmp.ne.s32.totalorder %s316, %s330
      %p332 = scmp.eq.s32.totalorder %s33, 0
      %p333 = por %p331, %p332
      %s335 = sadd.s32 %s334, 1
      %p338 = scmp.eq.s32.totalorder %s27, 1
      %p339 = scmp.ne.s32.totalorder %s334, %s336
      %p340 = scmp.eq.s32.totalorder %s27, 0
      %p341 = por %p339, %p340
      %p342 = scmp.ne.s32.totalorder %s334, %s336
      %p343 = scmp.eq.s32.totalorder %s32, 1
      %p344 = por %p342, %p343
      %p345 = scmp.ne.s32.totalorder %s336, %s337
      %p346 = scmp.eq.s32.totalorder %s32, 0
      %p347 = por %p345, %p346
      %p348 = scmp.ne.s32.totalorder %s336, %s337
      %p349 = scmp.eq.s32.totalorder %s33, 1
      %p350 = por %p348, %p349
      %p352 = scmp.ne.s32.totalorder %s337, %s351
      %p353 = scmp.eq.s32.totalorder %s33, 0
      %p354 = por %p352, %p353
      %s355 = ssub.s32 %s27, %s34
      %p356 = scmp.eq.s32.totalorder %s355, 0
      %s358 = sadd.s32 %s357, 1
      %s359 = scalar_select %p356, %s357, %s358
      %p362 = pneg %p356
      %p363 = scmp.eq.s32.totalorder %s27, 1
      %p364 = por %p362, %p363
      %p365 = scmp.ne.s32.totalorder %s357, %s360
      %p366 = scmp.eq.s32.totalorder %s27, 0
      %p367 = por %p365, %p366
      %p368 = scmp.ne.s32.totalorder %s357, %s360
      %p369 = scmp.eq.s32.totalorder %s32, 1
      %p370 = por %p368, %p369
      %p371 = scmp.ne.s32.totalorder %s360, %s361
      %p372 = scmp.eq.s32.totalorder %s32, 0
      %p373 = por %p371, %p372
      %p374 = scmp.ne.s32.totalorder %s360, %s361
      %p375 = scmp.eq.s32.totalorder %s33, 1
      %p376 = por %p374, %p375
      %p378 = scmp.ne.s32.totalorder %s361, %s377
      %p379 = scmp.eq.s32.totalorder %s33, 0
      %p380 = por %p378, %p379
      %p381 = scmp.le.s32.totalorder 1, %s27
      %p382 = scmp.lt.s32.totalorder %s27, 3
      %p383 = pnand %p381, %p382
      %p384 = pneg %p383
      // Predicated region
      $region9: #{forward.1} parent=5 // pred_check
        _
      $region10: #{forward.1} parent=5 // pred_check_branch
        %386 = sbr.rel (%p383) target = $region12
      $region11: #{forward.1} parent=5 // pred_region
        %s387 = ssub.s32 %s27, 1
        // Predicated region
        $region13: #{forward.1} parent=11 // pred_check
          %p388 = pneg %p74
        $region14: #{forward.1} parent=11 // pred_check_branch
          %390 = sbr.rel (%p388) target = $region16
        $region15: #{forward.1} parent=11 // pred_region
          %s392 = ssub.s32 9216, 9216
          %393 = vsyncadd [#allocation5], %s392
          %s394 = sshll.u32 [#allocation4], 4
          %s395 = int_to_ptr.vmem [resolvable:$true] %s394
          %400 = dma.hbm_to_vmem [thread:$0]  %s1, 9216, %s395, [#allocation5], 128, 128, 8
        $region16: #{forward.1} parent=11 // pred_fallthru
          _
        // Predicated region
        $region17: #{forward.1} parent=11 // pred_check
          %p401 = pneg %p95
        $region18: #{forward.1} parent=11 // pred_check_branch
          %403 = sbr.rel (%p401) target = $region20
        $region19: #{forward.1} parent=11 // pred_region
          _
        $region20: #{forward.1} parent=11 // pred_fallthru
          _
        // Predicated region
        $region21: #{forward.1} parent=11 // pred_check
          %p404 = pneg %p116
        $region22: #{forward.1} parent=11 // pred_check_branch
          %406 = sbr.rel (%p404) target = $region24
        $region23: #{forward.1} parent=11 // pred_region
          _
        $region24: #{forward.1} parent=11 // pred_fallthru
          _
        // Predicated region
        $region25: #{forward.1} parent=11 // pred_check
          %p407 = pneg %p137
        $region26: #{forward.1} parent=11 // pred_check_branch
          %409 = sbr.rel (%p407) target = $region28
        $region27: #{forward.1} parent=11 // pred_region
          %s411 = ssub.s32 2048, 2048
          %412 = vsyncadd [#allocation8], %s411
          %s413 = sshll.u32 [#allocation7], 4
          %s414 = int_to_ptr.vmem [resolvable:$true] %s413
          %419 = dma.hbm_to_vmem [thread:$0]  %s4, 2048, %s414, [#allocation8], 128, 128, 8
        $region28: #{forward.1} parent=11 // pred_fallthru
          _
        // Predicated region
        $region29: #{forward.1} parent=11 // pred_check
          %p420 = pneg %p158
        $region30: #{forward.1} parent=11 // pred_check_branch
          %422 = sbr.rel (%p420) target = $region32
        $region31: #{forward.1} parent=11 // pred_region
          _
        $region32: #{forward.1} parent=11 // pred_fallthru
          _
        // Predicated region
        $region33: #{forward.1} parent=11 // pred_check
          %p423 = pneg %p179
        $region34: #{forward.1} parent=11 // pred_check_branch
          %425 = sbr.rel (%p423) target = $region36
        $region35: #{forward.1} parent=11 // pred_region
          _
        $region36: #{forward.1} parent=11 // pred_fallthru
          _
        // Predicated region
        $region37: #{forward.1} parent=11 // pred_check
          %p426 = pneg %p200
        $region38: #{forward.1} parent=11 // pred_check_branch
          %428 = sbr.rel (%p426) target = $region40
        $region39: #{forward.1} parent=11 // pred_region
          %s430 = ssub.s32 9216, 9216
          %431 = vsyncadd [#allocation8], %s430
          %s432 = sshll.u32 [#allocation9], 4
          %s433 = int_to_ptr.vmem [resolvable:$true] %s432
          %438 = dma.hbm_to_vmem [thread:$0]  %s7, 9216, %s433, [#allocation8], 128, 128, 8
        $region40: #{forward.1} parent=11 // pred_fallthru
          _
        // Predicated region
        $region41: #{forward.1} parent=11 // pred_check
          %p439 = pneg %p221
        $region42: #{forward.1} parent=11 // pred_check_branch
          %441 = sbr.rel (%p439) target = $region44
        $region43: #{forward.1} parent=11 // pred_region
          _
        $region44: #{forward.1} parent=11 // pred_fallthru
          _
        // Predicated region
        $region45: #{forward.1} parent=11 // pred_check
          %p442 = pneg %p242
        $region46: #{forward.1} parent=11 // pred_check_branch
          %444 = sbr.rel (%p442) target = $region48
        $region47: #{forward.1} parent=11 // pred_region
          %s446 = ssub.s32 2048, 2048
          %447 = vsyncadd [#allocation11], %s446
          %s448 = sshll.u32 [#allocation10], 4
          %s449 = int_to_ptr.vmem [resolvable:$true] %s448
          %454 = dma.hbm_to_vmem [thread:$0]  %s9, 2048, %s449, [#allocation11], 128, 128, 8
        $region48: #{forward.1} parent=11 // pred_fallthru
          _
        // Predicated region
        $region49: #{forward.1} parent=11 // pred_check
          %p455 = pneg %p263
        $region50: #{forward.1} parent=11 // pred_check_branch
          %457 = sbr.rel (%p455) target = $region52
        $region51: #{forward.1} parent=11 // pred_region
          %s459 = ssub.s32 2048, 2048
          %460 = vsyncadd [#allocation11], %s459
          %s461 = sshll.u32 [#allocation12], 4
          %s462 = int_to_ptr.vmem [resolvable:$true] %s461
          %467 = dma.hbm_to_vmem [thread:$0]  %s10, 2048, %s462, [#allocation11], 128, 128, 8
        $region52: #{forward.1} parent=11 // pred_fallthru
          _
        // Predicated region
        $region53: #{forward.1} parent=11 // pred_check
          %p468 = pneg %p284
        $region54: #{forward.1} parent=11 // pred_check_branch
          %470 = sbr.rel (%p468) target = $region56
        $region55: #{forward.1} parent=11 // pred_region
          _
        $region56: #{forward.1} parent=11 // pred_fallthru
          _
        // Predicated region
        $region57: #{forward.1} parent=11 // pred_check
          %p471 = pneg %p305
        $region58: #{forward.1} parent=11 // pred_check_branch
          %473 = sbr.rel (%p471) target = $region60
        $region59: #{forward.1} parent=11 // pred_region
          _
        $region60: #{forward.1} parent=11 // pred_fallthru
          _
        // Predicated region
        $region61: #{forward.1} parent=11 // pred_check
          %p474 = pneg %p326
        $region62: #{forward.1} parent=11 // pred_check_branch
          %476 = sbr.rel (%p474) target = $region64
        $region63: #{forward.1} parent=11 // pred_region
          _
        $region64: #{forward.1} parent=11 // pred_fallthru
          _
        // Predicated region
        $region65: #{forward.1} parent=11 // pred_check
          %p477 = pneg %p347
        $region66: #{forward.1} parent=11 // pred_check_branch
          %479 = sbr.rel (%p477) target = $region68
        $region67: #{forward.1} parent=11 // pred_region
          _
        $region68: #{forward.1} parent=11 // pred_fallthru
          _
      $region12: #{forward.1} parent=5 // pred_fallthru
        _
      %p480 = scmp.lt.s32.totalorder %s27, 2
      // Predicated region
      $region69: #{forward.1} parent=5 // pred_check
        %p481 = pneg %p480
      $region70: #{forward.1} parent=5 // pred_check_branch
        %483 = sbr.rel (%p481) target = $region72
      $region71: #{forward.1} parent=5 // pred_region
        // Predicated region
        $region73: #{forward.1} parent=71 // pred_check
          %p484 = pneg %p47
        $region74: #{forward.1} parent=71 // pred_check_branch
          %486 = sbr.rel (%p484) target = $region76
        $region75: #{forward.1} parent=71 // pred_region
          %p487 = scmp.lt.s32.totalorder %s27, 1
          %s488 = scalar_select %p487, %s27, 1
          %s489 = smul.addr %s488, 2
          %s490 = smul.addr %s489, 8
          %s491 = scalar_lea.vmem %s0, %s490
        $region76: #{forward.1} parent=71 // pred_fallthru
          _
      $region72: #{forward.1} parent=5 // pred_fallthru
        _
      %p492 = scmp.le.s32.totalorder 1, %s27
      %p493 = scmp.lt.s32.totalorder %s27, 3
      %p494 = pnand %p492, %p493
      %p495 = pneg %p494
      // Predicated region
      $region77: #{forward.1} parent=5 // pred_check
        _
      $region78: #{forward.1} parent=5 // pred_check_branch
        %497 = sbr.rel (%p494) target = $region80
      $region79: #{forward.1} parent=5 // pred_region
        %s498 = ssub.s32 %s27, 1
        // Predicated region
        $region81: #{forward.1} parent=79 // pred_check
          %p499 = pneg %p74
        $region82: #{forward.1} parent=79 // pred_check_branch
          %501 = sbr.rel (%p499) target = $region84
        $region83: #{forward.1} parent=79 // pred_region
          %502 = dma.done [#allocation5], 9216
        $region84: #{forward.1} parent=79 // pred_fallthru
          _
        // Predicated region
        $region85: #{forward.1} parent=79 // pred_check
          %p503 = pneg %p137
        $region86: #{forward.1} parent=79 // pred_check_branch
          %505 = sbr.rel (%p503) target = $region88
        $region87: #{forward.1} parent=79 // pred_region
          %506 = dma.done [#allocation8], 2048
        $region88: #{forward.1} parent=79 // pred_fallthru
          _
        // Predicated region
        $region89: #{forward.1} parent=79 // pred_check
          %p507 = pneg %p200
        $region90: #{forward.1} parent=79 // pred_check_branch
          %509 = sbr.rel (%p507) target = $region92
        $region91: #{forward.1} parent=79 // pred_region
          %510 = dma.done [#allocation8], 9216
        $region92: #{forward.1} parent=79 // pred_fallthru
          _
        // Predicated region
        $region93: #{forward.1} parent=79 // pred_check
          %p511 = pneg %p242
        $region94: #{forward.1} parent=79 // pred_check_branch
          %513 = sbr.rel (%p511) target = $region96
        $region95: #{forward.1} parent=79 // pred_region
          %514 = dma.done [#allocation11], 2048
        $region96: #{forward.1} parent=79 // pred_fallthru
          _
        // Predicated region
        $region97: #{forward.1} parent=79 // pred_check
          %p515 = pneg %p263
        $region98: #{forward.1} parent=79 // pred_check_branch
          %517 = sbr.rel (%p515) target = $region100
        $region99: #{forward.1} parent=79 // pred_region
          %518 = dma.done [#allocation11], 2048
        $region100: #{forward.1} parent=79 // pred_fallthru
          _
        %p519 = scmp.lt.s32.totalorder %s32, 1
        %s520 = scalar_select %p519, %s32, 1
        %s521 = smul.addr %s520, 2
        %s522 = smul.addr %s521, 8
        %s523 = scalar_lea.vmem %s0, %s522
        %p524 = pneg %p53
        %p525 = pneg %p50
        %p526 = pneg %p74
        %p527 = pneg %p71
        %p528 = pneg %p95
        %p529 = pneg %p92
        %p530 = pneg %p116
        %p531 = pneg %p113
        %p532 = pneg %p137
        %p533 = pneg %p134
        %p534 = pneg %p158
        %p535 = pneg %p155
        %p536 = pneg %p179
        %p537 = pneg %p176
        %p538 = pneg %p200
        %p539 = pneg %p197
        %p540 = pneg %p221
        %p541 = pneg %p218
        %p542 = pneg %p242
        %p543 = pneg %p239
        %p544 = pneg %p263
        %p545 = pneg %p260
        %p546 = pneg %p284
        %p547 = pneg %p281
        %p548 = pneg %p305
        %p549 = pneg %p302
        %p550 = pneg %p326
        %p551 = pneg %p323
        %p552 = pneg %p347
        %p553 = pneg %p344
        %p554 = pneg %p373
        %p555 = pneg %p370
        %s556 = sand.u32 %s360, 1
        %s557 = scalar_lea.sflag [#allocation6], %s556
        %s558 = sand.u32 %s360, 1
        %s559 = scalar_lea.vmem [#allocation13], %s558
        %p560 = scmp.lt.s32.totalorder %s32, 1
        %s561 = scalar_select %p560, %s32, 1
        %s562 = smul.addr %s561, 2
        %s563 = smul.addr %s562, 8
        %s564 = scalar_lea.vmem %s0, %s563
        %v565 = vld [vmem:[%s564] sm:$0xff]
        %v566 = vld [vmem:[%s564 + $0x8] sm:$0xff]
        %vm567 = vcmask 588800
        %568 = vst.msk [vmem:[#allocation2] sm:$0xff] %vm567, 0.0
        %569 = vst.msk [vmem:[#allocation2 + $0x8] sm:$0xff] %vm567, 0.0
        %vm570 = vcmask 582656
        %571 = vst.msk [vmem:[#allocation2 + $0x10] sm:$0x3] %vm570, 0.0
        %574 = vrot.lane.b32.xlu0 %v565, 4
        %v575 = vpop.permute.xlu0 %574
        %576 = vrot.lane.b32.xlu0 %v566, 4
        %v577 = vpop.permute.xlu0 %576
        %vm580 = vcmask 556064
        %581 = vst.msk [vmem:[#allocation2 + $0x1] sm:$0xff] %vm580, %v575
        %582 = vst.msk [vmem:[#allocation2 + $0x9] sm:$0xff] %vm580, %v577
        %v583 = vld [vmem:[#allocation2] sm:$0xff]
        %v584 = vld [vmem:[#allocation2 + $0x8] sm:$0xff]
        %v585 = vld [vmem:[#allocation4] sm:$0xff]
        %v586 = vld [vmem:[#allocation4 + $0x8] sm:$0xff]
        %v587 = vld [vmem:[#allocation4 + $0x10] sm:$0xff]
        %v588 = vld [vmem:[#allocation4 + $0x18] sm:$0xff]
        %v589 = vld [vmem:[#allocation4 + $0x20] sm:$0xff]
        %v590 = vld [vmem:[#allocation4 + $0x28] sm:$0xff]
        %v591 = vld [vmem:[#allocation4 + $0x30] sm:$0xff]
        %v592 = vld [vmem:[#allocation4 + $0x38] sm:$0xff]
        %v593 = vld [vmem:[#allocation4 + $0x40] sm:$0xff]
        %v594 = vld [vmem:[#allocation4 + $0x48] sm:$0xff]
        %v595 = vld [vmem:[#allocation4 + $0x50] sm:$0xff]
        %v596 = vld [vmem:[#allocation4 + $0x58] sm:$0xff]
        %v597 = vld [vmem:[#allocation4 + $0x60] sm:$0xff]
        %v598 = vld [vmem:[#allocation4 + $0x68] sm:$0xff]
        %v599 = vld [vmem:[#allocation4 + $0x70] sm:$0xff]
        %v600 = vld [vmem:[#allocation4 + $0x78] sm:$0xff]
        %603 = vrot.lane.b32.xlu0 %v583, 124
        %v604 = vpop.permute.xlu0 %603
        %605 = vrot.lane.b32.xlu0 %v584, 124
        %v606 = vpop.permute.xlu0 %605
        %vm607 = vcmask 523264
        %v608 = vsel %vm607, %v604, 0
        %v610 = vsel %vm607, %v606, 0
        %612 = vmatprep.subr.mxu0 0.0
        %613 = vmatpush1.msra.mxu0 %v593
        %614 = vmatprep.subr.mxu0 0.0
        %615 = vmatpush1.msra.mxu0 %v594
        %616 = vmatprep.subr.mxu0 0.0
        %617 = vmatpush1.msra.mxu0 %v595
        %618 = vmatprep.subr.mxu0 0.0
        %619 = vmatpush1.msra.mxu0 %v596
        %620 = vmatprep.subr.mxu0 0.0
        %621 = vmatpush1.msra.mxu0 %v597
        %622 = vmatprep.subr.mxu0 0.0
        %623 = vmatpush1.msra.mxu0 %v598
        %624 = vmatprep.subr.mxu0 0.0
        %625 = vmatpush1.msra.mxu0 %v599
        %626 = vmatprep.subr.mxu0 0.0
        %627 = vmatpush1.msra.mxu0 %v600
        %628 = vmatprep.subr.mxu0 0.0
        %629 = vmatpush1.msra.mxu0 0.0
        %630 = vmatprep.subr.mxu0 0.0
        %631 = vmatpush1.msra.mxu0 0.0
        %632 = vmatprep.subr.mxu0 0.0
        %633 = vmatpush1.msra.mxu0 0.0
        %634 = vmatprep.subr.mxu0 0.0
        %635 = vmatpush1.msra.mxu0 0.0
        %636 = vmatprep.subr.mxu0 0.0
        %637 = vmatpush1.msra.mxu0 0.0
        %638 = vmatprep.subr.mxu0 0.0
        %639 = vmatpush1.msra.mxu0 0.0
        %640 = vmatprep.subr.mxu0 0.0
        %641 = vmatpush1.msra.mxu0 0.0
        %642 = vmatprep.subr.mxu0 0.0
        %643 = vmatpush1.msra.mxu0 0.0
        %644 = vmatprep.subr.mxu0 0.0
        %645 = vmatpush1.msra.mxu0 0.0
        %646 = vmatprep.subr.mxu0 0.0
        %647 = vmatpush1.msra.mxu0 0.0
        %648 = vmatprep.subr.mxu0 0.0
        %649 = vmatpush1.msra.mxu0 0.0
        %650 = vmatprep.subr.mxu0 0.0
        %651 = vmatpush1.msra.mxu0 0.0
        %652 = vmatprep.subr.mxu0 0.0
        %653 = vmatpush1.msra.mxu0 0.0
        %654 = vmatprep.subr.mxu0 0.0
        %655 = vmatpush1.msra.mxu0 0.0
        %656 = vmatprep.subr.mxu0 0.0
        %657 = vmatpush1.msra.mxu0 0.0
        %658 = vmatprep.subr.mxu0 0.0
        %659 = vmatpush1.msra.mxu0 0.0
        %660 = vmatprep.subr.mxu0 0.0
        %661 = vmatpush1.msra.mxu0 0.0
        %662 = vmatprep.subr.mxu0 0.0
        %663 = vmatpush1.msra.mxu0 0.0
        %664 = vmatprep.subr.mxu0 0.0
        %665 = vmatpush1.msra.mxu0 0.0
        %666 = vmatprep.subr.mxu0 0.0
        %667 = vmatpush1.msra.mxu0 0.0
        %668 = vmatprep.subr.mxu0 0.0
        %669 = vmatpush1.msra.mxu0 0.0
        %670 = vmatprep.subr.mxu0 0.0
        %671 = vmatpush1.msra.mxu0 0.0
        %672 = vmatprep.subr.mxu0 0.0
        %673 = vmatpush1.msra.mxu0 0.0
        %674 = vmatprep.subr.mxu0 0.0
        %675 = vmatpush1.msra.mxu0 0.0
        %676 = vmatprep.mubr.f32.mxu0 0.0
        %677 = vmatmul.mubr.f32.gmra.mrb[0].mxu0 %v608
        %v678 = vpop.f32.mrb[0].mxu0
        %v679 = vadd.f32 0.0, %v678
        %v680 = vpop.f32.mrb[0].mxu0
        %681 = vmatprep.mubr.f32.mxu0 0.0
        %682 = vmatmul.mubr.f32.gmra.mrb[0].mxu0 %v610
        %v683 = vpop.f32.mrb[0].mxu0
        %v684 = vadd.f32 0.0, %v683
        %v685 = vpop.f32.mrb[0].mxu0
        %686 = vdwg.mxu0
        %v687 = vsel %vm607, %v583, 0
        %v689 = vsel %vm607, %v584, 0
        %691 = vmatprep.subr.mxu0 0.0
        %692 = vmatpush1.msra.mxu0 %v585
        %693 = vmatprep.subr.mxu0 0.0
        %694 = vmatpush1.msra.mxu0 %v586
        %695 = vmatprep.subr.mxu0 0.0
        %696 = vmatpush1.msra.mxu0 %v587
        %697 = vmatprep.subr.mxu0 0.0
        %698 = vmatpush1.msra.mxu0 %v588
        %699 = vmatprep.subr.mxu0 0.0
        %700 = vmatpush1.msra.mxu0 %v589
        %701 = vmatprep.subr.mxu0 0.0
        %702 = vmatpush1.msra.mxu0 %v590
        %703 = vmatprep.subr.mxu0 0.0
        %704 = vmatpush1.msra.mxu0 %v591
        %705 = vmatprep.subr.mxu0 0.0
        %706 = vmatpush1.msra.mxu0 %v592
        %707 = vmatprep.subr.mxu0 0.0
        %708 = vmatpush1.msra.mxu0 0.0
        %709 = vmatprep.subr.mxu0 0.0
        %710 = vmatpush1.msra.mxu0 0.0
        %711 = vmatprep.subr.mxu0 0.0
        %712 = vmatpush1.msra.mxu0 0.0
        %713 = vmatprep.subr.mxu0 0.0
        %714 = vmatpush1.msra.mxu0 0.0
        %715 = vmatprep.subr.mxu0 0.0
        %716 = vmatpush1.msra.mxu0 0.0
        %717 = vmatprep.subr.mxu0 0.0
        %718 = vmatpush1.msra.mxu0 0.0
        %719 = vmatprep.subr.mxu0 0.0
        %720 = vmatpush1.msra.mxu0 0.0
        %721 = vmatprep.subr.mxu0 0.0
        %722 = vmatpush1.msra.mxu0 0.0
        %723 = vmatprep.subr.mxu0 0.0
        %724 = vmatpush1.msra.mxu0 0.0
        %725 = vmatprep.subr.mxu0 0.0
        %726 = vmatpush1.msra.mxu0 0.0
        %727 = vmatprep.subr.mxu0 0.0
        %728 = vmatpush1.msra.mxu0 0.0
        %729 = vmatprep.subr.mxu0 0.0
        %730 = vmatpush1.msra.mxu0 0.0
        %731 = vmatprep.subr.mxu0 0.0
        %732 = vmatpush1.msra.mxu0 0.0
        %733 = vmatprep.subr.mxu0 0.0
        %734 = vmatpush1.msra.mxu0 0.0
        %735 = vmatprep.subr.mxu0 0.0
        %736 = vmatpush1.msra.mxu0 0.0
        %737 = vmatprep.subr.mxu0 0.0
        %738 = vmatpush1.msra.mxu0 0.0
        %739 = vmatprep.subr.mxu0 0.0
        %740 = vmatpush1.msra.mxu0 0.0
        %741 = vmatprep.subr.mxu0 0.0
        %742 = vmatpush1.msra.mxu0 0.0
        %743 = vmatprep.subr.mxu0 0.0
        %744 = vmatpush1.msra.mxu0 0.0
        %745 = vmatprep.subr.mxu0 0.0
        %746 = vmatpush1.msra.mxu0 0.0
        %747 = vmatprep.subr.mxu0 0.0
        %748 = vmatpush1.msra.mxu0 0.0
        %749 = vmatprep.subr.mxu0 0.0
        %750 = vmatpush1.msra.mxu0 0.0
        %751 = vmatprep.subr.mxu0 0.0
        %752 = vmatpush1.msra.mxu0 0.0
        %753 = vmatprep.subr.mxu0 0.0
        %754 = vmatpush1.msra.mxu0 0.0
        %755 = vmatprep.mubr.f32.mxu0 0.0
        %756 = vmatmul.mubr.f32.gmra.mrb[0].mxu0 %v687
        %v757 = vpop.f32.mrb[0].mxu0
        %v758 = vadd.f32 %v679, %v757
        %v759 = vpop.f32.mrb[0].mxu0
        %760 = vmatprep.mubr.f32.mxu0 0.0
        %761 = vmatmul.mubr.f32.gmra.mrb[0].mxu0 %v689
        %v762 = vpop.f32.mrb[0].mxu0
        %v763 = vadd.f32 %v684, %v762
        %v764 = vpop.f32.mrb[0].mxu0
        %765 = vdwg.mxu0
        %v766 = vld [vmem:[#allocation4 + $0x80] sm:$0xff]
        %v767 = vld [vmem:[#allocation4 + $0x88] sm:$0xff]
        %v768 = vld [vmem:[#allocation4 + $0x90] sm:$0xff]
        %v769 = vld [vmem:[#allocation4 + $0x98] sm:$0xff]
        %v770 = vld [vmem:[#allocation4 + $0xa0] sm:$0xff]
        %v771 = vld [vmem:[#allocation4 + $0xa8] sm:$0xff]
        %v772 = vld [vmem:[#allocation4 + $0xb0] sm:$0xff]
        %v773 = vld [vmem:[#allocation4 + $0xb8] sm:$0xff]
        %774 = vrot.lane.b32.xlu0 %v583, 120
        %v775 = vpop.permute.xlu0 %774
        %776 = vrot.lane.b32.xlu0 %v584, 120
        %v777 = vpop.permute.xlu0 %776
        %v778 = vsel %vm607, %v775, 0
        %v780 = vsel %vm607, %v777, 0
        %782 = vmatprep.subr.mxu0 0.0
        %783 = vmatpush1.msra.mxu0 %v766
        %784 = vmatprep.subr.mxu0 0.0
        %785 = vmatpush1.msra.mxu0 %v767
        %786 = vmatprep.subr.mxu0 0.0
        %787 = vmatpush1.msra.mxu0 %v768
        %788 = vmatprep.subr.mxu0 0.0
        %789 = vmatpush1.msra.mxu0 %v769
        %790 = vmatprep.subr.mxu0 0.0
        %791 = vmatpush1.msra.mxu0 %v770
        %792 = vmatprep.subr.mxu0 0.0
        %793 = vmatpush1.msra.mxu0 %v771
        %794 = vmatprep.subr.mxu0 0.0
        %795 = vmatpush1.msra.mxu0 %v772
        %796 = vmatprep.subr.mxu0 0.0
        %797 = vmatpush1.msra.mxu0 %v773
        %798 = vmatprep.subr.mxu0 0.0
        %799 = vmatpush1.msra.mxu0 0.0
        %800 = vmatprep.subr.mxu0 0.0
        %801 = vmatpush1.msra.mxu0 0.0
        %802 = vmatprep.subr.mxu0 0.0
        %803 = vmatpush1.msra.mxu0 0.0
        %804 = vmatprep.subr.mxu0 0.0
        %805 = vmatpush1.msra.mxu0 0.0
        %806 = vmatprep.subr.mxu0 0.0
        %807 = vmatpush1.msra.mxu0 0.0
        %808 = vmatprep.subr.mxu0 0.0
        %809 = vmatpush1.msra.mxu0 0.0
        %810 = vmatprep.subr.mxu0 0.0
        %811 = vmatpush1.msra.mxu0 0.0
        %812 = vmatprep.subr.mxu0 0.0
        %813 = vmatpush1.msra.mxu0 0.0
        %814 = vmatprep.subr.mxu0 0.0
        %815 = vmatpush1.msra.mxu0 0.0
        %816 = vmatprep.subr.mxu0 0.0
        %817 = vmatpush1.msra.mxu0 0.0
        %818 = vmatprep.subr.mxu0 0.0
        %819 = vmatpush1.msra.mxu0 0.0
        %820 = vmatprep.subr.mxu0 0.0
        %821 = vmatpush1.msra.mxu0 0.0
        %822 = vmatprep.subr.mxu0 0.0
        %823 = vmatpush1.msra.mxu0 0.0
        %824 = vmatprep.subr.mxu0 0.0
        %825 = vmatpush1.msra.mxu0 0.0
        %826 = vmatprep.subr.mxu0 0.0
        %827 = vmatpush1.msra.mxu0 0.0
        %828 = vmatprep.subr.mxu0 0.0
        %829 = vmatpush1.msra.mxu0 0.0
        %830 = vmatprep.subr.mxu0 0.0
        %831 = vmatpush1.msra.mxu0 0.0
        %832 = vmatprep.subr.mxu0 0.0
        %833 = vmatpush1.msra.mxu0 0.0
        %834 = vmatprep.subr.mxu0 0.0
        %835 = vmatpush1.msra.mxu0 0.0
        %836 = vmatprep.subr.mxu0 0.0
        %837 = vmatpush1.msra.mxu0 0.0
        %838 = vmatprep.subr.mxu0 0.0
        %839 = vmatpush1.msra.mxu0 0.0
        %840 = vmatprep.subr.mxu0 0.0
        %841 = vmatpush1.msra.mxu0 0.0
        %842 = vmatprep.subr.mxu0 0.0
        %843 = vmatpush1.msra.mxu0 0.0
        %844 = vmatprep.subr.mxu0 0.0
        %845 = vmatpush1.msra.mxu0 0.0
        %846 = vmatprep.mubr.f32.mxu0 0.0
        %847 = vmatmul.mubr.f32.gmra.mrb[0].mxu0 %v778
        %v848 = vpop.f32.mrb[0].mxu0
        %v849 = vadd.f32 0.0, %v848
        %v850 = vpop.f32.mrb[0].mxu0
        %851 = vmatprep.mubr.f32.mxu0 0.0
        %852 = vmatmul.mubr.f32.gmra.mrb[0].mxu0 %v780
        %v853 = vpop.f32.mrb[0].mxu0
        %v854 = vadd.f32 0.0, %v853
        %v855 = vpop.f32.mrb[0].mxu0
        %856 = vdwg.mxu0
        %v857 = vadd.f32 %v758, %v849
        %v858 = vadd.f32 %v763, %v854
        %v859 = vld [vmem:[#allocation2 + $0x1] sm:$0xff]
        %v860 = vld [vmem:[#allocation2 + $0x9] sm:$0xff]
        %v861 = vld [vmem:[#allocation4 + $0xc0] sm:$0xff]
        %v862 = vld [vmem:[#allocation4 + $0xc8] sm:$0xff]
        %v863 = vld [vmem:[#allocation4 + $0xd0] sm:$0xff]
        %v864 = vld [vmem:[#allocation4 + $0xd8] sm:$0xff]
        %v865 = vld [vmem:[#allocation4 + $0xe0] sm:$0xff]
        %v866 = vld [vmem:[#allocation4 + $0xe8] sm:$0xff]
        %v867 = vld [vmem:[#allocation4 + $0xf0] sm:$0xff]
        %v868 = vld [vmem:[#allocation4 + $0xf8] sm:$0xff]
        %v870 = vsel %vm607, %v859, 0
        %v873 = vsel %vm607, %v860, 0
        %875 = vmatprep.subr.mxu0 0.0
        %876 = vmatpush1.msra.mxu0 %v861
        %877 = vmatprep.subr.mxu0 0.0
        %878 = vmatpush1.msra.mxu0 %v862
        %879 = vmatprep.subr.mxu0 0.0
        %880 = vmatpush1.msra.mxu0 %v863
        %881 = vmatprep.subr.mxu0 0.0
        %882 = vmatpush1.msra.mxu0 %v864
        %883 = vmatprep.subr.mxu0 0.0
        %884 = vmatpush1.msra.mxu0 %v865
        %885 = vmatprep.subr.mxu0 0.0
        %886 = vmatpush1.msra.mxu0 %v866
        %887 = vmatprep.subr.mxu0 0.0
        %888 = vmatpush1.msra.mxu0 %v867
        %889 = vmatprep.subr.mxu0 0.0
        %890 = vmatpush1.msra.mxu0 %v868
        %891 = vmatprep.subr.mxu0 0.0
        %892 = vmatpush1.msra.mxu0 0.0
        %893 = vmatprep.subr.mxu0 0.0
        %894 = vmatpush1.msra.mxu0 0.0
        %895 = vmatprep.subr.mxu0 0.0
        %896 = vmatpush1.msra.mxu0 0.0
        %897 = vmatprep.subr.mxu0 0.0
        %898 = vmatpush1.msra.mxu0 0.0
        %899 = vmatprep.subr.mxu0 0.0
        %900 = vmatpush1.msra.mxu0 0.0
        %901 = vmatprep.subr.mxu0 0.0
        %902 = vmatpush1.msra.mxu0 0.0
        %903 = vmatprep.subr.mxu0 0.0
        %904 = vmatpush1.msra.mxu0 0.0
        %905 = vmatprep.subr.mxu0 0.0
        %906 = vmatpush1.msra.mxu0 0.0
        %907 = vmatprep.subr.mxu0 0.0
        %908 = vmatpush1.msra.mxu0 0.0
        %909 = vmatprep.subr.mxu0 0.0
        %910 = vmatpush1.msra.mxu0 0.0
        %911 = vmatprep.subr.mxu0 0.0
        %912 = vmatpush1.msra.mxu0 0.0
        %913 = vmatprep.subr.mxu0 0.0
        %914 = vmatpush1.msra.mxu0 0.0
        %915 = vmatprep.subr.mxu0 0.0
        %916 = vmatpush1.msra.mxu0 0.0
        %917 = vmatprep.subr.mxu0 0.0
        %918 = vmatpush1.msra.mxu0 0.0
        %919 = vmatprep.subr.mxu0 0.0
        %920 = vmatpush1.msra.mxu0 0.0
        %921 = vmatprep.subr.mxu0 0.0
        %922 = vmatpush1.msra.mxu0 0.0
        %923 = vmatprep.subr.mxu0 0.0
        %924 = vmatpush1.msra.mxu0 0.0
        %925 = vmatprep.subr.mxu0 0.0
        %926 = vmatpush1.msra.mxu0 0.0
        %927 = vmatprep.subr.mxu0 0.0
        %928 = vmatpush1.msra.mxu0 0.0
        %929 = vmatprep.subr.mxu0 0.0
        %930 = vmatpush1.msra.mxu0 0.0
        %931 = vmatprep.subr.mxu0 0.0
        %932 = vmatpush1.msra.mxu0 0.0
        %933 = vmatprep.subr.mxu0 0.0
        %934 = vmatpush1.msra.mxu0 0.0
        %935 = vmatprep.subr.mxu0 0.0
        %936 = vmatpush1.msra.mxu0 0.0
        %937 = vmatprep.subr.mxu0 0.0
        %938 = vmatpush1.msra.mxu0 0.0
        %939 = vmatprep.mubr.f32.mxu0 0.0
        %940 = vmatmul.mubr.f32.gmra.mrb[0].mxu0 %v870
        %v941 = vpop.f32.mrb[0].mxu0
        %v942 = vadd.f32 0.0, %v941
        %v943 = vpop.f32.mrb[0].mxu0
        %944 = vmatprep.mubr.f32.mxu0 0.0
        %945 = vmatmul.mubr.f32.gmra.mrb[0].mxu0 %v873
        %v946 = vpop.f32.mrb[0].mxu0
        %v947 = vadd.f32 0.0, %v946
        %v948 = vpop.f32.mrb[0].mxu0
        %949 = vdwg.mxu0
        %v950 = vadd.f32 %v857, %v942
        %v951 = vadd.f32 %v858, %v947
        %v952 = vld [vmem:[#allocation4 + $0x100] sm:$0xff]
        %v953 = vld [vmem:[#allocation4 + $0x108] sm:$0xff]
        %v954 = vld [vmem:[#allocation4 + $0x110] sm:$0xff]
        %v955 = vld [vmem:[#allocation4 + $0x118] sm:$0xff]
        %v956 = vld [vmem:[#allocation4 + $0x120] sm:$0xff]
        %v957 = vld [vmem:[#allocation4 + $0x128] sm:$0xff]
        %v958 = vld [vmem:[#allocation4 + $0x130] sm:$0xff]
        %v959 = vld [vmem:[#allocation4 + $0x138] sm:$0xff]
        %960 = vrot.lane.b32.xlu0 %v859, 124
        %v961 = vpop.permute.xlu0 %960
        %962 = vrot.lane.b32.xlu0 %v860, 124
        %v963 = vpop.permute.xlu0 %962
        %v964 = vsel %vm607, %v961, 0
        %v966 = vsel %vm607, %v963, 0
        %968 = vmatprep.subr.mxu0 0.0
        %969 = vmatpush1.msra.mxu0 %v952
        %970 = vmatprep.subr.mxu0 0.0
        %971 = vmatpush1.msra.mxu0 %v953
        %972 = vmatprep.subr.mxu0 0.0
        %973 = vmatpush1.msra.mxu0 %v954
        %974 = vmatprep.subr.mxu0 0.0
        %975 = vmatpush1.msra.mxu0 %v955
        %976 = vmatprep.subr.mxu0 0.0
        %977 = vmatpush1.msra.mxu0 %v956
        %978 = vmatprep.subr.mxu0 0.0
        %979 = vmatpush1.msra.mxu0 %v957
        %980 = vmatprep.subr.mxu0 0.0
        %981 = vmatpush1.msra.mxu0 %v958
        %982 = vmatprep.subr.mxu0 0.0
        %983 = vmatpush1.msra.mxu0 %v959
        %984 = vmatprep.subr.mxu0 0.0
        %985 = vmatpush1.msra.mxu0 0.0
        %986 = vmatprep.subr.mxu0 0.0
        %987 = vmatpush1.msra.mxu0 0.0
        %988 = vmatprep.subr.mxu0 0.0
        %989 = vmatpush1.msra.mxu0 0.0
        %990 = vmatprep.subr.mxu0 0.0
        %991 = vmatpush1.msra.mxu0 0.0
        %992 = vmatprep.subr.mxu0 0.0
        %993 = vmatpush1.msra.mxu0 0.0
        %994 = vmatprep.subr.mxu0 0.0
        %995 = vmatpush1.msra.mxu0 0.0
        %996 = vmatprep.subr.mxu0 0.0
        %997 = vmatpush1.msra.mxu0 0.0
        %998 = vmatprep.subr.mxu0 0.0
        %999 = vmatpush1.msra.mxu0 0.0
        %1000 = vmatprep.subr.mxu0 0.0
        %1001 = vmatpush1.msra.mxu0 0.0
        %1002 = vmatprep.subr.mxu0 0.0
        %1003 = vmatpush1.msra.mxu0 0.0
        %1004 = vmatprep.subr.mxu0 0.0
        %1005 = vmatpush1.msra.mxu0 0.0
        %1006 = vmatprep.subr.mxu0 0.0
        %1007 = vmatpush1.msra.mxu0 0.0
        %1008 = vmatprep.subr.mxu0 0.0
        %1009 = vmatpush1.msra.mxu0 0.0
        %1010 = vmatprep.subr.mxu0 0.0
        %1011 = vmatpush1.msra.mxu0 0.0
        %1012 = vmatprep.subr.mxu0 0.0
        %1013 = vmatpush1.msra.mxu0 0.0
        %1014 = vmatprep.subr.mxu0 0.0
        %1015 = vmatpush1.msra.mxu0 0.0
        %1016 = vmatprep.subr.mxu0 0.0
        %1017 = vmatpush1.msra.mxu0 0.0
        %1018 = vmatprep.subr.mxu0 0.0
        %1019 = vmatpush1.msra.mxu0 0.0
        %1020 = vmatprep.subr.mxu0 0.0
        %1021 = vmatpush1.msra.mxu0 0.0
        %1022 = vmatprep.subr.mxu0 0.0
        %1023 = vmatpush1.msra.mxu0 0.0
        %1024 = vmatprep.subr.mxu0 0.0
        %1025 = vmatpush1.msra.mxu0 0.0
        %1026 = vmatprep.subr.mxu0 0.0
        %1027 = vmatpush1.msra.mxu0 0.0
        %1028 = vmatprep.subr.mxu0 0.0
        %1029 = vmatpush1.msra.mxu0 0.0
        %1030 = vmatprep.subr.mxu0 0.0
        %1031 = vmatpush1.msra.mxu0 0.0
        %1032 = vmatprep.mubr.f32.mxu0 0.0
        %1033 = vmatmul.mubr.f32.gmra.mrb[0].mxu0 %v964
        %v1034 = vpop.f32.mrb[0].mxu0
        %v1035 = vadd.f32 0.0, %v1034
        %v1036 = vpop.f32.mrb[0].mxu0
        %1037 = vmatprep.mubr.f32.mxu0 0.0
        %1038 = vmatmul.mubr.f32.gmra.mrb[0].mxu0 %v966
        %v1039 = vpop.f32.mrb[0].mxu0
        %v1040 = vadd.f32 0.0, %v1039
        %v1041 = vpop.f32.mrb[0].mxu0
        %1042 = vdwg.mxu0
        %v1043 = vadd.f32 %v950, %v1035
        %v1044 = vadd.f32 %v951, %v1040
        %v1045 = vld [vmem:[#allocation4 + $0x140] sm:$0xff]
        %v1046 = vld [vmem:[#allocation4 + $0x148] sm:$0xff]
        %v1047 = vld [vmem:[#allocation4 + $0x150] sm:$0xff]
        %v1048 = vld [vmem:[#allocation4 + $0x158] sm:$0xff]
        %v1049 = vld [vmem:[#allocation4 + $0x160] sm:$0xff]
        %v1050 = vld [vmem:[#allocation4 + $0x168] sm:$0xff]
        %v1051 = vld [vmem:[#allocation4 + $0x170] sm:$0xff]
        %v1052 = vld [vmem:[#allocation4 + $0x178] sm:$0xff]
        %1053 = vrot.lane.b32.xlu0 %v859, 120
        %v1054 = vpop.permute.xlu0 %1053
        %1055 = vrot.lane.b32.xlu0 %v860, 120
        %v1056 = vpop.permute.xlu0 %1055
        %v1057 = vsel %vm607, %v1054, 0
        %v1059 = vsel %vm607, %v1056, 0
        %1061 = vmatprep.subr.mxu0 0.0
        %1062 = vmatpush1.msra.mxu0 %v1045
        %1063 = vmatprep.subr.mxu0 0.0
        %1064 = vmatpush1.msra.mxu0 %v1046
        %1065 = vmatprep.subr.mxu0 0.0
        %1066 = vmatpush1.msra.mxu0 %v1047
        %1067 = vmatprep.subr.mxu0 0.0
        %1068 = vmatpush1.msra.mxu0 %v1048
        %1069 = vmatprep.subr.mxu0 0.0
        %1070 = vmatpush1.msra.mxu0 %v1049
        %1071 = vmatprep.subr.mxu0 0.0
        %1072 = vmatpush1.msra.mxu0 %v1050
        %1073 = vmatprep.subr.mxu0 0.0
        %1074 = vmatpush1.msra.mxu0 %v1051
        %1075 = vmatprep.subr.mxu0 0.0
        %1076 = vmatpush1.msra.mxu0 %v1052
        %1077 = vmatprep.subr.mxu0 0.0
        %1078 = vmatpush1.msra.mxu0 0.0
        %1079 = vmatprep.subr.mxu0 0.0
        %1080 = vmatpush1.msra.mxu0 0.0
        %1081 = vmatprep.subr.mxu0 0.0
        %1082 = vmatpush1.msra.mxu0 0.0
        %1083 = vmatprep.subr.mxu0 0.0
        %1084 = vmatpush1.msra.mxu0 0.0
        %1085 = vmatprep.subr.mxu0 0.0
        %1086 = vmatpush1.msra.mxu0 0.0
        %1087 = vmatprep.subr.mxu0 0.0
        %1088 = vmatpush1.msra.mxu0 0.0
        %1089 = vmatprep.subr.mxu0 0.0
        %1090 = vmatpush1.msra.mxu0 0.0
        %1091 = vmatprep.subr.mxu0 0.0
        %1092 = vmatpush1.msra.mxu0 0.0
        %1093 = vmatprep.subr.mxu0 0.0
        %1094 = vmatpush1.msra.mxu0 0.0
        %1095 = vmatprep.subr.mxu0 0.0
        %1096 = vmatpush1.msra.mxu0 0.0
        %1097 = vmatprep.subr.mxu0 0.0
        %1098 = vmatpush1.msra.mxu0 0.0
        %1099 = vmatprep.subr.mxu0 0.0
        %1100 = vmatpush1.msra.mxu0 0.0
        %1101 = vmatprep.subr.mxu0 0.0
        %1102 = vmatpush1.msra.mxu0 0.0
        %1103 = vmatprep.subr.mxu0 0.0
        %1104 = vmatpush1.msra.mxu0 0.0
        %1105 = vmatprep.subr.mxu0 0.0
        %1106 = vmatpush1.msra.mxu0 0.0
        %1107 = vmatprep.subr.mxu0 0.0
        %1108 = vmatpush1.msra.mxu0 0.0
        %1109 = vmatprep.subr.mxu0 0.0
        %1110 = vmatpush1.msra.mxu0 0.0
        %1111 = vmatprep.subr.mxu0 0.0
        %1112 = vmatpush1.msra.mxu0 0.0
        %1113 = vmatprep.subr.mxu0 0.0
        %1114 = vmatpush1.msra.mxu0 0.0
        %1115 = vmatprep.subr.mxu0 0.0
        %1116 = vmatpush1.msra.mxu0 0.0
        %1117 = vmatprep.subr.mxu0 0.0
        %1118 = vmatpush1.msra.mxu0 0.0
        %1119 = vmatprep.subr.mxu0 0.0
        %1120 = vmatpush1.msra.mxu0 0.0
        %1121 = vmatprep.subr.mxu0 0.0
        %1122 = vmatpush1.msra.mxu0 0.0
        %1123 = vmatprep.subr.mxu0 0.0
        %1124 = vmatpush1.msra.mxu0 0.0
        %1125 = vmatprep.mubr.f32.mxu0 0.0
        %1126 = vmatmul.mubr.f32.gmra.mrb[0].mxu0 %v1057
        %v1127 = vpop.f32.mrb[0].mxu0
        %v1128 = vadd.f32 0.0, %v1127
        %v1129 = vpop.f32.mrb[0].mxu0
        %1130 = vmatprep.mubr.f32.mxu0 0.0
        %1131 = vmatmul.mubr.f32.gmra.mrb[0].mxu0 %v1059
        %v1132 = vpop.f32.mrb[0].mxu0
        %v1133 = vadd.f32 0.0, %v1132
        %v1134 = vpop.f32.mrb[0].mxu0
        %1135 = vdwg.mxu0
        %v1136 = vadd.f32 %v1043, %v1128
        %v1137 = vadd.f32 %v1044, %v1133
        %v1138 = vld [vmem:[#allocation2 + $0x2] sm:$0xff]
        %v1139 = vld [vmem:[#allocation2 + $0xa] sm:$0xff]
        %v1140 = vld [vmem:[#allocation4 + $0x180] sm:$0xff]
        %v1141 = vld [vmem:[#allocation4 + $0x188] sm:$0xff]
        %v1142 = vld [vmem:[#allocation4 + $0x190] sm:$0xff]
        %v1143 = vld [vmem:[#allocation4 + $0x198] sm:$0xff]
        %v1144 = vld [vmem:[#allocation4 + $0x1a0] sm:$0xff]
        %v1145 = vld [vmem:[#allocation4 + $0x1a8] sm:$0xff]
        %v1146 = vld [vmem:[#allocation4 + $0x1b0] sm:$0xff]
        %v1147 = vld [vmem:[#allocation4 + $0x1b8] sm:$0xff]
        %v1149 = vsel %vm607, %v1138, 0
        %v1152 = vsel %vm607, %v1139, 0
        %1154 = vmatprep.subr.mxu0 0.0
        %1155 = vmatpush1.msra.mxu0 %v1140
        %1156 = vmatprep.subr.mxu0 0.0
        %1157 = vmatpush1.msra.mxu0 %v1141
        %1158 = vmatprep.subr.mxu0 0.0
        %1159 = vmatpush1.msra.mxu0 %v1142
        %1160 = vmatprep.subr.mxu0 0.0
        %1161 = vmatpush1.msra.mxu0 %v1143
        %1162 = vmatprep.subr.mxu0 0.0
        %1163 = vmatpush1.msra.mxu0 %v1144
        %1164 = vmatprep.subr.mxu0 0.0
        %1165 = vmatpush1.msra.mxu0 %v1145
        %1166 = vmatprep.subr.mxu0 0.0
        %1167 = vmatpush1.msra.mxu0 %v1146
        %1168 = vmatprep.subr.mxu0 0.0
        %1169 = vmatpush1.msra.mxu0 %v1147
        %1170 = vmatprep.subr.mxu0 0.0
        %1171 = vmatpush1.msra.mxu0 0.0
        %1172 = vmatprep.subr.mxu0 0.0
        %1173 = vmatpush1.msra.mxu0 0.0
        %1174 = vmatprep.subr.mxu0 0.0
        %1175 = vmatpush1.msra.mxu0 0.0
        %1176 = vmatprep.subr.mxu0 0.0
        %1177 = vmatpush1.msra.mxu0 0.0
        %1178 = vmatprep.subr.mxu0 0.0
        %1179 = vmatpush1.msra.mxu0 0.0
        %1180 = vmatprep.subr.mxu0 0.0
        %1181 = vmatpush1.msra.mxu0 0.0
        %1182 = vmatprep.subr.mxu0 0.0
        %1183 = vmatpush1.msra.mxu0 0.0
        %1184 = vmatprep.subr.mxu0 0.0
        %1185 = vmatpush1.msra.mxu0 0.0
        %1186 = vmatprep.subr.mxu0 0.0
        %1187 = vmatpush1.msra.mxu0 0.0
        %1188 = vmatprep.subr.mxu0 0.0
        %1189 = vmatpush1.msra.mxu0 0.0
        %1190 = vmatprep.subr.mxu0 0.0
        %1191 = vmatpush1.msra.mxu0 0.0
        %1192 = vmatprep.subr.mxu0 0.0
        %1193 = vmatpush1.msra.mxu0 0.0
        %1194 = vmatprep.subr.mxu0 0.0
        %1195 = vmatpush1.msra.mxu0 0.0
        %1196 = vmatprep.subr.mxu0 0.0
        %1197 = vmatpush1.msra.mxu0 0.0
        %1198 = vmatprep.subr.mxu0 0.0
        %1199 = vmatpush1.msra.mxu0 0.0
        %1200 = vmatprep.subr.mxu0 0.0
        %1201 = vmatpush1.msra.mxu0 0.0
        %1202 = vmatprep.subr.mxu0 0.0
        %1203 = vmatpush1.msra.mxu0 0.0
        %1204 = vmatprep.subr.mxu0 0.0
        %1205 = vmatpush1.msra.mxu0 0.0
        %1206 = vmatprep.subr.mxu0 0.0
        %1207 = vmatpush1.msra.mxu0 0.0
        %1208 = vmatprep.subr.mxu0 0.0
        %1209 = vmatpush1.msra.mxu0 0.0
        %1210 = vmatprep.subr.mxu0 0.0
        %1211 = vmatpush1.msra.mxu0 0.0
        %1212 = vmatprep.subr.mxu0 0.0
        %1213 = vmatpush1.msra.mxu0 0.0
        %1214 = vmatprep.subr.mxu0 0.0
        %1215 = vmatpush1.msra.mxu0 0.0
        %1216 = vmatprep.subr.mxu0 0.0
        %1217 = vmatpush1.msra.mxu0 0.0
        %1218 = vmatprep.mubr.f32.mxu0 0.0
        %1219 = vmatmul.mubr.f32.gmra.mrb[0].mxu0 %v1149
        %v1220 = vpop.f32.mrb[0].mxu0
        %v1221 = vadd.f32 0.0, %v1220
        %v1222 = vpop.f32.mrb[0].mxu0
        %1223 = vmatprep.mubr.f32.mxu0 0.0
        %1224 = vmatmul.mubr.f32.gmra.mrb[0].mxu0 %v1152
        %v1225 = vpop.f32.mrb[0].mxu0
        %v1226 = vadd.f32 0.0, %v1225
        %v1227 = vpop.f32.mrb[0].mxu0
        %1228 = vdwg.mxu0
        %v1229 = vadd.f32 %v1136, %v1221
        %v1230 = vadd.f32 %v1137, %v1226
        %v1231 = vld [vmem:[#allocation4 + $0x1c0] sm:$0xff]
        %v1232 = vld [vmem:[#allocation4 + $0x1c8] sm:$0xff]
        %v1233 = vld [vmem:[#allocation4 + $0x1d0] sm:$0xff]
        %v1234 = vld [vmem:[#allocation4 + $0x1d8] sm:$0xff]
        %v1235 = vld [vmem:[#allocation4 + $0x1e0] sm:$0xff]
        %v1236 = vld [vmem:[#allocation4 + $0x1e8] sm:$0xff]
        %v1237 = vld [vmem:[#allocation4 + $0x1f0] sm:$0xff]
        %v1238 = vld [vmem:[#allocation4 + $0x1f8] sm:$0xff]
        %1239 = vrot.lane.b32.xlu0 %v1138, 124
        %v1240 = vpop.permute.xlu0 %1239
        %1241 = vrot.lane.b32.xlu0 %v1139, 124
        %v1242 = vpop.permute.xlu0 %1241
        %v1243 = vsel %vm607, %v1240, 0
        %v1245 = vsel %vm607, %v1242, 0
        %1247 = vmatprep.subr.mxu0 0.0
        %1248 = vmatpush1.msra.mxu0 %v1231
        %1249 = vmatprep.subr.mxu0 0.0
        %1250 = vmatpush1.msra.mxu0 %v1232
        %1251 = vmatprep.subr.mxu0 0.0
        %1252 = vmatpush1.msra.mxu0 %v1233
        %1253 = vmatprep.subr.mxu0 0.0
        %1254 = vmatpush1.msra.mxu0 %v1234
        %1255 = vmatprep.subr.mxu0 0.0
        %1256 = vmatpush1.msra.mxu0 %v1235
        %1257 = vmatprep.subr.mxu0 0.0
        %1258 = vmatpush1.msra.mxu0 %v1236
        %1259 = vmatprep.subr.mxu0 0.0
        %1260 = vmatpush1.msra.mxu0 %v1237
        %1261 = vmatprep.subr.mxu0 0.0
        %1262 = vmatpush1.msra.mxu0 %v1238
        %1263 = vmatprep.subr.mxu0 0.0
        %1264 = vmatpush1.msra.mxu0 0.0
        %1265 = vmatprep.subr.mxu0 0.0
        %1266 = vmatpush1.msra.mxu0 0.0
        %1267 = vmatprep.subr.mxu0 0.0
        %1268 = vmatpush1.msra.mxu0 0.0
        %1269 = vmatprep.subr.mxu0 0.0
        %1270 = vmatpush1.msra.mxu0 0.0
        %1271 = vmatprep.subr.mxu0 0.0
        %1272 = vmatpush1.msra.mxu0 0.0
        %1273 = vmatprep.subr.mxu0 0.0
        %1274 = vmatpush1.msra.mxu0 0.0
        %1275 = vmatprep.subr.mxu0 0.0
        %1276 = vmatpush1.msra.mxu0 0.0
        %1277 = vmatprep.subr.mxu0 0.0
        %1278 = vmatpush1.msra.mxu0 0.0
        %1279 = vmatprep.subr.mxu0 0.0
        %1280 = vmatpush1.msra.mxu0 0.0
        %1281 = vmatprep.subr.mxu0 0.0
        %1282 = vmatpush1.msra.mxu0 0.0
        %1283 = vmatprep.subr.mxu0 0.0
        %1284 = vmatpush1.msra.mxu0 0.0
        %1285 = vmatprep.subr.mxu0 0.0
        %1286 = vmatpush1.msra.mxu0 0.0
        %1287 = vmatprep.subr.mxu0 0.0
        %1288 = vmatpush1.msra.mxu0 0.0
        %1289 = vmatprep.subr.mxu0 0.0
        %1290 = vmatpush1.msra.mxu0 0.0
        %1291 = vmatprep.subr.mxu0 0.0
        %1292 = vmatpush1.msra.mxu0 0.0
        %1293 = vmatprep.subr.mxu0 0.0
        %1294 = vmatpush1.msra.mxu0 0.0
        %1295 = vmatprep.subr.mxu0 0.0
        %1296 = vmatpush1.msra.mxu0 0.0
        %1297 = vmatprep.subr.mxu0 0.0
        %1298 = vmatpush1.msra.mxu0 0.0
        %1299 = vmatprep.subr.mxu0 0.0
        %1300 = vmatpush1.msra.mxu0 0.0
        %1301 = vmatprep.subr.mxu0 0.0
        %1302 = vmatpush1.msra.mxu0 0.0
        %1303 = vmatprep.subr.mxu0 0.0
        %1304 = vmatpush1.msra.mxu0 0.0
        %1305 = vmatprep.subr.mxu0 0.0
        %1306 = vmatpush1.msra.mxu0 0.0
        %1307 = vmatprep.subr.mxu0 0.0
        %1308 = vmatpush1.msra.mxu0 0.0
        %1309 = vmatprep.subr.mxu0 0.0
        %1310 = vmatpush1.msra.mxu0 0.0
        %1311 = vmatprep.mubr.f32.mxu0 0.0
        %1312 = vmatmul.mubr.f32.gmra.mrb[0].mxu0 %v1243
        %v1313 = vpop.f32.mrb[0].mxu0
        %v1314 = vadd.f32 0.0, %v1313
        %v1315 = vpop.f32.mrb[0].mxu0
        %1316 = vmatprep.mubr.f32.mxu0 0.0
        %1317 = vmatmul.mubr.f32.gmra.mrb[0].mxu0 %v1245
        %v1318 = vpop.f32.mrb[0].mxu0
        %v1319 = vadd.f32 0.0, %v1318
        %v1320 = vpop.f32.mrb[0].mxu0
        %1321 = vdwg.mxu0
        %v1322 = vadd.f32 %v1229, %v1314
        %v1323 = vadd.f32 %v1230, %v1319
        %v1324 = vld [vmem:[#allocation4 + $0x200] sm:$0xff]
        %v1325 = vld [vmem:[#allocation4 + $0x208] sm:$0xff]
        %v1326 = vld [vmem:[#allocation4 + $0x210] sm:$0xff]
        %v1327 = vld [vmem:[#allocation4 + $0x218] sm:$0xff]
        %v1328 = vld [vmem:[#allocation4 + $0x220] sm:$0xff]
        %v1329 = vld [vmem:[#allocation4 + $0x228] sm:$0xff]
        %v1330 = vld [vmem:[#allocation4 + $0x230] sm:$0xff]
        %v1331 = vld [vmem:[#allocation4 + $0x238] sm:$0xff]
        %1332 = vrot.lane.b32.xlu0 %v1138, 120
        %v1333 = vpop.permute.xlu0 %1332
        %1334 = vrot.lane.b32.xlu0 %v1139, 120
        %v1335 = vpop.permute.xlu0 %1334
        %v1336 = vsel %vm607, %v1333, 0
        %v1338 = vsel %vm607, %v1335, 0
        %1340 = vmatprep.subr.mxu0 0.0
        %1341 = vmatpush1.msra.mxu0 %v1324
        %1342 = vmatprep.subr.mxu0 0.0
        %1343 = vmatpush1.msra.mxu0 %v1325
        %1344 = vmatprep.subr.mxu0 0.0
        %1345 = vmatpush1.msra.mxu0 %v1326
        %1346 = vmatprep.subr.mxu0 0.0
        %1347 = vmatpush1.msra.mxu0 %v1327
        %1348 = vmatprep.subr.mxu0 0.0
        %1349 = vmatpush1.msra.mxu0 %v1328
        %1350 = vmatprep.subr.mxu0 0.0
        %1351 = vmatpush1.msra.mxu0 %v1329
        %1352 = vmatprep.subr.mxu0 0.0
        %1353 = vmatpush1.msra.mxu0 %v1330
        %1354 = vmatprep.subr.mxu0 0.0
        %1355 = vmatpush1.msra.mxu0 %v1331
        %1356 = vmatprep.subr.mxu0 0.0
        %1357 = vmatpush1.msra.mxu0 0.0
        %1358 = vmatprep.subr.mxu0 0.0
        %1359 = vmatpush1.msra.mxu0 0.0
        %1360 = vmatprep.subr.mxu0 0.0
        %1361 = vmatpush1.msra.mxu0 0.0
        %1362 = vmatprep.subr.mxu0 0.0
        %1363 = vmatpush1.msra.mxu0 0.0
        %1364 = vmatprep.subr.mxu0 0.0
        %1365 = vmatpush1.msra.mxu0 0.0
        %1366 = vmatprep.subr.mxu0 0.0
        %1367 = vmatpush1.msra.mxu0 0.0
        %1368 = vmatprep.subr.mxu0 0.0
        %1369 = vmatpush1.msra.mxu0 0.0
        %1370 = vmatprep.subr.mxu0 0.0
        %1371 = vmatpush1.msra.mxu0 0.0
        %1372 = vmatprep.subr.mxu0 0.0
        %1373 = vmatpush1.msra.mxu0 0.0
        %1374 = vmatprep.subr.mxu0 0.0
        %1375 = vmatpush1.msra.mxu0 0.0
        %1376 = vmatprep.subr.mxu0 0.0
        %1377 = vmatpush1.msra.mxu0 0.0
        %1378 = vmatprep.subr.mxu0 0.0
        %1379 = vmatpush1.msra.mxu0 0.0
        %1380 = vmatprep.subr.mxu0 0.0
        %1381 = vmatpush1.msra.mxu0 0.0
        %1382 = vmatprep.subr.mxu0 0.0
        %1383 = vmatpush1.msra.mxu0 0.0
        %1384 = vmatprep.subr.mxu0 0.0
        %1385 = vmatpush1.msra.mxu0 0.0
        %1386 = vmatprep.subr.mxu0 0.0
        %1387 = vmatpush1.msra.mxu0 0.0
        %1388 = vmatprep.subr.mxu0 0.0
        %1389 = vmatpush1.msra.mxu0 0.0
        %1390 = vmatprep.subr.mxu0 0.0
        %1391 = vmatpush1.msra.mxu0 0.0
        %1392 = vmatprep.subr.mxu0 0.0
        %1393 = vmatpush1.msra.mxu0 0.0
        %1394 = vmatprep.subr.mxu0 0.0
        %1395 = vmatpush1.msra.mxu0 0.0
        %1396 = vmatprep.subr.mxu0 0.0
        %1397 = vmatpush1.msra.mxu0 0.0
        %1398 = vmatprep.subr.mxu0 0.0
        %1399 = vmatpush1.msra.mxu0 0.0
        %1400 = vmatprep.subr.mxu0 0.0
        %1401 = vmatpush1.msra.mxu0 0.0
        %1402 = vmatprep.subr.mxu0 0.0
        %1403 = vmatpush1.msra.mxu0 0.0
        %1404 = vmatprep.mubr.f32.mxu0 0.0
        %1405 = vmatmul.mubr.f32.gmra.mrb[0].mxu0 %v1336
        %v1406 = vpop.f32.mrb[0].mxu0
        %v1407 = vadd.f32 0.0, %v1406
        %v1408 = vpop.f32.mrb[0].mxu0
        %1409 = vmatprep.mubr.f32.mxu0 0.0
        %1410 = vmatmul.mubr.f32.gmra.mrb[0].mxu0 %v1338
        %v1411 = vpop.f32.mrb[0].mxu0
        %v1412 = vadd.f32 0.0, %v1411
        %v1413 = vpop.f32.mrb[0].mxu0
        %1414 = vdwg.mxu0
        %v1415 = vadd.f32 %v1322, %v1407
        %v1416 = vadd.f32 %v1323, %v1412
        %v1417 = vld [vmem:[%s2] sm:$0x1]
        %v1419 = vlaneseq
        %v1420 = vshrl.u32 %v1419, 7
        %v1421 = vsub.s32 0, %v1420
        %v1422 = vrot.slane %v1417, %v1421
        %v1424 = vadd.f32 %v1415, %v1422
        %v1425 = vadd.f32 %v1416, %v1422
        %v1426 = vmax.f32 %v1424, 0.0
        %v1427 = vmax.f32 %v1425, 0.0
        %v1428 = vld [vmem:[%s3] sm:$0xff]
        %v1429 = vld [vmem:[%s3 + $0x8] sm:$0xff]
        %v1430 = vld [vmem:[%s3 + $0x10] sm:$0xff]
        %v1431 = vld [vmem:[%s3 + $0x18] sm:$0xff]
        %v1432 = vld [vmem:[%s3 + $0x20] sm:$0xff]
        %v1433 = vld [vmem:[%s3 + $0x28] sm:$0xff]
        %v1434 = vld [vmem:[%s3 + $0x30] sm:$0xff]
        %v1435 = vld [vmem:[%s3 + $0x38] sm:$0xff]
        %v1436 = vld [vmem:[%s3 + $0x40] sm:$0xff]
        %v1437 = vld [vmem:[%s3 + $0x48] sm:$0xff]
        %v1438 = vld [vmem:[%s3 + $0x50] sm:$0xff]
        %v1439 = vld [vmem:[%s3 + $0x58] sm:$0xff]
        %v1440 = vld [vmem:[%s3 + $0x60] sm:$0xff]
        %v1441 = vld [vmem:[%s3 + $0x68] sm:$0xff]
        %v1442 = vld [vmem:[%s3 + $0x70] sm:$0xff]
        %v1443 = vld [vmem:[%s3 + $0x78] sm:$0xff]
        %1444 = vmatprep.subr.mxu0 0.0
        %1445 = vmatpush1.msra.mxu0 %v1428
        %1446 = vmatprep.subr.mxu0 0.0
        %1447 = vmatpush1.msra.mxu0 %v1429
        %1448 = vmatprep.subr.mxu0 0.0
        %1449 = vmatpush1.msra.mxu0 %v1430
        %1450 = vmatprep.subr.mxu0 0.0
        %1451 = vmatpush1.msra.mxu0 %v1431
        %1452 = vmatprep.subr.mxu0 0.0
        %1453 = vmatpush1.msra.mxu0 %v1432
        %1454 = vmatprep.subr.mxu0 0.0
        %1455 = vmatpush1.msra.mxu0 %v1433
        %1456 = vmatprep.subr.mxu0 0.0
        %1457 = vmatpush1.msra.mxu0 %v1434
        %1458 = vmatprep.subr.mxu0 0.0
        %1459 = vmatpush1.msra.mxu0 %v1435
        %1460 = vmatprep.subr.mxu0 0.0
        %1461 = vmatpush1.msra.mxu0 %v1436
        %1462 = vmatprep.subr.mxu0 0.0
        %1463 = vmatpush1.msra.mxu0 %v1437
        %1464 = vmatprep.subr.mxu0 0.0
        %1465 = vmatpush1.msra.mxu0 %v1438
        %1466 = vmatprep.subr.mxu0 0.0
        %1467 = vmatpush1.msra.mxu0 %v1439
        %1468 = vmatprep.subr.mxu0 0.0
        %1469 = vmatpush1.msra.mxu0 %v1440
        %1470 = vmatprep.subr.mxu0 0.0
        %1471 = vmatpush1.msra.mxu0 %v1441
        %1472 = vmatprep.subr.mxu0 0.0
        %1473 = vmatpush1.msra.mxu0 %v1442
        %1474 = vmatprep.subr.mxu0 0.0
        %1475 = vmatpush1.msra.mxu0 %v1443
        %1476 = vmatprep.subr.mxu0 0.0
        %1477 = vmatpush1.msra.mxu0 0.0
        %1478 = vmatprep.subr.mxu0 0.0
        %1479 = vmatpush1.msra.mxu0 0.0
        %1480 = vmatprep.subr.mxu0 0.0
        %1481 = vmatpush1.msra.mxu0 0.0
        %1482 = vmatprep.subr.mxu0 0.0
        %1483 = vmatpush1.msra.mxu0 0.0
        %1484 = vmatprep.subr.mxu0 0.0
        %1485 = vmatpush1.msra.mxu0 0.0
        %1486 = vmatprep.subr.mxu0 0.0
        %1487 = vmatpush1.msra.mxu0 0.0
        %1488 = vmatprep.subr.mxu0 0.0
        %1489 = vmatpush1.msra.mxu0 0.0
        %1490 = vmatprep.subr.mxu0 0.0
        %1491 = vmatpush1.msra.mxu0 0.0
        %1492 = vmatprep.subr.mxu0 0.0
        %1493 = vmatpush1.msra.mxu0 0.0
        %1494 = vmatprep.subr.mxu0 0.0
        %1495 = vmatpush1.msra.mxu0 0.0
        %1496 = vmatprep.subr.mxu0 0.0
        %1497 = vmatpush1.msra.mxu0 0.0
        %1498 = vmatprep.subr.mxu0 0.0
        %1499 = vmatpush1.msra.mxu0 0.0
        %1500 = vmatprep.subr.mxu0 0.0
        %1501 = vmatpush1.msra.mxu0 0.0
        %1502 = vmatprep.subr.mxu0 0.0
        %1503 = vmatpush1.msra.mxu0 0.0
        %1504 = vmatprep.subr.mxu0 0.0
        %1505 = vmatpush1.msra.mxu0 0.0
        %1506 = vmatprep.subr.mxu0 0.0
        %1507 = vmatpush1.msra.mxu0 0.0
        %1508 = vmatprep.mubr.f32.mxu0 0.0
        %1509 = vmatmul.mubr.f32.gmra.mrb[0].mxu0 %v1426
        %v1510 = vpop.f32.mrb[0].mxu0
        %v1511 = vadd.f32 0.0, %v1510
        %v1512 = vpop.f32.mrb[0].mxu0
        %1513 = vmatprep.mubr.f32.mxu0 0.0
        %1514 = vmatmul.mubr.f32.gmra.mrb[0].mxu0 %v1427
        %v1515 = vpop.f32.mrb[0].mxu0
        %v1516 = vadd.f32 0.0, %v1515
        %v1517 = vpop.f32.mrb[0].mxu0
        %1518 = vdwg.mxu0
        %v1519 = vld [vmem:[#allocation7] sm:$0xff]
        %v1520 = vld [vmem:[#allocation7 + $0x8] sm:$0xff]
        %v1521 = vld [vmem:[#allocation7 + $0x10] sm:$0xff]
        %v1522 = vld [vmem:[#allocation7 + $0x18] sm:$0xff]
        %v1523 = vld [vmem:[#allocation7 + $0x20] sm:$0xff]
        %v1524 = vld [vmem:[#allocation7 + $0x28] sm:$0xff]
        %v1525 = vld [vmem:[#allocation7 + $0x30] sm:$0xff]
        %v1526 = vld [vmem:[#allocation7 + $0x38] sm:$0xff]
        %v1527 = vld [vmem:[#allocation7 + $0x40] sm:$0xff]
        %v1528 = vld [vmem:[#allocation7 + $0x48] sm:$0xff]
        %v1529 = vld [vmem:[#allocation7 + $0x50] sm:$0xff]
        %v1530 = vld [vmem:[#allocation7 + $0x58] sm:$0xff]
        %v1531 = vld [vmem:[#allocation7 + $0x60] sm:$0xff]
        %v1532 = vld [vmem:[#allocation7 + $0x68] sm:$0xff]
        %v1533 = vld [vmem:[#allocation7 + $0x70] sm:$0xff]
        %v1534 = vld [vmem:[#allocation7 + $0x78] sm:$0xff]
        %1535 = vmatprep.subr.mxu0 0.0
        %1536 = vmatpush1.msra.mxu0 %v1519
        %1537 = vmatprep.subr.mxu0 0.0
        %1538 = vmatpush1.msra.mxu0 %v1520
        %1539 = vmatprep.subr.mxu0 0.0
        %1540 = vmatpush1.msra.mxu0 %v1521
        %1541 = vmatprep.subr.mxu0 0.0
        %1542 = vmatpush1.msra.mxu0 %v1522
        %1543 = vmatprep.subr.mxu0 0.0
        %1544 = vmatpush1.msra.mxu0 %v1523
        %1545 = vmatprep.subr.mxu0 0.0
        %1546 = vmatpush1.msra.mxu0 %v1524
        %1547 = vmatprep.subr.mxu0 0.0
        %1548 = vmatpush1.msra.mxu0 %v1525
        %1549 = vmatprep.subr.mxu0 0.0
        %1550 = vmatpush1.msra.mxu0 %v1526
        %1551 = vmatprep.subr.mxu0 0.0
        %1552 = vmatpush1.msra.mxu0 %v1527
        %1553 = vmatprep.subr.mxu0 0.0
        %1554 = vmatpush1.msra.mxu0 %v1528
        %1555 = vmatprep.subr.mxu0 0.0
        %1556 = vmatpush1.msra.mxu0 %v1529
        %1557 = vmatprep.subr.mxu0 0.0
        %1558 = vmatpush1.msra.mxu0 %v1530
        %1559 = vmatprep.subr.mxu0 0.0
        %1560 = vmatpush1.msra.mxu0 %v1531
        %1561 = vmatprep.subr.mxu0 0.0
        %1562 = vmatpush1.msra.mxu0 %v1532
        %1563 = vmatprep.subr.mxu0 0.0
        %1564 = vmatpush1.msra.mxu0 %v1533
        %1565 = vmatprep.subr.mxu0 0.0
        %1566 = vmatpush1.msra.mxu0 %v1534
        %1567 = vmatprep.subr.mxu0 0.0
        %1568 = vmatpush1.msra.mxu0 0.0
        %1569 = vmatprep.subr.mxu0 0.0
        %1570 = vmatpush1.msra.mxu0 0.0
        %1571 = vmatprep.subr.mxu0 0.0
        %1572 = vmatpush1.msra.mxu0 0.0
        %1573 = vmatprep.subr.mxu0 0.0
        %1574 = vmatpush1.msra.mxu0 0.0
        %1575 = vmatprep.subr.mxu0 0.0
        %1576 = vmatpush1.msra.mxu0 0.0
        %1577 = vmatprep.subr.mxu0 0.0
        %1578 = vmatpush1.msra.mxu0 0.0
        %1579 = vmatprep.subr.mxu0 0.0
        %1580 = vmatpush1.msra.mxu0 0.0
        %1581 = vmatprep.subr.mxu0 0.0
        %1582 = vmatpush1.msra.mxu0 0.0
        %1583 = vmatprep.subr.mxu0 0.0
        %1584 = vmatpush1.msra.mxu0 0.0
        %1585 = vmatprep.subr.mxu0 0.0
        %1586 = vmatpush1.msra.mxu0 0.0
        %1587 = vmatprep.subr.mxu0 0.0
        %1588 = vmatpush1.msra.mxu0 0.0
        %1589 = vmatprep.subr.mxu0 0.0
        %1590 = vmatpush1.msra.mxu0 0.0
        %1591 = vmatprep.subr.mxu0 0.0
        %1592 = vmatpush1.msra.mxu0 0.0
        %1593 = vmatprep.subr.mxu0 0.0
        %1594 = vmatpush1.msra.mxu0 0.0
        %1595 = vmatprep.subr.mxu0 0.0
        %1596 = vmatpush1.msra.mxu0 0.0
        %1597 = vmatprep.subr.mxu0 0.0
        %1598 = vmatpush1.msra.mxu0 0.0
        %1599 = vmatprep.mubr.f32.mxu0 0.0
        %1600 = vmatmul.mubr.f32.gmra.mrb[0].mxu0 %v1426
        %v1601 = vpop.f32.mrb[0].mxu0
        %v1602 = vadd.f32 0.0, %v1601
        %v1603 = vpop.f32.mrb[0].mxu0
        %1604 = vmatprep.mubr.f32.mxu0 0.0
        %1605 = vmatmul.mubr.f32.gmra.mrb[0].mxu0 %v1427
        %v1606 = vpop.f32.mrb[0].mxu0
        %v1607 = vadd.f32 0.0, %v1606
        %v1608 = vpop.f32.mrb[0].mxu0
        %1609 = vdwg.mxu0
        %v1610 = vmax.f32 %v1511, %v1602
        %v1611 = vmax.f32 %v1516, %v1607
        %v1612 = vld [vmem:[%s5] sm:$0xff]
        %vm1613 = vcmask 130048
        %v1615 = vsel %vm1613, %v1612, 0
        %1617 = vmatprep.subr.mxu0 0.0
        %1618 = vmatpush1.msra.mxu0 %v1610
        %1619 = vmatprep.subr.mxu0 0.0
        %1620 = vmatpush1.msra.mxu0 %v1611
        %1621 = vmatprep.subr.mxu0 0.0
        %1622 = vmatpush1.msra.mxu0 0.0
        %1623 = vmatprep.subr.mxu0 0.0
        %1624 = vmatpush1.msra.mxu0 0.0
        %1625 = vmatprep.subr.mxu0 0.0
        %1626 = vmatpush1.msra.mxu0 0.0
        %1627 = vmatprep.subr.mxu0 0.0
        %1628 = vmatpush1.msra.mxu0 0.0
        %1629 = vmatprep.subr.mxu0 0.0
        %1630 = vmatpush1.msra.mxu0 0.0
        %1631 = vmatprep.subr.mxu0 0.0
        %1632 = vmatpush1.msra.mxu0 0.0
        %1633 = vmatprep.subr.mxu0 0.0
        %1634 = vmatpush1.msra.mxu0 0.0
        %1635 = vmatprep.subr.mxu0 0.0
        %1636 = vmatpush1.msra.mxu0 0.0
        %1637 = vmatprep.subr.mxu0 0.0
        %1638 = vmatpush1.msra.mxu0 0.0
        %1639 = vmatprep.subr.mxu0 0.0
        %1640 = vmatpush1.msra.mxu0 0.0
        %1641 = vmatprep.subr.mxu0 0.0
        %1642 = vmatpush1.msra.mxu0 0.0
        %1643 = vmatprep.subr.mxu0 0.0
        %1644 = vmatpush1.msra.mxu0 0.0
        %1645 = vmatprep.subr.mxu0 0.0
        %1646 = vmatpush1.msra.mxu0 0.0
        %1647 = vmatprep.subr.mxu0 0.0
        %1648 = vmatpush1.msra.mxu0 0.0
        %1649 = vmatprep.subr.mxu0 0.0
        %1650 = vmatpush1.msra.mxu0 0.0
        %1651 = vmatprep.subr.mxu0 0.0
        %1652 = vmatpush1.msra.mxu0 0.0
        %1653 = vmatprep.subr.mxu0 0.0
        %1654 = vmatpush1.msra.mxu0 0.0
        %1655 = vmatprep.subr.mxu0 0.0
        %1656 = vmatpush1.msra.mxu0 0.0
        %1657 = vmatprep.subr.mxu0 0.0
        %1658 = vmatpush1.msra.mxu0 0.0
        %1659 = vmatprep.subr.mxu0 0.0
        %1660 = vmatpush1.msra.mxu0 0.0
        %1661 = vmatprep.subr.mxu0 0.0
        %1662 = vmatpush1.msra.mxu0 0.0
        %1663 = vmatprep.subr.mxu0 0.0
        %1664 = vmatpush1.msra.mxu0 0.0
        %1665 = vmatprep.subr.mxu0 0.0
        %1666 = vmatpush1.msra.mxu0 0.0
        %1667 = vmatprep.subr.mxu0 0.0
        %1668 = vmatpush1.msra.mxu0 0.0
        %1669 = vmatprep.subr.mxu0 0.0
        %1670 = vmatpush1.msra.mxu0 0.0
        %1671 = vmatprep.subr.mxu0 0.0
        %1672 = vmatpush1.msra.mxu0 0.0
        %1673 = vmatprep.subr.mxu0 0.0
        %1674 = vmatpush1.msra.mxu0 0.0
        %1675 = vmatprep.subr.mxu0 0.0
        %1676 = vmatpush1.msra.mxu0 0.0
        %1677 = vmatprep.subr.mxu0 0.0
        %1678 = vmatpush1.msra.mxu0 0.0
        %1679 = vmatprep.subr.mxu0 0.0
        %1680 = vmatpush1.msra.mxu0 0.0
        %1681 = vmatprep.mubr.f32.mxu0 0.0
        %1682 = vmatmul.mubr.f32.gmra.mrb[0].mxu0 %v1615
        %v1683 = vpop.f32.mrb[0].mxu0
        %v1684 = vadd.f32 0.0, %v1683
        %v1685 = vpop.f32.mrb[0].mxu0
        %1686 = vdwg.mxu0
        %v1687 = vld [vmem:[%s6] sm:$0xff]
        %v1689 = vsel %vm1613, %v1687, 0
        %1691 = vmatprep.subr.mxu0 0.0
        %1692 = vmatpush1.msra.mxu0 %v1610
        %1693 = vmatprep.subr.mxu0 0.0
        %1694 = vmatpush1.msra.mxu0 %v1611
        %1695 = vmatprep.subr.mxu0 0.0
        %1696 = vmatpush1.msra.mxu0 0.0
        %1697 = vmatprep.subr.mxu0 0.0
        %1698 = vmatpush1.msra.mxu0 0.0
        %1699 = vmatprep.subr.mxu0 0.0
        %1700 = vmatpush1.msra.mxu0 0.0
        %1701 = vmatprep.subr.mxu0 0.0
        %1702 = vmatpush1.msra.mxu0 0.0
        %1703 = vmatprep.subr.mxu0 0.0
        %1704 = vmatpush1.msra.mxu0 0.0
        %1705 = vmatprep.subr.mxu0 0.0
        %1706 = vmatpush1.msra.mxu0 0.0
        %1707 = vmatprep.subr.mxu0 0.0
        %1708 = vmatpush1.msra.mxu0 0.0
        %1709 = vmatprep.subr.mxu0 0.0
        %1710 = vmatpush1.msra.mxu0 0.0
        %1711 = vmatprep.subr.mxu0 0.0
        %1712 = vmatpush1.msra.mxu0 0.0
        %1713 = vmatprep.subr.mxu0 0.0
        %1714 = vmatpush1.msra.mxu0 0.0
        %1715 = vmatprep.subr.mxu0 0.0
        %1716 = vmatpush1.msra.mxu0 0.0
        %1717 = vmatprep.subr.mxu0 0.0
        %1718 = vmatpush1.msra.mxu0 0.0
        %1719 = vmatprep.subr.mxu0 0.0
        %1720 = vmatpush1.msra.mxu0 0.0
        %1721 = vmatprep.subr.mxu0 0.0
        %1722 = vmatpush1.msra.mxu0 0.0
        %1723 = vmatprep.subr.mxu0 0.0
        %1724 = vmatpush1.msra.mxu0 0.0
        %1725 = vmatprep.subr.mxu0 0.0
        %1726 = vmatpush1.msra.mxu0 0.0
        %1727 = vmatprep.subr.mxu0 0.0
        %1728 = vmatpush1.msra.mxu0 0.0
        %1729 = vmatprep.subr.mxu0 0.0
        %1730 = vmatpush1.msra.mxu0 0.0
        %1731 = vmatprep.subr.mxu0 0.0
        %1732 = vmatpush1.msra.mxu0 0.0
        %1733 = vmatprep.subr.mxu0 0.0
        %1734 = vmatpush1.msra.mxu0 0.0
        %1735 = vmatprep.subr.mxu0 0.0
        %1736 = vmatpush1.msra.mxu0 0.0
        %1737 = vmatprep.subr.mxu0 0.0
        %1738 = vmatpush1.msra.mxu0 0.0
        %1739 = vmatprep.subr.mxu0 0.0
        %1740 = vmatpush1.msra.mxu0 0.0
        %1741 = vmatprep.subr.mxu0 0.0
        %1742 = vmatpush1.msra.mxu0 0.0
        %1743 = vmatprep.subr.mxu0 0.0
        %1744 = vmatpush1.msra.mxu0 0.0
        %1745 = vmatprep.subr.mxu0 0.0
        %1746 = vmatpush1.msra.mxu0 0.0
        %1747 = vmatprep.subr.mxu0 0.0
        %1748 = vmatpush1.msra.mxu0 0.0
        %1749 = vmatprep.subr.mxu0 0.0
        %1750 = vmatpush1.msra.mxu0 0.0
        %1751 = vmatprep.subr.mxu0 0.0
        %1752 = vmatpush1.msra.mxu0 0.0
        %1753 = vmatprep.subr.mxu0 0.0
        %1754 = vmatpush1.msra.mxu0 0.0
        %1755 = vmatprep.mubr.f32.mxu0 0.0
        %1756 = vmatmul.mubr.f32.gmra.mrb[0].mxu0 %v1689
        %v1757 = vpop.f32.mrb[0].mxu0
        %v1758 = vadd.f32 0.0, %v1757
        %v1759 = vpop.f32.mrb[0].mxu0
        %1760 = vdwg.mxu0
        %v1761 = vmax.f32 %v1684, %v1758
        %vm1762 = vcmask 654336
        %1763 = vst.msk [vmem:[#allocation3] sm:$0xff] %vm1762, 0.0
        %vm1764 = vcmask 648192
        %1765 = vst.msk [vmem:[#allocation3 + $0x8] sm:$0x3] %vm1764, 0.0
        %1767 = vrot.lane.b32.xlu0 %v1761, 8
        %v1768 = vpop.permute.xlu0 %1767
        %vm1770 = vcmask 588864
        %1771 = vst.msk [vmem:[#allocation3 + $0x1] sm:$0xff] %vm1770, %v1768
        %v1772 = vld [vmem:[#allocation3] sm:$0xff]
        %v1773 = vld [vmem:[#allocation9] sm:$0xff]
        %v1774 = vld [vmem:[#allocation9 + $0x8] sm:$0xff]
        %v1775 = vld [vmem:[#allocation9 + $0x10] sm:$0xff]
        %v1776 = vld [vmem:[#allocation9 + $0x18] sm:$0xff]
        %v1777 = vld [vmem:[#allocation9 + $0x20] sm:$0xff]
        %v1778 = vld [vmem:[#allocation9 + $0x28] sm:$0xff]
        %v1779 = vld [vmem:[#allocation9 + $0x30] sm:$0xff]
        %v1780 = vld [vmem:[#allocation9 + $0x38] sm:$0xff]
        %v1781 = vld [vmem:[#allocation9 + $0x40] sm:$0xff]
        %v1782 = vld [vmem:[#allocation9 + $0x48] sm:$0xff]
        %v1783 = vld [vmem:[#allocation9 + $0x50] sm:$0xff]
        %v1784 = vld [vmem:[#allocation9 + $0x58] sm:$0xff]
        %v1785 = vld [vmem:[#allocation9 + $0x60] sm:$0xff]
        %v1786 = vld [vmem:[#allocation9 + $0x68] sm:$0xff]
        %v1787 = vld [vmem:[#allocation9 + $0x70] sm:$0xff]
        %v1788 = vld [vmem:[#allocation9 + $0x78] sm:$0xff]
        %1790 = vrot.lane.b32.xlu0 %v1772, 120
        %v1791 = vpop.permute.xlu0 %1790
        %v1792 = vsel %vm607, %v1791, 0
        %1794 = vmatprep.subr.mxu0 0.0
        %1795 = vmatpush1.msra.mxu0 %v1781
        %1796 = vmatprep.subr.mxu0 0.0
        %1797 = vmatpush1.msra.mxu0 %v1782
        %1798 = vmatprep.subr.mxu0 0.0
        %1799 = vmatpush1.msra.mxu0 %v1783
        %1800 = vmatprep.subr.mxu0 0.0
        %1801 = vmatpush1.msra.mxu0 %v1784
        %1802 = vmatprep.subr.mxu0 0.0
        %1803 = vmatpush1.msra.mxu0 %v1785
        %1804 = vmatprep.subr.mxu0 0.0
        %1805 = vmatpush1.msra.mxu0 %v1786
        %1806 = vmatprep.subr.mxu0 0.0
        %1807 = vmatpush1.msra.mxu0 %v1787
        %1808 = vmatprep.subr.mxu0 0.0
        %1809 = vmatpush1.msra.mxu0 %v1788
        %1810 = vmatprep.subr.mxu0 0.0
        %1811 = vmatpush1.msra.mxu0 0.0
        %1812 = vmatprep.subr.mxu0 0.0
        %1813 = vmatpush1.msra.mxu0 0.0
        %1814 = vmatprep.subr.mxu0 0.0
        %1815 = vmatpush1.msra.mxu0 0.0
        %1816 = vmatprep.subr.mxu0 0.0
        %1817 = vmatpush1.msra.mxu0 0.0
        %1818 = vmatprep.subr.mxu0 0.0
        %1819 = vmatpush1.msra.mxu0 0.0
        %1820 = vmatprep.subr.mxu0 0.0
        %1821 = vmatpush1.msra.mxu0 0.0
        %1822 = vmatprep.subr.mxu0 0.0
        %1823 = vmatpush1.msra.mxu0 0.0
        %1824 = vmatprep.subr.mxu0 0.0
        %1825 = vmatpush1.msra.mxu0 0.0
        %1826 = vmatprep.subr.mxu0 0.0
        %1827 = vmatpush1.msra.mxu0 0.0
        %1828 = vmatprep.subr.mxu0 0.0
        %1829 = vmatpush1.msra.mxu0 0.0
        %1830 = vmatprep.subr.mxu0 0.0
        %1831 = vmatpush1.msra.mxu0 0.0
        %1832 = vmatprep.subr.mxu0 0.0
        %1833 = vmatpush1.msra.mxu0 0.0
        %1834 = vmatprep.subr.mxu0 0.0
        %1835 = vmatpush1.msra.mxu0 0.0
        %1836 = vmatprep.subr.mxu0 0.0
        %1837 = vmatpush1.msra.mxu0 0.0
        %1838 = vmatprep.subr.mxu0 0.0
        %1839 = vmatpush1.msra.mxu0 0.0
        %1840 = vmatprep.subr.mxu0 0.0
        %1841 = vmatpush1.msra.mxu0 0.0
        %1842 = vmatprep.subr.mxu0 0.0
        %1843 = vmatpush1.msra.mxu0 0.0
        %1844 = vmatprep.subr.mxu0 0.0
        %1845 = vmatpush1.msra.mxu0 0.0
        %1846 = vmatprep.subr.mxu0 0.0
        %1847 = vmatpush1.msra.mxu0 0.0
        %1848 = vmatprep.subr.mxu0 0.0
        %1849 = vmatpush1.msra.mxu0 0.0
        %1850 = vmatprep.subr.mxu0 0.0
        %1851 = vmatpush1.msra.mxu0 0.0
        %1852 = vmatprep.subr.mxu0 0.0
        %1853 = vmatpush1.msra.mxu0 0.0
        %1854 = vmatprep.subr.mxu0 0.0
        %1855 = vmatpush1.msra.mxu0 0.0
        %1856 = vmatprep.subr.mxu0 0.0
        %1857 = vmatpush1.msra.mxu0 0.0
        %1858 = vmatprep.mubr.f32.mxu0 0.0
        %1859 = vmatmul.mubr.f32.gmra.mrb[0].mxu0 %v1792
        %v1860 = vpop.f32.mrb[0].mxu0
        %v1861 = vadd.f32 0.0, %v1860
        %v1862 = vpop.f32.mrb[0].mxu0
        %1863 = vdwg.mxu0
        %v1864 = vsel %vm607, %v1772, 0
        %1866 = vmatprep.subr.mxu0 0.0
        %1867 = vmatpush1.msra.mxu0 %v1773
        %1868 = vmatprep.subr.mxu0 0.0
        %1869 = vmatpush1.msra.mxu0 %v1774
        %1870 = vmatprep.subr.mxu0 0.0
        %1871 = vmatpush1.msra.mxu0 %v1775
        %1872 = vmatprep.subr.mxu0 0.0
        %1873 = vmatpush1.msra.mxu0 %v1776
        %1874 = vmatprep.subr.mxu0 0.0
        %1875 = vmatpush1.msra.mxu0 %v1777
        %1876 = vmatprep.subr.mxu0 0.0
        %1877 = vmatpush1.msra.mxu0 %v1778
        %1878 = vmatprep.subr.mxu0 0.0
        %1879 = vmatpush1.msra.mxu0 %v1779
        %1880 = vmatprep.subr.mxu0 0.0
        %1881 = vmatpush1.msra.mxu0 %v1780
        %1882 = vmatprep.subr.mxu0 0.0
        %1883 = vmatpush1.msra.mxu0 0.0
        %1884 = vmatprep.subr.mxu0 0.0
        %1885 = vmatpush1.msra.mxu0 0.0
        %1886 = vmatprep.subr.mxu0 0.0
        %1887 = vmatpush1.msra.mxu0 0.0
        %1888 = vmatprep.subr.mxu0 0.0
        %1889 = vmatpush1.msra.mxu0 0.0
        %1890 = vmatprep.subr.mxu0 0.0
        %1891 = vmatpush1.msra.mxu0 0.0
        %1892 = vmatprep.subr.mxu0 0.0
        %1893 = vmatpush1.msra.mxu0 0.0
        %1894 = vmatprep.subr.mxu0 0.0
        %1895 = vmatpush1.msra.mxu0 0.0
        %1896 = vmatprep.subr.mxu0 0.0
        %1897 = vmatpush1.msra.mxu0 0.0
        %1898 = vmatprep.subr.mxu0 0.0
        %1899 = vmatpush1.msra.mxu0 0.0
        %1900 = vmatprep.subr.mxu0 0.0
        %1901 = vmatpush1.msra.mxu0 0.0
        %1902 = vmatprep.subr.mxu0 0.0
        %1903 = vmatpush1.msra.mxu0 0.0
        %1904 = vmatprep.subr.mxu0 0.0
        %1905 = vmatpush1.msra.mxu0 0.0
        %1906 = vmatprep.subr.mxu0 0.0
        %1907 = vmatpush1.msra.mxu0 0.0
        %1908 = vmatprep.subr.mxu0 0.0
        %1909 = vmatpush1.msra.mxu0 0.0
        %1910 = vmatprep.subr.mxu0 0.0
        %1911 = vmatpush1.msra.mxu0 0.0
        %1912 = vmatprep.subr.mxu0 0.0
        %1913 = vmatpush1.msra.mxu0 0.0
        %1914 = vmatprep.subr.mxu0 0.0
        %1915 = vmatpush1.msra.mxu0 0.0
        %1916 = vmatprep.subr.mxu0 0.0
        %1917 = vmatpush1.msra.mxu0 0.0
        %1918 = vmatprep.subr.mxu0 0.0
        %1919 = vmatpush1.msra.mxu0 0.0
        %1920 = vmatprep.subr.mxu0 0.0
        %1921 = vmatpush1.msra.mxu0 0.0
        %1922 = vmatprep.subr.mxu0 0.0
        %1923 = vmatpush1.msra.mxu0 0.0
        %1924 = vmatprep.subr.mxu0 0.0
        %1925 = vmatpush1.msra.mxu0 0.0
        %1926 = vmatprep.subr.mxu0 0.0
        %1927 = vmatpush1.msra.mxu0 0.0
        %1928 = vmatprep.subr.mxu0 0.0
        %1929 = vmatpush1.msra.mxu0 0.0
        %1930 = vmatprep.mubr.f32.mxu0 0.0
        %1931 = vmatmul.mubr.f32.gmra.mrb[0].mxu0 %v1864
        %v1932 = vpop.f32.mrb[0].mxu0
        %v1933 = vadd.f32 %v1861, %v1932
        %v1934 = vpop.f32.mrb[0].mxu0
        %1935 = vdwg.mxu0
        %v1936 = vld [vmem:[#allocation9 + $0x80] sm:$0xff]
        %v1937 = vld [vmem:[#allocation9 + $0x88] sm:$0xff]
        %v1938 = vld [vmem:[#allocation9 + $0x90] sm:$0xff]
        %v1939 = vld [vmem:[#allocation9 + $0x98] sm:$0xff]
        %v1940 = vld [vmem:[#allocation9 + $0xa0] sm:$0xff]
        %v1941 = vld [vmem:[#allocation9 + $0xa8] sm:$0xff]
        %v1942 = vld [vmem:[#allocation9 + $0xb0] sm:$0xff]
        %v1943 = vld [vmem:[#allocation9 + $0xb8] sm:$0xff]
        %1944 = vrot.lane.b32.xlu0 %v1772, 112
        %v1945 = vpop.permute.xlu0 %1944
        %v1946 = vsel %vm607, %v1945, 0
        %1948 = vmatprep.subr.mxu0 0.0
        %1949 = vmatpush1.msra.mxu0 %v1936
        %1950 = vmatprep.subr.mxu0 0.0
        %1951 = vmatpush1.msra.mxu0 %v1937
        %1952 = vmatprep.subr.mxu0 0.0
        %1953 = vmatpush1.msra.mxu0 %v1938
        %1954 = vmatprep.subr.mxu0 0.0
        %1955 = vmatpush1.msra.mxu0 %v1939
        %1956 = vmatprep.subr.mxu0 0.0
        %1957 = vmatpush1.msra.mxu0 %v1940
        %1958 = vmatprep.subr.mxu0 0.0
        %1959 = vmatpush1.msra.mxu0 %v1941
        %1960 = vmatprep.subr.mxu0 0.0
        %1961 = vmatpush1.msra.mxu0 %v1942
        %1962 = vmatprep.subr.mxu0 0.0
        %1963 = vmatpush1.msra.mxu0 %v1943
        %1964 = vmatprep.subr.mxu0 0.0
        %1965 = vmatpush1.msra.mxu0 0.0
        %1966 = vmatprep.subr.mxu0 0.0
        %1967 = vmatpush1.msra.mxu0 0.0
        %1968 = vmatprep.subr.mxu0 0.0
        %1969 = vmatpush1.msra.mxu0 0.0
        %1970 = vmatprep.subr.mxu0 0.0
        %1971 = vmatpush1.msra.mxu0 0.0
        %1972 = vmatprep.subr.mxu0 0.0
        %1973 = vmatpush1.msra.mxu0 0.0
        %1974 = vmatprep.subr.mxu0 0.0
        %1975 = vmatpush1.msra.mxu0 0.0
        %1976 = vmatprep.subr.mxu0 0.0
        %1977 = vmatpush1.msra.mxu0 0.0
        %1978 = vmatprep.subr.mxu0 0.0
        %1979 = vmatpush1.msra.mxu0 0.0
        %1980 = vmatprep.subr.mxu0 0.0
        %1981 = vmatpush1.msra.mxu0 0.0
        %1982 = vmatprep.subr.mxu0 0.0
        %1983 = vmatpush1.msra.mxu0 0.0
        %1984 = vmatprep.subr.mxu0 0.0
        %1985 = vmatpush1.msra.mxu0 0.0
        %1986 = vmatprep.subr.mxu0 0.0
        %1987 = vmatpush1.msra.mxu0 0.0
        %1988 = vmatprep.subr.mxu0 0.0
        %1989 = vmatpush1.msra.mxu0 0.0
        %1990 = vmatprep.subr.mxu0 0.0
        %1991 = vmatpush1.msra.mxu0 0.0
        %1992 = vmatprep.subr.mxu0 0.0
        %1993 = vmatpush1.msra.mxu0 0.0
        %1994 = vmatprep.subr.mxu0 0.0
        %1995 = vmatpush1.msra.mxu0 0.0
        %1996 = vmatprep.subr.mxu0 0.0
        %1997 = vmatpush1.msra.mxu0 0.0
        %1998 = vmatprep.subr.mxu0 0.0
        %1999 = vmatpush1.msra.mxu0 0.0
        %2000 = vmatprep.subr.mxu0 0.0
        %2001 = vmatpush1.msra.mxu0 0.0
        %2002 = vmatprep.subr.mxu0 0.0
        %2003 = vmatpush1.msra.mxu0 0.0
        %2004 = vmatprep.subr.mxu0 0.0
        %2005 = vmatpush1.msra.mxu0 0.0
        %2006 = vmatprep.subr.mxu0 0.0
        %2007 = vmatpush1.msra.mxu0 0.0
        %2008 = vmatprep.subr.mxu0 0.0
        %2009 = vmatpush1.msra.mxu0 0.0
        %2010 = vmatprep.subr.mxu0 0.0
        %2011 = vmatpush1.msra.mxu0 0.0
        %2012 = vmatprep.mubr.f32.mxu0 0.0
        %2013 = vmatmul.mubr.f32.gmra.mrb[0].mxu0 %v1946
        %v2014 = vpop.f32.mrb[0].mxu0
        %v2015 = vadd.f32 0.0, %v2014
        %v2016 = vpop.f32.mrb[0].mxu0
        %2017 = vdwg.mxu0
        %v2018 = vadd.f32 %v1933, %v2015
        %v2019 = vld [vmem:[#allocation3 + $0x1] sm:$0xff]
        %v2020 = vld [vmem:[#allocation9 + $0xc0] sm:$0xff]
        %v2021 = vld [vmem:[#allocation9 + $0xc8] sm:$0xff]
        %v2022 = vld [vmem:[#allocation9 + $0xd0] sm:$0xff]
        %v2023 = vld [vmem:[#allocation9 + $0xd8] sm:$0xff]
        %v2024 = vld [vmem:[#allocation9 + $0xe0] sm:$0xff]
        %v2025 = vld [vmem:[#allocation9 + $0xe8] sm:$0xff]
        %v2026 = vld [vmem:[#allocation9 + $0xf0] sm:$0xff]
        %v2027 = vld [vmem:[#allocation9 + $0xf8] sm:$0xff]
        %v2029 = vsel %vm607, %v2019, 0
        %2031 = vmatprep.subr.mxu0 0.0
        %2032 = vmatpush1.msra.mxu0 %v2020
        %2033 = vmatprep.subr.mxu0 0.0
        %2034 = vmatpush1.msra.mxu0 %v2021
        %2035 = vmatprep.subr.mxu0 0.0
        %2036 = vmatpush1.msra.mxu0 %v2022
        %2037 = vmatprep.subr.mxu0 0.0
        %2038 = vmatpush1.msra.mxu0 %v2023
        %2039 = vmatprep.subr.mxu0 0.0
        %2040 = vmatpush1.msra.mxu0 %v2024
        %2041 = vmatprep.subr.mxu0 0.0
        %2042 = vmatpush1.msra.mxu0 %v2025
        %2043 = vmatprep.subr.mxu0 0.0
        %2044 = vmatpush1.msra.mxu0 %v2026
        %2045 = vmatprep.subr.mxu0 0.0
        %2046 = vmatpush1.msra.mxu0 %v2027
        %2047 = vmatprep.subr.mxu0 0.0
        %2048 = vmatpush1.msra.mxu0 0.0
        %2049 = vmatprep.subr.mxu0 0.0
        %2050 = vmatpush1.msra.mxu0 0.0
        %2051 = vmatprep.subr.mxu0 0.0
        %2052 = vmatpush1.msra.mxu0 0.0
        %2053 = vmatprep.subr.mxu0 0.0
        %2054 = vmatpush1.msra.mxu0 0.0
        %2055 = vmatprep.subr.mxu0 0.0
        %2056 = vmatpush1.msra.mxu0 0.0
        %2057 = vmatprep.subr.mxu0 0.0
        %2058 = vmatpush1.msra.mxu0 0.0
        %2059 = vmatprep.subr.mxu0 0.0
        %2060 = vmatpush1.msra.mxu0 0.0
        %2061 = vmatprep.subr.mxu0 0.0
        %2062 = vmatpush1.msra.mxu0 0.0
        %2063 = vmatprep.subr.mxu0 0.0
        %2064 = vmatpush1.msra.mxu0 0.0
        %2065 = vmatprep.subr.mxu0 0.0
        %2066 = vmatpush1.msra.mxu0 0.0
        %2067 = vmatprep.subr.mxu0 0.0
        %2068 = vmatpush1.msra.mxu0 0.0
        %2069 = vmatprep.subr.mxu0 0.0
        %2070 = vmatpush1.msra.mxu0 0.0
        %2071 = vmatprep.subr.mxu0 0.0
        %2072 = vmatpush1.msra.mxu0 0.0
        %2073 = vmatprep.subr.mxu0 0.0
        %2074 = vmatpush1.msra.mxu0 0.0
        %2075 = vmatprep.subr.mxu0 0.0
        %2076 = vmatpush1.msra.mxu0 0.0
        %2077 = vmatprep.subr.mxu0 0.0
        %2078 = vmatpush1.msra.mxu0 0.0
        %2079 = vmatprep.subr.mxu0 0.0
        %2080 = vmatpush1.msra.mxu0 0.0
        %2081 = vmatprep.subr.mxu0 0.0
        %2082 = vmatpush1.msra.mxu0 0.0
        %2083 = vmatprep.subr.mxu0 0.0
        %2084 = vmatpush1.msra.mxu0 0.0
        %2085 = vmatprep.subr.mxu0 0.0
        %2086 = vmatpush1.msra.mxu0 0.0
        %2087 = vmatprep.subr.mxu0 0.0
        %2088 = vmatpush1.msra.mxu0 0.0
        %2089 = vmatprep.subr.mxu0 0.0
        %2090 = vmatpush1.msra.mxu0 0.0
        %2091 = vmatprep.subr.mxu0 0.0
        %2092 = vmatpush1.msra.mxu0 0.0
        %2093 = vmatprep.subr.mxu0 0.0
        %2094 = vmatpush1.msra.mxu0 0.0
        %2095 = vmatprep.mubr.f32.mxu0 0.0
        %2096 = vmatmul.mubr.f32.gmra.mrb[0].mxu0 %v2029
        %v2097 = vpop.f32.mrb[0].mxu0
        %v2098 = vadd.f32 0.0, %v2097
        %v2099 = vpop.f32.mrb[0].mxu0
        %2100 = vdwg.mxu0
        %v2101 = vadd.f32 %v2018, %v2098
        %v2102 = vld [vmem:[#allocation9 + $0x100] sm:$0xff]
        %v2103 = vld [vmem:[#allocation9 + $0x108] sm:$0xff]
        %v2104 = vld [vmem:[#allocation9 + $0x110] sm:$0xff]
        %v2105 = vld [vmem:[#allocation9 + $0x118] sm:$0xff]
        %v2106 = vld [vmem:[#allocation9 + $0x120] sm:$0xff]
        %v2107 = vld [vmem:[#allocation9 + $0x128] sm:$0xff]
        %v2108 = vld [vmem:[#allocation9 + $0x130] sm:$0xff]
        %v2109 = vld [vmem:[#allocation9 + $0x138] sm:$0xff]
        %2110 = vrot.lane.b32.xlu0 %v2019, 120
        %v2111 = vpop.permute.xlu0 %2110
        %v2112 = vsel %vm607, %v2111, 0
        %2114 = vmatprep.subr.mxu0 0.0
        %2115 = vmatpush1.msra.mxu0 %v2102
        %2116 = vmatprep.subr.mxu0 0.0
        %2117 = vmatpush1.msra.mxu0 %v2103
        %2118 = vmatprep.subr.mxu0 0.0
        %2119 = vmatpush1.msra.mxu0 %v2104
        %2120 = vmatprep.subr.mxu0 0.0
        %2121 = vmatpush1.msra.mxu0 %v2105
        %2122 = vmatprep.subr.mxu0 0.0
        %2123 = vmatpush1.msra.mxu0 %v2106
        %2124 = vmatprep.subr.mxu0 0.0
        %2125 = vmatpush1.msra.mxu0 %v2107
        %2126 = vmatprep.subr.mxu0 0.0
        %2127 = vmatpush1.msra.mxu0 %v2108
        %2128 = vmatprep.subr.mxu0 0.0
        %2129 = vmatpush1.msra.mxu0 %v2109
        %2130 = vmatprep.subr.mxu0 0.0
        %2131 = vmatpush1.msra.mxu0 0.0
        %2132 = vmatprep.subr.mxu0 0.0
        %2133 = vmatpush1.msra.mxu0 0.0
        %2134 = vmatprep.subr.mxu0 0.0
        %2135 = vmatpush1.msra.mxu0 0.0
        %2136 = vmatprep.subr.mxu0 0.0
        %2137 = vmatpush1.msra.mxu0 0.0
        %2138 = vmatprep.subr.mxu0 0.0
        %2139 = vmatpush1.msra.mxu0 0.0
        %2140 = vmatprep.subr.mxu0 0.0
        %2141 = vmatpush1.msra.mxu0 0.0
        %2142 = vmatprep.subr.mxu0 0.0
        %2143 = vmatpush1.msra.mxu0 0.0
        %2144 = vmatprep.subr.mxu0 0.0
        %2145 = vmatpush1.msra.mxu0 0.0
        %2146 = vmatprep.subr.mxu0 0.0
        %2147 = vmatpush1.msra.mxu0 0.0
        %2148 = vmatprep.subr.mxu0 0.0
        %2149 = vmatpush1.msra.mxu0 0.0
        %2150 = vmatprep.subr.mxu0 0.0
        %2151 = vmatpush1.msra.mxu0 0.0
        %2152 = vmatprep.subr.mxu0 0.0
        %2153 = vmatpush1.msra.mxu0 0.0
        %2154 = vmatprep.subr.mxu0 0.0
        %2155 = vmatpush1.msra.mxu0 0.0
        %2156 = vmatprep.subr.mxu0 0.0
        %2157 = vmatpush1.msra.mxu0 0.0
        %2158 = vmatprep.subr.mxu0 0.0
        %2159 = vmatpush1.msra.mxu0 0.0
        %2160 = vmatprep.subr.mxu0 0.0
        %2161 = vmatpush1.msra.mxu0 0.0
        %2162 = vmatprep.subr.mxu0 0.0
        %2163 = vmatpush1.msra.mxu0 0.0
        %2164 = vmatprep.subr.mxu0 0.0
        %2165 = vmatpush1.msra.mxu0 0.0
        %2166 = vmatprep.subr.mxu0 0.0
        %2167 = vmatpush1.msra.mxu0 0.0
        %2168 = vmatprep.subr.mxu0 0.0
        %2169 = vmatpush1.msra.mxu0 0.0
        %2170 = vmatprep.subr.mxu0 0.0
        %2171 = vmatpush1.msra.mxu0 0.0
        %2172 = vmatprep.subr.mxu0 0.0
        %2173 = vmatpush1.msra.mxu0 0.0
        %2174 = vmatprep.subr.mxu0 0.0
        %2175 = vmatpush1.msra.mxu0 0.0
        %2176 = vmatprep.subr.mxu0 0.0
        %2177 = vmatpush1.msra.mxu0 0.0
        %2178 = vmatprep.mubr.f32.mxu0 0.0
        %2179 = vmatmul.mubr.f32.gmra.mrb[0].mxu0 %v2112
        %v2180 = vpop.f32.mrb[0].mxu0
        %v2181 = vadd.f32 0.0, %v2180
        %v2182 = vpop.f32.mrb[0].mxu0
        %2183 = vdwg.mxu0
        %v2184 = vadd.f32 %v2101, %v2181
        %v2185 = vld [vmem:[#allocation9 + $0x140] sm:$0xff]
        %v2186 = vld [vmem:[#allocation9 + $0x148] sm:$0xff]
        %v2187 = vld [vmem:[#allocation9 + $0x150] sm:$0xff]
        %v2188 = vld [vmem:[#allocation9 + $0x158] sm:$0xff]
        %v2189 = vld [vmem:[#allocation9 + $0x160] sm:$0xff]
        %v2190 = vld [vmem:[#allocation9 + $0x168] sm:$0xff]
        %v2191 = vld [vmem:[#allocation9 + $0x170] sm:$0xff]
        %v2192 = vld [vmem:[#allocation9 + $0x178] sm:$0xff]
        %2193 = vrot.lane.b32.xlu0 %v2019, 112
        %v2194 = vpop.permute.xlu0 %2193
        %v2195 = vsel %vm607, %v2194, 0
        %2197 = vmatprep.subr.mxu0 0.0
        %2198 = vmatpush1.msra.mxu0 %v2185
        %2199 = vmatprep.subr.mxu0 0.0
        %2200 = vmatpush1.msra.mxu0 %v2186
        %2201 = vmatprep.subr.mxu0 0.0
        %2202 = vmatpush1.msra.mxu0 %v2187
        %2203 = vmatprep.subr.mxu0 0.0
        %2204 = vmatpush1.msra.mxu0 %v2188
        %2205 = vmatprep.subr.mxu0 0.0
        %2206 = vmatpush1.msra.mxu0 %v2189
        %2207 = vmatprep.subr.mxu0 0.0
        %2208 = vmatpush1.msra.mxu0 %v2190
        %2209 = vmatprep.subr.mxu0 0.0
        %2210 = vmatpush1.msra.mxu0 %v2191
        %2211 = vmatprep.subr.mxu0 0.0
        %2212 = vmatpush1.msra.mxu0 %v2192
        %2213 = vmatprep.subr.mxu0 0.0
        %2214 = vmatpush1.msra.mxu0 0.0
        %2215 = vmatprep.subr.mxu0 0.0
        %2216 = vmatpush1.msra.mxu0 0.0
        %2217 = vmatprep.subr.mxu0 0.0
        %2218 = vmatpush1.msra.mxu0 0.0
        %2219 = vmatprep.subr.mxu0 0.0
        %2220 = vmatpush1.msra.mxu0 0.0
        %2221 = vmatprep.subr.mxu0 0.0
        %2222 = vmatpush1.msra.mxu0 0.0
        %2223 = vmatprep.subr.mxu0 0.0
        %2224 = vmatpush1.msra.mxu0 0.0
        %2225 = vmatprep.subr.mxu0 0.0
        %2226 = vmatpush1.msra.mxu0 0.0
        %2227 = vmatprep.subr.mxu0 0.0
        %2228 = vmatpush1.msra.mxu0 0.0
        %2229 = vmatprep.subr.mxu0 0.0
        %2230 = vmatpush1.msra.mxu0 0.0
        %2231 = vmatprep.subr.mxu0 0.0
        %2232 = vmatpush1.msra.mxu0 0.0
        %2233 = vmatprep.subr.mxu0 0.0
        %2234 = vmatpush1.msra.mxu0 0.0
        %2235 = vmatprep.subr.mxu0 0.0
        %2236 = vmatpush1.msra.mxu0 0.0
        %2237 = vmatprep.subr.mxu0 0.0
        %2238 = vmatpush1.msra.mxu0 0.0
        %2239 = vmatprep.subr.mxu0 0.0
        %2240 = vmatpush1.msra.mxu0 0.0
        %2241 = vmatprep.subr.mxu0 0.0
        %2242 = vmatpush1.msra.mxu0 0.0
        %2243 = vmatprep.subr.mxu0 0.0
        %2244 = vmatpush1.msra.mxu0 0.0
        %2245 = vmatprep.subr.mxu0 0.0
        %2246 = vmatpush1.msra.mxu0 0.0
        %2247 = vmatprep.subr.mxu0 0.0
        %2248 = vmatpush1.msra.mxu0 0.0
        %2249 = vmatprep.subr.mxu0 0.0
        %2250 = vmatpush1.msra.mxu0 0.0
        %2251 = vmatprep.subr.mxu0 0.0
        %2252 = vmatpush1.msra.mxu0 0.0
        %2253 = vmatprep.subr.mxu0 0.0
        %2254 = vmatpush1.msra.mxu0 0.0
        %2255 = vmatprep.subr.mxu0 0.0
        %2256 = vmatpush1.msra.mxu0 0.0
        %2257 = vmatprep.subr.mxu0 0.0
        %2258 = vmatpush1.msra.mxu0 0.0
        %2259 = vmatprep.subr.mxu0 0.0
        %2260 = vmatpush1.msra.mxu0 0.0
        %2261 = vmatprep.mubr.f32.mxu0 0.0
        %2262 = vmatmul.mubr.f32.gmra.mrb[0].mxu0 %v2195
        %v2263 = vpop.f32.mrb[0].mxu0
        %v2264 = vadd.f32 0.0, %v2263
        %v2265 = vpop.f32.mrb[0].mxu0
        %2266 = vdwg.mxu0
        %v2267 = vadd.f32 %v2184, %v2264
        %v2268 = vld [vmem:[#allocation3 + $0x2] sm:$0xff]
        %v2269 = vld [vmem:[#allocation9 + $0x180] sm:$0xff]
        %v2270 = vld [vmem:[#allocation9 + $0x188] sm:$0xff]
        %v2271 = vld [vmem:[#allocation9 + $0x190] sm:$0xff]
        %v2272 = vld [vmem:[#allocation9 + $0x198] sm:$0xff]
        %v2273 = vld [vmem:[#allocation9 + $0x1a0] sm:$0xff]
        %v2274 = vld [vmem:[#allocation9 + $0x1a8] sm:$0xff]
        %v2275 = vld [vmem:[#allocation9 + $0x1b0] sm:$0xff]
        %v2276 = vld [vmem:[#allocation9 + $0x1b8] sm:$0xff]
        %v2278 = vsel %vm607, %v2268, 0
        %2280 = vmatprep.subr.mxu0 0.0
        %2281 = vmatpush1.msra.mxu0 %v2269
        %2282 = vmatprep.subr.mxu0 0.0
        %2283 = vmatpush1.msra.mxu0 %v2270
        %2284 = vmatprep.subr.mxu0 0.0
        %2285 = vmatpush1.msra.mxu0 %v2271
        %2286 = vmatprep.subr.mxu0 0.0
        %2287 = vmatpush1.msra.mxu0 %v2272
        %2288 = vmatprep.subr.mxu0 0.0
        %2289 = vmatpush1.msra.mxu0 %v2273
        %2290 = vmatprep.subr.mxu0 0.0
        %2291 = vmatpush1.msra.mxu0 %v2274
        %2292 = vmatprep.subr.mxu0 0.0
        %2293 = vmatpush1.msra.mxu0 %v2275
        %2294 = vmatprep.subr.mxu0 0.0
        %2295 = vmatpush1.msra.mxu0 %v2276
        %2296 = vmatprep.subr.mxu0 0.0
        %2297 = vmatpush1.msra.mxu0 0.0
        %2298 = vmatprep.subr.mxu0 0.0
        %2299 = vmatpush1.msra.mxu0 0.0
        %2300 = vmatprep.subr.mxu0 0.0
        %2301 = vmatpush1.msra.mxu0 0.0
        %2302 = vmatprep.subr.mxu0 0.0
        %2303 = vmatpush1.msra.mxu0 0.0
        %2304 = vmatprep.subr.mxu0 0.0
        %2305 = vmatpush1.msra.mxu0 0.0
        %2306 = vmatprep.subr.mxu0 0.0
        %2307 = vmatpush1.msra.mxu0 0.0
        %2308 = vmatprep.subr.mxu0 0.0
        %2309 = vmatpush1.msra.mxu0 0.0
        %2310 = vmatprep.subr.mxu0 0.0
        %2311 = vmatpush1.msra.mxu0 0.0
        %2312 = vmatprep.subr.mxu0 0.0
        %2313 = vmatpush1.msra.mxu0 0.0
        %2314 = vmatprep.subr.mxu0 0.0
        %2315 = vmatpush1.msra.mxu0 0.0
        %2316 = vmatprep.subr.mxu0 0.0
        %2317 = vmatpush1.msra.mxu0 0.0
        %2318 = vmatprep.subr.mxu0 0.0
        %2319 = vmatpush1.msra.mxu0 0.0
        %2320 = vmatprep.subr.mxu0 0.0
        %2321 = vmatpush1.msra.mxu0 0.0
        %2322 = vmatprep.subr.mxu0 0.0
        %2323 = vmatpush1.msra.mxu0 0.0
        %2324 = vmatprep.subr.mxu0 0.0
        %2325 = vmatpush1.msra.mxu0 0.0
        %2326 = vmatprep.subr.mxu0 0.0
        %2327 = vmatpush1.msra.mxu0 0.0
        %2328 = vmatprep.subr.mxu0 0.0
        %2329 = vmatpush1.msra.mxu0 0.0
        %2330 = vmatprep.subr.mxu0 0.0
        %2331 = vmatpush1.msra.mxu0 0.0
        %2332 = vmatprep.subr.mxu0 0.0
        %2333 = vmatpush1.msra.mxu0 0.0
        %2334 = vmatprep.subr.mxu0 0.0
        %2335 = vmatpush1.msra.mxu0 0.0
        %2336 = vmatprep.subr.mxu0 0.0
        %2337 = vmatpush1.msra.mxu0 0.0
        %2338 = vmatprep.subr.mxu0 0.0
        %2339 = vmatpush1.msra.mxu0 0.0
        %2340 = vmatprep.subr.mxu0 0.0
        %2341 = vmatpush1.msra.mxu0 0.0
        %2342 = vmatprep.subr.mxu0 0.0
        %2343 = vmatpush1.msra.mxu0 0.0
        %2344 = vmatprep.mubr.f32.mxu0 0.0
        %2345 = vmatmul.mubr.f32.gmra.mrb[0].mxu0 %v2278
        %v2346 = vpop.f32.mrb[0].mxu0
        %v2347 = vadd.f32 0.0, %v2346
        %v2348 = vpop.f32.mrb[0].mxu0
        %2349 = vdwg.mxu0
        %v2350 = vadd.f32 %v2267, %v2347
        %v2351 = vld [vmem:[#allocation9 + $0x1c0] sm:$0xff]
        %v2352 = vld [vmem:[#allocation9 + $0x1c8] sm:$0xff]
        %v2353 = vld [vmem:[#allocation9 + $0x1d0] sm:$0xff]
        %v2354 = vld [vmem:[#allocation9 + $0x1d8] sm:$0xff]
        %v2355 = vld [vmem:[#allocation9 + $0x1e0] sm:$0xff]
        %v2356 = vld [vmem:[#allocation9 + $0x1e8] sm:$0xff]
        %v2357 = vld [vmem:[#allocation9 + $0x1f0] sm:$0xff]
        %v2358 = vld [vmem:[#allocation9 + $0x1f8] sm:$0xff]
        %2359 = vrot.lane.b32.xlu0 %v2268, 120
        %v2360 = vpop.permute.xlu0 %2359
        %v2361 = vsel %vm607, %v2360, 0
        %2363 = vmatprep.subr.mxu0 0.0
        %2364 = vmatpush1.msra.mxu0 %v2351
        %2365 = vmatprep.subr.mxu0 0.0
        %2366 = vmatpush1.msra.mxu0 %v2352
        %2367 = vmatprep.subr.mxu0 0.0
        %2368 = vmatpush1.msra.mxu0 %v2353
        %2369 = vmatprep.subr.mxu0 0.0
        %2370 = vmatpush1.msra.mxu0 %v2354
        %2371 = vmatprep.subr.mxu0 0.0
        %2372 = vmatpush1.msra.mxu0 %v2355
        %2373 = vmatprep.subr.mxu0 0.0
        %2374 = vmatpush1.msra.mxu0 %v2356
        %2375 = vmatprep.subr.mxu0 0.0
        %2376 = vmatpush1.msra.mxu0 %v2357
        %2377 = vmatprep.subr.mxu0 0.0
        %2378 = vmatpush1.msra.mxu0 %v2358
        %2379 = vmatprep.subr.mxu0 0.0
        %2380 = vmatpush1.msra.mxu0 0.0
        %2381 = vmatprep.subr.mxu0 0.0
        %2382 = vmatpush1.msra.mxu0 0.0
        %2383 = vmatprep.subr.mxu0 0.0
        %2384 = vmatpush1.msra.mxu0 0.0
        %2385 = vmatprep.subr.mxu0 0.0
        %2386 = vmatpush1.msra.mxu0 0.0
        %2387 = vmatprep.subr.mxu0 0.0
        %2388 = vmatpush1.msra.mxu0 0.0
        %2389 = vmatprep.subr.mxu0 0.0
        %2390 = vmatpush1.msra.mxu0 0.0
        %2391 = vmatprep.subr.mxu0 0.0
        %2392 = vmatpush1.msra.mxu0 0.0
        %2393 = vmatprep.subr.mxu0 0.0
        %2394 = vmatpush1.msra.mxu0 0.0
        %2395 = vmatprep.subr.mxu0 0.0
        %2396 = vmatpush1.msra.mxu0 0.0
        %2397 = vmatprep.subr.mxu0 0.0
        %2398 = vmatpush1.msra.mxu0 0.0
        %2399 = vmatprep.subr.mxu0 0.0
        %2400 = vmatpush1.msra.mxu0 0.0
        %2401 = vmatprep.subr.mxu0 0.0
        %2402 = vmatpush1.msra.mxu0 0.0
        %2403 = vmatprep.subr.mxu0 0.0
        %2404 = vmatpush1.msra.mxu0 0.0
        %2405 = vmatprep.subr.mxu0 0.0
        %2406 = vmatpush1.msra.mxu0 0.0
        %2407 = vmatprep.subr.mxu0 0.0
        %2408 = vmatpush1.msra.mxu0 0.0
        %2409 = vmatprep.subr.mxu0 0.0
        %2410 = vmatpush1.msra.mxu0 0.0
        %2411 = vmatprep.subr.mxu0 0.0
        %2412 = vmatpush1.msra.mxu0 0.0
        %2413 = vmatprep.subr.mxu0 0.0
        %2414 = vmatpush1.msra.mxu0 0.0
        %2415 = vmatprep.subr.mxu0 0.0
        %2416 = vmatpush1.msra.mxu0 0.0
        %2417 = vmatprep.subr.mxu0 0.0
        %2418 = vmatpush1.msra.mxu0 0.0
        %2419 = vmatprep.subr.mxu0 0.0
        %2420 = vmatpush1.msra.mxu0 0.0
        %2421 = vmatprep.subr.mxu0 0.0
        %2422 = vmatpush1.msra.mxu0 0.0
        %2423 = vmatprep.subr.mxu0 0.0
        %2424 = vmatpush1.msra.mxu0 0.0
        %2425 = vmatprep.subr.mxu0 0.0
        %2426 = vmatpush1.msra.mxu0 0.0
        %2427 = vmatprep.mubr.f32.mxu0 0.0
        %2428 = vmatmul.mubr.f32.gmra.mrb[0].mxu0 %v2361
        %v2429 = vpop.f32.mrb[0].mxu0
        %v2430 = vadd.f32 0.0, %v2429
        %v2431 = vpop.f32.mrb[0].mxu0
        %2432 = vdwg.mxu0
        %v2433 = vadd.f32 %v2350, %v2430
        %v2434 = vld [vmem:[#allocation9 + $0x200] sm:$0xff]
        %v2435 = vld [vmem:[#allocation9 + $0x208] sm:$0xff]
        %v2436 = vld [vmem:[#allocation9 + $0x210] sm:$0xff]
        %v2437 = vld [vmem:[#allocation9 + $0x218] sm:$0xff]
        %v2438 = vld [vmem:[#allocation9 + $0x220] sm:$0xff]
        %v2439 = vld [vmem:[#allocation9 + $0x228] sm:$0xff]
        %v2440 = vld [vmem:[#allocation9 + $0x230] sm:$0xff]
        %v2441 = vld [vmem:[#allocation9 + $0x238] sm:$0xff]
        %2442 = vrot.lane.b32.xlu0 %v2268, 112
        %v2443 = vpop.permute.xlu0 %2442
        %v2444 = vsel %vm607, %v2443, 0
        %2446 = vmatprep.subr.mxu0 0.0
        %2447 = vmatpush1.msra.mxu0 %v2434
        %2448 = vmatprep.subr.mxu0 0.0
        %2449 = vmatpush1.msra.mxu0 %v2435
        %2450 = vmatprep.subr.mxu0 0.0
        %2451 = vmatpush1.msra.mxu0 %v2436
        %2452 = vmatprep.subr.mxu0 0.0
        %2453 = vmatpush1.msra.mxu0 %v2437
        %2454 = vmatprep.subr.mxu0 0.0
        %2455 = vmatpush1.msra.mxu0 %v2438
        %2456 = vmatprep.subr.mxu0 0.0
        %2457 = vmatpush1.msra.mxu0 %v2439
        %2458 = vmatprep.subr.mxu0 0.0
        %2459 = vmatpush1.msra.mxu0 %v2440
        %2460 = vmatprep.subr.mxu0 0.0
        %2461 = vmatpush1.msra.mxu0 %v2441
        %2462 = vmatprep.subr.mxu0 0.0
        %2463 = vmatpush1.msra.mxu0 0.0
        %2464 = vmatprep.subr.mxu0 0.0
        %2465 = vmatpush1.msra.mxu0 0.0
        %2466 = vmatprep.subr.mxu0 0.0
        %2467 = vmatpush1.msra.mxu0 0.0
        %2468 = vmatprep.subr.mxu0 0.0
        %2469 = vmatpush1.msra.mxu0 0.0
        %2470 = vmatprep.subr.mxu0 0.0
        %2471 = vmatpush1.msra.mxu0 0.0
        %2472 = vmatprep.subr.mxu0 0.0
        %2473 = vmatpush1.msra.mxu0 0.0
        %2474 = vmatprep.subr.mxu0 0.0
        %2475 = vmatpush1.msra.mxu0 0.0
        %2476 = vmatprep.subr.mxu0 0.0
        %2477 = vmatpush1.msra.mxu0 0.0
        %2478 = vmatprep.subr.mxu0 0.0
        %2479 = vmatpush1.msra.mxu0 0.0
        %2480 = vmatprep.subr.mxu0 0.0
        %2481 = vmatpush1.msra.mxu0 0.0
        %2482 = vmatprep.subr.mxu0 0.0
        %2483 = vmatpush1.msra.mxu0 0.0
        %2484 = vmatprep.subr.mxu0 0.0
        %2485 = vmatpush1.msra.mxu0 0.0
        %2486 = vmatprep.subr.mxu0 0.0
        %2487 = vmatpush1.msra.mxu0 0.0
        %2488 = vmatprep.subr.mxu0 0.0
        %2489 = vmatpush1.msra.mxu0 0.0
        %2490 = vmatprep.subr.mxu0 0.0
        %2491 = vmatpush1.msra.mxu0 0.0
        %2492 = vmatprep.subr.mxu0 0.0
        %2493 = vmatpush1.msra.mxu0 0.0
        %2494 = vmatprep.subr.mxu0 0.0
        %2495 = vmatpush1.msra.mxu0 0.0
        %2496 = vmatprep.subr.mxu0 0.0
        %2497 = vmatpush1.msra.mxu0 0.0
        %2498 = vmatprep.subr.mxu0 0.0
        %2499 = vmatpush1.msra.mxu0 0.0
        %2500 = vmatprep.subr.mxu0 0.0
        %2501 = vmatpush1.msra.mxu0 0.0
        %2502 = vmatprep.subr.mxu0 0.0
        %2503 = vmatpush1.msra.mxu0 0.0
        %2504 = vmatprep.subr.mxu0 0.0
        %2505 = vmatpush1.msra.mxu0 0.0
        %2506 = vmatprep.subr.mxu0 0.0
        %2507 = vmatpush1.msra.mxu0 0.0
        %2508 = vmatprep.subr.mxu0 0.0
        %2509 = vmatpush1.msra.mxu0 0.0
        %2510 = vmatprep.mubr.f32.mxu0 0.0
        %2511 = vmatmul.mubr.f32.gmra.mrb[0].mxu0 %v2444
        %v2512 = vpop.f32.mrb[0].mxu0
        %v2513 = vadd.f32 0.0, %v2512
        %v2514 = vpop.f32.mrb[0].mxu0
        %2515 = vdwg.mxu0
        %v2516 = vadd.f32 %v2433, %v2513
        %v2517 = vld [vmem:[%s8] sm:$0x1]
        %v2519 = vlaneseq
        %v2520 = vshrl.u32 %v2519, 7
        %v2521 = vsub.s32 0, %v2520
        %v2522 = vrot.slane %v2517, %v2521
        %v2524 = vadd.f32 %v2516, %v2522
        %v2525 = vmax.f32 %v2524, 0.0
        %v2526 = vld [vmem:[#allocation10] sm:$0xff]
        %v2527 = vld [vmem:[#allocation10 + $0x8] sm:$0xff]
        %v2528 = vld [vmem:[#allocation10 + $0x10] sm:$0xff]
        %v2529 = vld [vmem:[#allocation10 + $0x18] sm:$0xff]
        %v2530 = vld [vmem:[#allocation10 + $0x20] sm:$0xff]
        %v2531 = vld [vmem:[#allocation10 + $0x28] sm:$0xff]
        %v2532 = vld [vmem:[#allocation10 + $0x30] sm:$0xff]
        %v2533 = vld [vmem:[#allocation10 + $0x38] sm:$0xff]
        %v2534 = vld [vmem:[#allocation10 + $0x40] sm:$0xff]
        %v2535 = vld [vmem:[#allocation10 + $0x48] sm:$0xff]
        %v2536 = vld [vmem:[#allocation10 + $0x50] sm:$0xff]
        %v2537 = vld [vmem:[#allocation10 + $0x58] sm:$0xff]
        %v2538 = vld [vmem:[#allocation10 + $0x60] sm:$0xff]
        %v2539 = vld [vmem:[#allocation10 + $0x68] sm:$0xff]
        %v2540 = vld [vmem:[#allocation10 + $0x70] sm:$0xff]
        %v2541 = vld [vmem:[#allocation10 + $0x78] sm:$0xff]
        %2542 = vmatprep.subr.mxu0 0.0
        %2543 = vmatpush1.msra.mxu0 %v2526
        %2544 = vmatprep.subr.mxu0 0.0
        %2545 = vmatpush1.msra.mxu0 %v2527
        %2546 = vmatprep.subr.mxu0 0.0
        %2547 = vmatpush1.msra.mxu0 %v2528
        %2548 = vmatprep.subr.mxu0 0.0
        %2549 = vmatpush1.msra.mxu0 %v2529
        %2550 = vmatprep.subr.mxu0 0.0
        %2551 = vmatpush1.msra.mxu0 %v2530
        %2552 = vmatprep.subr.mxu0 0.0
        %2553 = vmatpush1.msra.mxu0 %v2531
        %2554 = vmatprep.subr.mxu0 0.0
        %2555 = vmatpush1.msra.mxu0 %v2532
        %2556 = vmatprep.subr.mxu0 0.0
        %2557 = vmatpush1.msra.mxu0 %v2533
        %2558 = vmatprep.subr.mxu0 0.0
        %2559 = vmatpush1.msra.mxu0 %v2534
        %2560 = vmatprep.subr.mxu0 0.0
        %2561 = vmatpush1.msra.mxu0 %v2535
        %2562 = vmatprep.subr.mxu0 0.0
        %2563 = vmatpush1.msra.mxu0 %v2536
        %2564 = vmatprep.subr.mxu0 0.0
        %2565 = vmatpush1.msra.mxu0 %v2537
        %2566 = vmatprep.subr.mxu0 0.0
        %2567 = vmatpush1.msra.mxu0 %v2538
        %2568 = vmatprep.subr.mxu0 0.0
        %2569 = vmatpush1.msra.mxu0 %v2539
        %2570 = vmatprep.subr.mxu0 0.0
        %2571 = vmatpush1.msra.mxu0 %v2540
        %2572 = vmatprep.subr.mxu0 0.0
        %2573 = vmatpush1.msra.mxu0 %v2541
        %2574 = vmatprep.subr.mxu0 0.0
        %2575 = vmatpush1.msra.mxu0 0.0
        %2576 = vmatprep.subr.mxu0 0.0
        %2577 = vmatpush1.msra.mxu0 0.0
        %2578 = vmatprep.subr.mxu0 0.0
        %2579 = vmatpush1.msra.mxu0 0.0
        %2580 = vmatprep.subr.mxu0 0.0
        %2581 = vmatpush1.msra.mxu0 0.0
        %2582 = vmatprep.subr.mxu0 0.0
        %2583 = vmatpush1.msra.mxu0 0.0
        %2584 = vmatprep.subr.mxu0 0.0
        %2585 = vmatpush1.msra.mxu0 0.0
        %2586 = vmatprep.subr.mxu0 0.0
        %2587 = vmatpush1.msra.mxu0 0.0
        %2588 = vmatprep.subr.mxu0 0.0
        %2589 = vmatpush1.msra.mxu0 0.0
        %2590 = vmatprep.subr.mxu0 0.0
        %2591 = vmatpush1.msra.mxu0 0.0
        %2592 = vmatprep.subr.mxu0 0.0
        %2593 = vmatpush1.msra.mxu0 0.0
        %2594 = vmatprep.subr.mxu0 0.0
        %2595 = vmatpush1.msra.mxu0 0.0
        %2596 = vmatprep.subr.mxu0 0.0
        %2597 = vmatpush1.msra.mxu0 0.0
        %2598 = vmatprep.subr.mxu0 0.0
        %2599 = vmatpush1.msra.mxu0 0.0
        %2600 = vmatprep.subr.mxu0 0.0
        %2601 = vmatpush1.msra.mxu0 0.0
        %2602 = vmatprep.subr.mxu0 0.0
        %2603 = vmatpush1.msra.mxu0 0.0
        %2604 = vmatprep.subr.mxu0 0.0
        %2605 = vmatpush1.msra.mxu0 0.0
        %2606 = vmatprep.mubr.f32.mxu0 0.0
        %2607 = vmatmul.mubr.f32.gmra.mrb[0].mxu0 %v2525
        %v2608 = vpop.f32.mrb[0].mxu0
        %v2609 = vadd.f32 0.0, %v2608
        %v2610 = vpop.f32.mrb[0].mxu0
        %2611 = vdwg.mxu0
        %v2612 = vld [vmem:[#allocation12] sm:$0xff]
        %v2613 = vld [vmem:[#allocation12 + $0x8] sm:$0xff]
        %v2614 = vld [vmem:[#allocation12 + $0x10] sm:$0xff]
        %v2615 = vld [vmem:[#allocation12 + $0x18] sm:$0xff]
        %v2616 = vld [vmem:[#allocation12 + $0x20] sm:$0xff]
        %v2617 = vld [vmem:[#allocation12 + $0x28] sm:$0xff]
        %v2618 = vld [vmem:[#allocation12 + $0x30] sm:$0xff]
        %v2619 = vld [vmem:[#allocation12 + $0x38] sm:$0xff]
        %v2620 = vld [vmem:[#allocation12 + $0x40] sm:$0xff]
        %v2621 = vld [vmem:[#allocation12 + $0x48] sm:$0xff]
        %v2622 = vld [vmem:[#allocation12 + $0x50] sm:$0xff]
        %v2623 = vld [vmem:[#allocation12 + $0x58] sm:$0xff]
        %v2624 = vld [vmem:[#allocation12 + $0x60] sm:$0xff]
        %v2625 = vld [vmem:[#allocation12 + $0x68] sm:$0xff]
        %v2626 = vld [vmem:[#allocation12 + $0x70] sm:$0xff]
        %v2627 = vld [vmem:[#allocation12 + $0x78] sm:$0xff]
        %2628 = vmatprep.subr.mxu0 0.0
        %2629 = vmatpush1.msra.mxu0 %v2612
        %2630 = vmatprep.subr.mxu0 0.0
        %2631 = vmatpush1.msra.mxu0 %v2613
        %2632 = vmatprep.subr.mxu0 0.0
        %2633 = vmatpush1.msra.mxu0 %v2614
        %2634 = vmatprep.subr.mxu0 0.0
        %2635 = vmatpush1.msra.mxu0 %v2615
        %2636 = vmatprep.subr.mxu0 0.0
        %2637 = vmatpush1.msra.mxu0 %v2616
        %2638 = vmatprep.subr.mxu0 0.0
        %2639 = vmatpush1.msra.mxu0 %v2617
        %2640 = vmatprep.subr.mxu0 0.0
        %2641 = vmatpush1.msra.mxu0 %v2618
        %2642 = vmatprep.subr.mxu0 0.0
        %2643 = vmatpush1.msra.mxu0 %v2619
        %2644 = vmatprep.subr.mxu0 0.0
        %2645 = vmatpush1.msra.mxu0 %v2620
        %2646 = vmatprep.subr.mxu0 0.0
        %2647 = vmatpush1.msra.mxu0 %v2621
        %2648 = vmatprep.subr.mxu0 0.0
        %2649 = vmatpush1.msra.mxu0 %v2622
        %2650 = vmatprep.subr.mxu0 0.0
        %2651 = vmatpush1.msra.mxu0 %v2623
        %2652 = vmatprep.subr.mxu0 0.0
        %2653 = vmatpush1.msra.mxu0 %v2624
        %2654 = vmatprep.subr.mxu0 0.0
        %2655 = vmatpush1.msra.mxu0 %v2625
        %2656 = vmatprep.subr.mxu0 0.0
        %2657 = vmatpush1.msra.mxu0 %v2626
        %2658 = vmatprep.subr.mxu0 0.0
        %2659 = vmatpush1.msra.mxu0 %v2627
        %2660 = vmatprep.subr.mxu0 0.0
        %2661 = vmatpush1.msra.mxu0 0.0
        %2662 = vmatprep.subr.mxu0 0.0
        %2663 = vmatpush1.msra.mxu0 0.0
        %2664 = vmatprep.subr.mxu0 0.0
        %2665 = vmatpush1.msra.mxu0 0.0
        %2666 = vmatprep.subr.mxu0 0.0
        %2667 = vmatpush1.msra.mxu0 0.0
        %2668 = vmatprep.subr.mxu0 0.0
        %2669 = vmatpush1.msra.mxu0 0.0
        %2670 = vmatprep.subr.mxu0 0.0
        %2671 = vmatpush1.msra.mxu0 0.0
        %2672 = vmatprep.subr.mxu0 0.0
        %2673 = vmatpush1.msra.mxu0 0.0
        %2674 = vmatprep.subr.mxu0 0.0
        %2675 = vmatpush1.msra.mxu0 0.0
        %2676 = vmatprep.subr.mxu0 0.0
        %2677 = vmatpush1.msra.mxu0 0.0
        %2678 = vmatprep.subr.mxu0 0.0
        %2679 = vmatpush1.msra.mxu0 0.0
        %2680 = vmatprep.subr.mxu0 0.0
        %2681 = vmatpush1.msra.mxu0 0.0
        %2682 = vmatprep.subr.mxu0 0.0
        %2683 = vmatpush1.msra.mxu0 0.0
        %2684 = vmatprep.subr.mxu0 0.0
        %2685 = vmatpush1.msra.mxu0 0.0
        %2686 = vmatprep.subr.mxu0 0.0
        %2687 = vmatpush1.msra.mxu0 0.0
        %2688 = vmatprep.subr.mxu0 0.0
        %2689 = vmatpush1.msra.mxu0 0.0
        %2690 = vmatprep.subr.mxu0 0.0
        %2691 = vmatpush1.msra.mxu0 0.0
        %2692 = vmatprep.mubr.f32.mxu0 0.0
        %2693 = vmatmul.mubr.f32.gmra.mrb[0].mxu0 %v2525
        %v2694 = vpop.f32.mrb[0].mxu0
        %v2695 = vadd.f32 0.0, %v2694
        %v2696 = vpop.f32.mrb[0].mxu0
        %2697 = vdwg.mxu0
        %v2698 = vmax.f32 %v2609, %v2695
        %v2699 = vld [vmem:[%s11] sm:$0xf]
        %vm2700 = vcmask 64512
        %v2702 = vsel %vm2700, %v2699, 0
        %2704 = vmatprep.subr.mxu0 0.0
        %2705 = vmatpush1.msra.mxu0 %v2698
        %2706 = vmatprep.subr.mxu0 0.0
        %2707 = vmatpush1.msra.mxu0 0.0
        %2708 = vmatprep.subr.mxu0 0.0
        %2709 = vmatpush1.msra.mxu0 0.0
        %2710 = vmatprep.subr.mxu0 0.0
        %2711 = vmatpush1.msra.mxu0 0.0
        %2712 = vmatprep.subr.mxu0 0.0
        %2713 = vmatpush1.msra.mxu0 0.0
        %2714 = vmatprep.subr.mxu0 0.0
        %2715 = vmatpush1.msra.mxu0 0.0
        %2716 = vmatprep.subr.mxu0 0.0
        %2717 = vmatpush1.msra.mxu0 0.0
        %2718 = vmatprep.subr.mxu0 0.0
        %2719 = vmatpush1.msra.mxu0 0.0
        %2720 = vmatprep.subr.mxu0 0.0
        %2721 = vmatpush1.msra.mxu0 0.0
        %2722 = vmatprep.subr.mxu0 0.0
        %2723 = vmatpush1.msra.mxu0 0.0
        %2724 = vmatprep.subr.mxu0 0.0
        %2725 = vmatpush1.msra.mxu0 0.0
        %2726 = vmatprep.subr.mxu0 0.0
        %2727 = vmatpush1.msra.mxu0 0.0
        %2728 = vmatprep.subr.mxu0 0.0
        %2729 = vmatpush1.msra.mxu0 0.0
        %2730 = vmatprep.subr.mxu0 0.0
        %2731 = vmatpush1.msra.mxu0 0.0
        %2732 = vmatprep.subr.mxu0 0.0
        %2733 = vmatpush1.msra.mxu0 0.0
        %2734 = vmatprep.subr.mxu0 0.0
        %2735 = vmatpush1.msra.mxu0 0.0
        %2736 = vmatprep.subr.mxu0 0.0
        %2737 = vmatpush1.msra.mxu0 0.0
        %2738 = vmatprep.subr.mxu0 0.0
        %2739 = vmatpush1.msra.mxu0 0.0
        %2740 = vmatprep.subr.mxu0 0.0
        %2741 = vmatpush1.msra.mxu0 0.0
        %2742 = vmatprep.subr.mxu0 0.0
        %2743 = vmatpush1.msra.mxu0 0.0
        %2744 = vmatprep.subr.mxu0 0.0
        %2745 = vmatpush1.msra.mxu0 0.0
        %2746 = vmatprep.subr.mxu0 0.0
        %2747 = vmatpush1.msra.mxu0 0.0
        %2748 = vmatprep.subr.mxu0 0.0
        %2749 = vmatpush1.msra.mxu0 0.0
        %2750 = vmatprep.subr.mxu0 0.0
        %2751 = vmatpush1.msra.mxu0 0.0
        %2752 = vmatprep.subr.mxu0 0.0
        %2753 = vmatpush1.msra.mxu0 0.0
        %2754 = vmatprep.subr.mxu0 0.0
        %2755 = vmatpush1.msra.mxu0 0.0
        %2756 = vmatprep.subr.mxu0 0.0
        %2757 = vmatpush1.msra.mxu0 0.0
        %2758 = vmatprep.subr.mxu0 0.0
        %2759 = vmatpush1.msra.mxu0 0.0
        %2760 = vmatprep.subr.mxu0 0.0
        %2761 = vmatpush1.msra.mxu0 0.0
        %2762 = vmatprep.subr.mxu0 0.0
        %2763 = vmatpush1.msra.mxu0 0.0
        %2764 = vmatprep.subr.mxu0 0.0
        %2765 = vmatpush1.msra.mxu0 0.0
        %2766 = vmatprep.subr.mxu0 0.0
        %2767 = vmatpush1.msra.mxu0 0.0
        %2768 = vmatprep.mubr.f32.mxu0 0.0
        %2769 = vmatmul.mubr.f32.gmra.mrb[0].mxu0 %v2702
        %v2770 = vpop.f32.mrb[0].mxu0
        %v2771 = vadd.f32 0.0, %v2770
        %v2772 = vpop.f32.mrb[0].mxu0
        %2773 = vdwg.mxu0
        %v2774 = vld [vmem:[%s12] sm:$0xf]
        %v2776 = vsel %vm2700, %v2774, 0
        %2778 = vmatprep.subr.mxu0 0.0
        %2779 = vmatpush1.msra.mxu0 %v2698
        %2780 = vmatprep.subr.mxu0 0.0
        %2781 = vmatpush1.msra.mxu0 0.0
        %2782 = vmatprep.subr.mxu0 0.0
        %2783 = vmatpush1.msra.mxu0 0.0
        %2784 = vmatprep.subr.mxu0 0.0
        %2785 = vmatpush1.msra.mxu0 0.0
        %2786 = vmatprep.subr.mxu0 0.0
        %2787 = vmatpush1.msra.mxu0 0.0
        %2788 = vmatprep.subr.mxu0 0.0
        %2789 = vmatpush1.msra.mxu0 0.0
        %2790 = vmatprep.subr.mxu0 0.0
        %2791 = vmatpush1.msra.mxu0 0.0
        %2792 = vmatprep.subr.mxu0 0.0
        %2793 = vmatpush1.msra.mxu0 0.0
        %2794 = vmatprep.subr.mxu0 0.0
        %2795 = vmatpush1.msra.mxu0 0.0
        %2796 = vmatprep.subr.mxu0 0.0
        %2797 = vmatpush1.msra.mxu0 0.0
        %2798 = vmatprep.subr.mxu0 0.0
        %2799 = vmatpush1.msra.mxu0 0.0
        %2800 = vmatprep.subr.mxu0 0.0
        %2801 = vmatpush1.msra.mxu0 0.0
        %2802 = vmatprep.subr.mxu0 0.0
        %2803 = vmatpush1.msra.mxu0 0.0
        %2804 = vmatprep.subr.mxu0 0.0
        %2805 = vmatpush1.msra.mxu0 0.0
        %2806 = vmatprep.subr.mxu0 0.0
        %2807 = vmatpush1.msra.mxu0 0.0
        %2808 = vmatprep.subr.mxu0 0.0
        %2809 = vmatpush1.msra.mxu0 0.0
        %2810 = vmatprep.subr.mxu0 0.0
        %2811 = vmatpush1.msra.mxu0 0.0
        %2812 = vmatprep.subr.mxu0 0.0
        %2813 = vmatpush1.msra.mxu0 0.0
        %2814 = vmatprep.subr.mxu0 0.0
        %2815 = vmatpush1.msra.mxu0 0.0
        %2816 = vmatprep.subr.mxu0 0.0
        %2817 = vmatpush1.msra.mxu0 0.0
        %2818 = vmatprep.subr.mxu0 0.0
        %2819 = vmatpush1.msra.mxu0 0.0
        %2820 = vmatprep.subr.mxu0 0.0
        %2821 = vmatpush1.msra.mxu0 0.0
        %2822 = vmatprep.subr.mxu0 0.0
        %2823 = vmatpush1.msra.mxu0 0.0
        %2824 = vmatprep.subr.mxu0 0.0
        %2825 = vmatpush1.msra.mxu0 0.0
        %2826 = vmatprep.subr.mxu0 0.0
        %2827 = vmatpush1.msra.mxu0 0.0
        %2828 = vmatprep.subr.mxu0 0.0
        %2829 = vmatpush1.msra.mxu0 0.0
        %2830 = vmatprep.subr.mxu0 0.0
        %2831 = vmatpush1.msra.mxu0 0.0
        %2832 = vmatprep.subr.mxu0 0.0
        %2833 = vmatpush1.msra.mxu0 0.0
        %2834 = vmatprep.subr.mxu0 0.0
        %2835 = vmatpush1.msra.mxu0 0.0
        %2836 = vmatprep.subr.mxu0 0.0
        %2837 = vmatpush1.msra.mxu0 0.0
        %2838 = vmatprep.subr.mxu0 0.0
        %2839 = vmatpush1.msra.mxu0 0.0
        %2840 = vmatprep.subr.mxu0 0.0
        %2841 = vmatpush1.msra.mxu0 0.0
        %2842 = vmatprep.mubr.f32.mxu0 0.0
        %2843 = vmatmul.mubr.f32.gmra.mrb[0].mxu0 %v2776
        %v2844 = vpop.f32.mrb[0].mxu0
        %v2845 = vadd.f32 0.0, %v2844
        %v2846 = vpop.f32.mrb[0].mxu0
        %2847 = vdwg.mxu0
        %v2848 = vmax.f32 %v2771, %v2845
        %v2849 = vld [vmem:[%s14] sm:$0x1]
        %v2850 = vld [vmem:[%s13] sm:$0xff]
        %v2851 = vld [vmem:[%s13 + $0x8] sm:$0xff]
        %v2852 = vld [vmem:[%s13 + $0x10] sm:$0xff]
        %v2853 = vld [vmem:[%s13 + $0x18] sm:$0xff]
        %v2854 = vld [vmem:[%s13 + $0x20] sm:$0xff]
        %v2855 = vld [vmem:[%s13 + $0x28] sm:$0xff]
        %v2856 = vld [vmem:[%s13 + $0x30] sm:$0xff]
        %v2857 = vld [vmem:[%s13 + $0x38] sm:$0xff]
        %v2859 = vsel %vm607, %v2848, 0
        %2861 = vmatprep.subr.mxu0 0.0
        %2862 = vmatpush1.msra.mxu0 %v2850
        %2863 = vmatprep.subr.mxu0 0.0
        %2864 = vmatpush1.msra.mxu0 %v2851
        %2865 = vmatprep.subr.mxu0 0.0
        %2866 = vmatpush1.msra.mxu0 %v2852
        %2867 = vmatprep.subr.mxu0 0.0
        %2868 = vmatpush1.msra.mxu0 %v2853
        %2869 = vmatprep.subr.mxu0 0.0
        %2870 = vmatpush1.msra.mxu0 %v2854
        %2871 = vmatprep.subr.mxu0 0.0
        %2872 = vmatpush1.msra.mxu0 %v2855
        %2873 = vmatprep.subr.mxu0 0.0
        %2874 = vmatpush1.msra.mxu0 %v2856
        %2875 = vmatprep.subr.mxu0 0.0
        %2876 = vmatpush1.msra.mxu0 %v2857
        %2877 = vmatprep.subr.mxu0 0.0
        %2878 = vmatpush1.msra.mxu0 0.0
        %2879 = vmatprep.subr.mxu0 0.0
        %2880 = vmatpush1.msra.mxu0 0.0
        %2881 = vmatprep.subr.mxu0 0.0
        %2882 = vmatpush1.msra.mxu0 0.0
        %2883 = vmatprep.subr.mxu0 0.0
        %2884 = vmatpush1.msra.mxu0 0.0
        %2885 = vmatprep.subr.mxu0 0.0
        %2886 = vmatpush1.msra.mxu0 0.0
        %2887 = vmatprep.subr.mxu0 0.0
        %2888 = vmatpush1.msra.mxu0 0.0
        %2889 = vmatprep.subr.mxu0 0.0
        %2890 = vmatpush1.msra.mxu0 0.0
        %2891 = vmatprep.subr.mxu0 0.0
        %2892 = vmatpush1.msra.mxu0 0.0
        %2893 = vmatprep.subr.mxu0 0.0
        %2894 = vmatpush1.msra.mxu0 0.0
        %2895 = vmatprep.subr.mxu0 0.0
        %2896 = vmatpush1.msra.mxu0 0.0
        %2897 = vmatprep.subr.mxu0 0.0
        %2898 = vmatpush1.msra.mxu0 0.0
        %2899 = vmatprep.subr.mxu0 0.0
        %2900 = vmatpush1.msra.mxu0 0.0
        %2901 = vmatprep.subr.mxu0 0.0
        %2902 = vmatpush1.msra.mxu0 0.0
        %2903 = vmatprep.subr.mxu0 0.0
        %2904 = vmatpush1.msra.mxu0 0.0
        %2905 = vmatprep.subr.mxu0 0.0
        %2906 = vmatpush1.msra.mxu0 0.0
        %2907 = vmatprep.subr.mxu0 0.0
        %2908 = vmatpush1.msra.mxu0 0.0
        %2909 = vmatprep.subr.mxu0 0.0
        %2910 = vmatpush1.msra.mxu0 0.0
        %2911 = vmatprep.subr.mxu0 0.0
        %2912 = vmatpush1.msra.mxu0 0.0
        %2913 = vmatprep.subr.mxu0 0.0
        %2914 = vmatpush1.msra.mxu0 0.0
        %2915 = vmatprep.subr.mxu0 0.0
        %2916 = vmatpush1.msra.mxu0 0.0
        %2917 = vmatprep.subr.mxu0 0.0
        %2918 = vmatpush1.msra.mxu0 0.0
        %2919 = vmatprep.subr.mxu0 0.0
        %2920 = vmatpush1.msra.mxu0 0.0
        %2921 = vmatprep.subr.mxu0 0.0
        %2922 = vmatpush1.msra.mxu0 0.0
        %2923 = vmatprep.subr.mxu0 0.0
        %2924 = vmatpush1.msra.mxu0 0.0
        %2925 = vmatprep.mubr.f32.mxu0 0.0
        %2926 = vmatmul.mubr.f32.gmra.mrb[0].mxu0 %v2859
        %v2927 = vpop.f32.mrb[0].mxu0
        %v2928 = vadd.f32 0.0, %v2927
        %v2929 = vpop.f32.mrb[0].mxu0
        %2930 = vdwg.mxu0
        %v2931 = vadd.f32 %v2849, %v2928
        %v2932 = vld [vmem:[%s13 + $0x40] sm:$0xff]
        %v2933 = vld [vmem:[%s13 + $0x48] sm:$0xff]
        %v2934 = vld [vmem:[%s13 + $0x50] sm:$0xff]
        %v2935 = vld [vmem:[%s13 + $0x58] sm:$0xff]
        %v2936 = vld [vmem:[%s13 + $0x60] sm:$0xff]
        %v2937 = vld [vmem:[%s13 + $0x68] sm:$0xff]
        %v2938 = vld [vmem:[%s13 + $0x70] sm:$0xff]
        %v2939 = vld [vmem:[%s13 + $0x78] sm:$0xff]
        %v2940 = vrot.slane %v2848, 1
        %v2941 = vsel %vm607, %v2940, 0
        %2943 = vmatprep.subr.mxu0 0.0
        %2944 = vmatpush1.msra.mxu0 %v2932
        %2945 = vmatprep.subr.mxu0 0.0
        %2946 = vmatpush1.msra.mxu0 %v2933
        %2947 = vmatprep.subr.mxu0 0.0
        %2948 = vmatpush1.msra.mxu0 %v2934
        %2949 = vmatprep.subr.mxu0 0.0
        %2950 = vmatpush1.msra.mxu0 %v2935
        %2951 = vmatprep.subr.mxu0 0.0
        %2952 = vmatpush1.msra.mxu0 %v2936
        %2953 = vmatprep.subr.mxu0 0.0
        %2954 = vmatpush1.msra.mxu0 %v2937
        %2955 = vmatprep.subr.mxu0 0.0
        %2956 = vmatpush1.msra.mxu0 %v2938
        %2957 = vmatprep.subr.mxu0 0.0
        %2958 = vmatpush1.msra.mxu0 %v2939
        %2959 = vmatprep.subr.mxu0 0.0
        %2960 = vmatpush1.msra.mxu0 0.0
        %2961 = vmatprep.subr.mxu0 0.0
        %2962 = vmatpush1.msra.mxu0 0.0
        %2963 = vmatprep.subr.mxu0 0.0
        %2964 = vmatpush1.msra.mxu0 0.0
        %2965 = vmatprep.subr.mxu0 0.0
        %2966 = vmatpush1.msra.mxu0 0.0
        %2967 = vmatprep.subr.mxu0 0.0
        %2968 = vmatpush1.msra.mxu0 0.0
        %2969 = vmatprep.subr.mxu0 0.0
        %2970 = vmatpush1.msra.mxu0 0.0
        %2971 = vmatprep.subr.mxu0 0.0
        %2972 = vmatpush1.msra.mxu0 0.0
        %2973 = vmatprep.subr.mxu0 0.0
        %2974 = vmatpush1.msra.mxu0 0.0
        %2975 = vmatprep.subr.mxu0 0.0
        %2976 = vmatpush1.msra.mxu0 0.0
        %2977 = vmatprep.subr.mxu0 0.0
        %2978 = vmatpush1.msra.mxu0 0.0
        %2979 = vmatprep.subr.mxu0 0.0
        %2980 = vmatpush1.msra.mxu0 0.0
        %2981 = vmatprep.subr.mxu0 0.0
        %2982 = vmatpush1.msra.mxu0 0.0
        %2983 = vmatprep.subr.mxu0 0.0
        %2984 = vmatpush1.msra.mxu0 0.0
        %2985 = vmatprep.subr.mxu0 0.0
        %2986 = vmatpush1.msra.mxu0 0.0
        %2987 = vmatprep.subr.mxu0 0.0
        %2988 = vmatpush1.msra.mxu0 0.0
        %2989 = vmatprep.subr.mxu0 0.0
        %2990 = vmatpush1.msra.mxu0 0.0
        %2991 = vmatprep.subr.mxu0 0.0
        %2992 = vmatpush1.msra.mxu0 0.0
        %2993 = vmatprep.subr.mxu0 0.0
        %2994 = vmatpush1.msra.mxu0 0.0
        %2995 = vmatprep.subr.mxu0 0.0
        %2996 = vmatpush1.msra.mxu0 0.0
        %2997 = vmatprep.subr.mxu0 0.0
        %2998 = vmatpush1.msra.mxu0 0.0
        %2999 = vmatprep.subr.mxu0 0.0
        %3000 = vmatpush1.msra.mxu0 0.0
        %3001 = vmatprep.subr.mxu0 0.0
        %3002 = vmatpush1.msra.mxu0 0.0
        %3003 = vmatprep.subr.mxu0 0.0
        %3004 = vmatpush1.msra.mxu0 0.0
        %3005 = vmatprep.subr.mxu0 0.0
        %3006 = vmatpush1.msra.mxu0 0.0
        %3007 = vmatprep.mubr.f32.mxu0 0.0
        %3008 = vmatmul.mubr.f32.gmra.mrb[0].mxu0 %v2941
        %v3009 = vpop.f32.mrb[0].mxu0
        %v3010 = vadd.f32 0.0, %v3009
        %v3011 = vpop.f32.mrb[0].mxu0
        %3012 = vdwg.mxu0
        %v3013 = vadd.f32 %v2931, %v3010
        %v3014 = vld [vmem:[%s13 + $0x80] sm:$0xff]
        %v3015 = vld [vmem:[%s13 + $0x88] sm:$0xff]
        %v3016 = vld [vmem:[%s13 + $0x90] sm:$0xff]
        %v3017 = vld [vmem:[%s13 + $0x98] sm:$0xff]
        %v3018 = vld [vmem:[%s13 + $0xa0] sm:$0xff]
        %v3019 = vld [vmem:[%s13 + $0xa8] sm:$0xff]
        %v3020 = vld [vmem:[%s13 + $0xb0] sm:$0xff]
        %v3021 = vld [vmem:[%s13 + $0xb8] sm:$0xff]
        %v3022 = vrot.slane %v2848, 2
        %v3023 = vsel %vm607, %v3022, 0
        %3025 = vmatprep.subr.mxu0 0.0
        %3026 = vmatpush1.msra.mxu0 %v3014
        %3027 = vmatprep.subr.mxu0 0.0
        %3028 = vmatpush1.msra.mxu0 %v3015
        %3029 = vmatprep.subr.mxu0 0.0
        %3030 = vmatpush1.msra.mxu0 %v3016
        %3031 = vmatprep.subr.mxu0 0.0
        %3032 = vmatpush1.msra.mxu0 %v3017
        %3033 = vmatprep.subr.mxu0 0.0
        %3034 = vmatpush1.msra.mxu0 %v3018
        %3035 = vmatprep.subr.mxu0 0.0
        %3036 = vmatpush1.msra.mxu0 %v3019
        %3037 = vmatprep.subr.mxu0 0.0
        %3038 = vmatpush1.msra.mxu0 %v3020
        %3039 = vmatprep.subr.mxu0 0.0
        %3040 = vmatpush1.msra.mxu0 %v3021
        %3041 = vmatprep.subr.mxu0 0.0
        %3042 = vmatpush1.msra.mxu0 0.0
        %3043 = vmatprep.subr.mxu0 0.0
        %3044 = vmatpush1.msra.mxu0 0.0
        %3045 = vmatprep.subr.mxu0 0.0
        %3046 = vmatpush1.msra.mxu0 0.0
        %3047 = vmatprep.subr.mxu0 0.0
        %3048 = vmatpush1.msra.mxu0 0.0
        %3049 = vmatprep.subr.mxu0 0.0
        %3050 = vmatpush1.msra.mxu0 0.0
        %3051 = vmatprep.subr.mxu0 0.0
        %3052 = vmatpush1.msra.mxu0 0.0
        %3053 = vmatprep.subr.mxu0 0.0
        %3054 = vmatpush1.msra.mxu0 0.0
        %3055 = vmatprep.subr.mxu0 0.0
        %3056 = vmatpush1.msra.mxu0 0.0
        %3057 = vmatprep.subr.mxu0 0.0
        %3058 = vmatpush1.msra.mxu0 0.0
        %3059 = vmatprep.subr.mxu0 0.0
        %3060 = vmatpush1.msra.mxu0 0.0
        %3061 = vmatprep.subr.mxu0 0.0
        %3062 = vmatpush1.msra.mxu0 0.0
        %3063 = vmatprep.subr.mxu0 0.0
        %3064 = vmatpush1.msra.mxu0 0.0
        %3065 = vmatprep.subr.mxu0 0.0
        %3066 = vmatpush1.msra.mxu0 0.0
        %3067 = vmatprep.subr.mxu0 0.0
        %3068 = vmatpush1.msra.mxu0 0.0
        %3069 = vmatprep.subr.mxu0 0.0
        %3070 = vmatpush1.msra.mxu0 0.0
        %3071 = vmatprep.subr.mxu0 0.0
        %3072 = vmatpush1.msra.mxu0 0.0
        %3073 = vmatprep.subr.mxu0 0.0
        %3074 = vmatpush1.msra.mxu0 0.0
        %3075 = vmatprep.subr.mxu0 0.0
        %3076 = vmatpush1.msra.mxu0 0.0
        %3077 = vmatprep.subr.mxu0 0.0
        %3078 = vmatpush1.msra.mxu0 0.0
        %3079 = vmatprep.subr.mxu0 0.0
        %3080 = vmatpush1.msra.mxu0 0.0
        %3081 = vmatprep.subr.mxu0 0.0
        %3082 = vmatpush1.msra.mxu0 0.0
        %3083 = vmatprep.subr.mxu0 0.0
        %3084 = vmatpush1.msra.mxu0 0.0
        %3085 = vmatprep.subr.mxu0 0.0
        %3086 = vmatpush1.msra.mxu0 0.0
        %3087 = vmatprep.subr.mxu0 0.0
        %3088 = vmatpush1.msra.mxu0 0.0
        %3089 = vmatprep.mubr.f32.mxu0 0.0
        %3090 = vmatmul.mubr.f32.gmra.mrb[0].mxu0 %v3023
        %v3091 = vpop.f32.mrb[0].mxu0
        %v3092 = vadd.f32 0.0, %v3091
        %v3093 = vpop.f32.mrb[0].mxu0
        %3094 = vdwg.mxu0
        %v3095 = vadd.f32 %v3013, %v3092
        %v3096 = vld [vmem:[%s13 + $0xc0] sm:$0xff]
        %v3097 = vld [vmem:[%s13 + $0xc8] sm:$0xff]
        %v3098 = vld [vmem:[%s13 + $0xd0] sm:$0xff]
        %v3099 = vld [vmem:[%s13 + $0xd8] sm:$0xff]
        %v3100 = vld [vmem:[%s13 + $0xe0] sm:$0xff]
        %v3101 = vld [vmem:[%s13 + $0xe8] sm:$0xff]
        %v3102 = vld [vmem:[%s13 + $0xf0] sm:$0xff]
        %v3103 = vld [vmem:[%s13 + $0xf8] sm:$0xff]
        %v3104 = vrot.slane %v2848, 3
        %v3105 = vsel %vm607, %v3104, 0
        %3107 = vmatprep.subr.mxu0 0.0
        %3108 = vmatpush1.msra.mxu0 %v3096
        %3109 = vmatprep.subr.mxu0 0.0
        %3110 = vmatpush1.msra.mxu0 %v3097
        %3111 = vmatprep.subr.mxu0 0.0
        %3112 = vmatpush1.msra.mxu0 %v3098
        %3113 = vmatprep.subr.mxu0 0.0
        %3114 = vmatpush1.msra.mxu0 %v3099
        %3115 = vmatprep.subr.mxu0 0.0
        %3116 = vmatpush1.msra.mxu0 %v3100
        %3117 = vmatprep.subr.mxu0 0.0
        %3118 = vmatpush1.msra.mxu0 %v3101
        %3119 = vmatprep.subr.mxu0 0.0
        %3120 = vmatpush1.msra.mxu0 %v3102
        %3121 = vmatprep.subr.mxu0 0.0
        %3122 = vmatpush1.msra.mxu0 %v3103
        %3123 = vmatprep.subr.mxu0 0.0
        %3124 = vmatpush1.msra.mxu0 0.0
        %3125 = vmatprep.subr.mxu0 0.0
        %3126 = vmatpush1.msra.mxu0 0.0
        %3127 = vmatprep.subr.mxu0 0.0
        %3128 = vmatpush1.msra.mxu0 0.0
        %3129 = vmatprep.subr.mxu0 0.0
        %3130 = vmatpush1.msra.mxu0 0.0
        %3131 = vmatprep.subr.mxu0 0.0
        %3132 = vmatpush1.msra.mxu0 0.0
        %3133 = vmatprep.subr.mxu0 0.0
        %3134 = vmatpush1.msra.mxu0 0.0
        %3135 = vmatprep.subr.mxu0 0.0
        %3136 = vmatpush1.msra.mxu0 0.0
        %3137 = vmatprep.subr.mxu0 0.0
        %3138 = vmatpush1.msra.mxu0 0.0
        %3139 = vmatprep.subr.mxu0 0.0
        %3140 = vmatpush1.msra.mxu0 0.0
        %3141 = vmatprep.subr.mxu0 0.0
        %3142 = vmatpush1.msra.mxu0 0.0
        %3143 = vmatprep.subr.mxu0 0.0
        %3144 = vmatpush1.msra.mxu0 0.0
        %3145 = vmatprep.subr.mxu0 0.0
        %3146 = vmatpush1.msra.mxu0 0.0
        %3147 = vmatprep.subr.mxu0 0.0
        %3148 = vmatpush1.msra.mxu0 0.0
        %3149 = vmatprep.subr.mxu0 0.0
        %3150 = vmatpush1.msra.mxu0 0.0
        %3151 = vmatprep.subr.mxu0 0.0
        %3152 = vmatpush1.msra.mxu0 0.0
        %3153 = vmatprep.subr.mxu0 0.0
        %3154 = vmatpush1.msra.mxu0 0.0
        %3155 = vmatprep.subr.mxu0 0.0
        %3156 = vmatpush1.msra.mxu0 0.0
        %3157 = vmatprep.subr.mxu0 0.0
        %3158 = vmatpush1.msra.mxu0 0.0
        %3159 = vmatprep.subr.mxu0 0.0
        %3160 = vmatpush1.msra.mxu0 0.0
        %3161 = vmatprep.subr.mxu0 0.0
        %3162 = vmatpush1.msra.mxu0 0.0
        %3163 = vmatprep.subr.mxu0 0.0
        %3164 = vmatpush1.msra.mxu0 0.0
        %3165 = vmatprep.subr.mxu0 0.0
        %3166 = vmatpush1.msra.mxu0 0.0
        %3167 = vmatprep.subr.mxu0 0.0
        %3168 = vmatpush1.msra.mxu0 0.0
        %3169 = vmatprep.subr.mxu0 0.0
        %3170 = vmatpush1.msra.mxu0 0.0
        %3171 = vmatprep.mubr.f32.mxu0 0.0
        %3172 = vmatmul.mubr.f32.gmra.mrb[0].mxu0 %v3105
        %v3173 = vpop.f32.mrb[0].mxu0
        %v3174 = vadd.f32 0.0, %v3173
        %v3175 = vpop.f32.mrb[0].mxu0
        %3176 = vdwg.mxu0
        %v3177 = vadd.f32 %v3095, %v3174
        %vm3178 = vcmask 73728
        %3179 = vst.msk [vmem:[%s559] sm:$0x1] %vm3178, %v3177
        %s3180 = sand.u32 %s360, 1
        %s3181 = scalar_lea.sflag [#allocation6], %s3180
        %s3182 = sand.u32 %s360, 1
        %s3183 = scalar_lea.vmem [#allocation13], %s3182
        // Predicated region
        $region101: #{forward.1} parent=79 // pred_check
          %p3184 = pneg %p370
        $region102: #{forward.1} parent=79 // pred_check_branch
          %3186 = sbr.rel (%p3184) target = $region104
        $region103: #{forward.1} parent=79 // pred_region
          %s3188 = ssub.s32 16, 16
          %3189 = vsyncadd %s3181, %s3188
          %s3190 = smul.addr %s32, 16
          %s3191 = scalar_lea.hbm %s15, %s3190
          %s3193 = sshll.u32 %s3183, 4
          %s3194 = int_to_ptr.vmem [resolvable:$true] %s3193
          %3196 = dma.vmem_to_hbm [thread:$0]  %s3194, 16, %s3191, %s3181
        $region104: #{forward.1} parent=79 // pred_fallthru
          _
      $region80: #{forward.1} parent=5 // pred_fallthru
        _
      %p3197 = scmp.le.s32.totalorder 2, %s27
      // Predicated region
      $region105: #{forward.1} parent=5 // pred_check
        %p3198 = pneg %p3197
      $region106: #{forward.1} parent=5 // pred_check_branch
        %3200 = sbr.rel (%p3198) target = $region108
      $region107: #{forward.1} parent=5 // pred_region
        %s3201 = ssub.s32 %s27, 2
        // Predicated region
        $region109: #{forward.1} parent=107 // pred_check
          %p3202 = pneg %p376
        $region110: #{forward.1} parent=107 // pred_check_branch
          %3204 = sbr.rel (%p3202) target = $region112
        $region111: #{forward.1} parent=107 // pred_region
          %s3205 = sand.u32 %s361, 1
          %s3206 = scalar_lea.sflag [#allocation6], %s3205
          %s3207 = sand.u32 %s361, 1
          %s3208 = scalar_lea.vmem [#allocation13], %s3207
          %3209 = dma.done %s3206, 16
        $region112: #{forward.1} parent=107 // pred_fallthru
          _
      $region108: #{forward.1} parent=5 // pred_fallthru
        _
    $region6: #{forward.1} parent=1 // loop_footer
      %s31 = sadd.s32 1, %s27
    $region7: #{forward.1} parent=1 // loop_footer_branch
      %26 = sbr.rel target = $region3
    $region8: #{forward.1} parent=1 // loop_exit
      _
    %3210 = vsyncpa [#allocation5], 1
    %s3211 = scalar_lea.sflag [#allocation5], 1
    %3212 = vsyncpa %s3211, 1
    %3213 = vsyncpa [#allocation8], 1
    %3214 = vsyncpa [#allocation11], 1
    %3215 = vsyncpa [#allocation6], 1
    %s3216 = scalar_lea.sflag [#allocation6], 1
    %3217 = vsyncpa %s3216, 1

</llo_original>
